<compile_context>
chip_gen: v6e
topology: v6e:2x2x1
jax: 0.10.0
libtpu: 0.0.40
codegen_flags: <defaults>
</compile_context>

<pallas_src>
import jax
import jax.numpy as jnp
import numpy as np
from jax.experimental import pallas as pl
from jax.experimental.pallas import tpu as pltpu

# ---- module hyper-parameters (synthetic, small) -------------------------------------------
ATOM_FDIM = 16      # get_atom_fdim()
BOND_FDIM = 32      # get_bond_fdim()  (bond features, atom_messages=False path)
HIDDEN = 32         # args.hidden_size
DEPTH = 3           # args.mpn_depth
N_ATOMS = 16        # includes zero-padding atom at index 0
N_BONDS = 32        # includes zero-padding bond at index 0
MAX_NB = 4          # width of a2b (max incoming bonds per atom)

# ---- TPU layout constants -------------------------------------------------------------------
H_PAD = 128         # hidden lane-padded to a full vreg lane dim
AF_PAD = 128        # atom_fdim lane-padded
BF_PAD = 128        # bond_fdim lane-padded
ROW_ALIGN = 8       # sublane alignment for the atom/bond axes
MXU_DTYPE = jnp.bfloat16   # MXU operand dtype; accumulate in f32


def _round_up(x, m):
    return ((x + m - 1) // m) * m


def _pad2(x, rows, cols):
    return jnp.pad(x, ((0, rows - x.shape[0]), (0, cols - x.shape[1])))


# ---- fused kernel ---------------------------------------------------------------------------
def make_fused_kernel(na_pad, nb_pad):
    def kernel(a2b_ref, b2a_ref, b2revb_ref,                       # scalar prefetch (SMEM)
               f_bonds_ref, f_atoms_ref,                           # VMEM inputs
               w_i_ref, w_h_ref, w_oa_ref, w_om_ref, b_o_ref,      # VMEM weights (full blocks)
               out_ref,                                            # VMEM output
               inp_ref, msg_ref, amsg_ref, gat_ref):               # VMEM scratch
        # ---- init: input = W_i(f_bonds); message = ReLU(input) ------------------------------
        inp = jnp.dot(f_bonds_ref[...], w_i_ref[...], preferred_element_type=jnp.float32)
        inp_ref[...] = inp
        msg_ref[...] = jnp.maximum(inp, 0.0)

        def atom_incoming_sums():
            # a_message[a] = sum_nb message[a2b[a, nb]]  (per-atom, shared by all its bonds)
            for a in range(na_pad):
                acc = msg_ref[pl.ds(a2b_ref[a * MAX_NB + 0], 1), :]
                for k in range(1, MAX_NB):
                    acc = acc + msg_ref[pl.ds(a2b_ref[a * MAX_NB + k], 1), :]
                amsg_ref[pl.ds(a, 1), :] = acc

        # ---- (DEPTH - 1) directed-bond message-passing steps, message resident in VMEM ------
        for _ in range(DEPTH - 1):
            atom_incoming_sums()
            # gathered[b] = a_message[b2a[b]] - message[b2revb[b]]  (2 dynamic reads per bond)
            for b in range(nb_pad):
                gat_ref[pl.ds(b, 1), :] = (amsg_ref[pl.ds(b2a_ref[b], 1), :]
                                           - msg_ref[pl.ds(b2revb_ref[b], 1), :])
            h = jnp.dot(gat_ref[...].astype(MXU_DTYPE), w_h_ref[...],
                        preferred_element_type=jnp.float32)
            msg_ref[...] = jnp.maximum(inp_ref[...] + h, 0.0)
            # dropout_layer: identity in eval mode (deterministic forward)

        # ---- atom readout: ReLU(W_o([f_atoms, a_message]) + b_o) -----------------------------
        atom_incoming_sums()
        hidden = (jnp.dot(f_atoms_ref[...], w_oa_ref[...], preferred_element_type=jnp.float32)
                  + jnp.dot(amsg_ref[...].astype(MXU_DTYPE), w_om_ref[...],
                            preferred_element_type=jnp.float32)
                  + b_o_ref[...])
        out_ref[...] = jnp.maximum(hidden, 0.0)   # dropout: identity (eval)

    return kernel


# ---- one-time parameter preprocessing (hoisted out of the per-forward path) -----------------
def prepare_params(params):
    # nn.Linear stores [out, in]; pre-transpose, lane-pad, bf16-cast once. W_o is split along
    # its concat dim into the f_atoms part and the a_message part.
    return {
        "w_i_t":   _pad2(params["W_i"].T, BF_PAD, H_PAD).astype(MXU_DTYPE),
        "w_h_t":   _pad2(params["W_h"].T, H_PAD, H_PAD).astype(MXU_DTYPE),
        "w_o_a_t": _pad2(params["W_o"][:, :ATOM_FDIM].T, AF_PAD, H_PAD).astype(MXU_DTYPE),
        "w_o_m_t": _pad2(params["W_o"][:, ATOM_FDIM:].T, H_PAD, H_PAD).astype(MXU_DTYPE),
        "b_o":     jnp.pad(params["b_o"], (0, H_PAD - HIDDEN)).reshape(1, H_PAD)
                      .astype(jnp.float32),
    }


# ---- wrapper --------------------------------------------------------------------------------
def mpn_encoder_forward(f_atoms, f_bonds, a2b, b2a, b2revb, a_scope, prepared):
    n_atoms, n_bonds = f_atoms.shape[0], f_bonds.shape[0]
    na_pad = _round_up(n_atoms, ROW_ALIGN)
    nb_pad = _round_up(n_bonds, ROW_ALIGN)

    # glue: sublane/lane zero-padding + bf16 casts (exact on the zero-padded parts)
    f_atoms_p = _pad2(f_atoms, na_pad, AF_PAD).astype(MXU_DTYPE)
    f_bonds_p = _pad2(f_bonds, nb_pad, BF_PAD).astype(MXU_DTYPE)

    # index arrays -> int32 in SMEM; a2b flattened so the SMEM footprint stays compact (1-D)
    a2b_flat = jnp.pad(a2b, ((0, na_pad - n_atoms), (0, 0))).astype(jnp.int32).reshape(-1)
    b2a_p = jnp.pad(b2a, (0, nb_pad - n_bonds)).astype(jnp.int32)
    b2revb_p = jnp.pad(b2revb, (0, nb_pad - n_bonds)).astype(jnp.int32)

    kernel = make_fused_kernel(na_pad, nb_pad)

    atom_hiddens = pl.pallas_call(
        kernel,
        out_shape=jax.ShapeDtypeStruct((na_pad, H_PAD), jnp.float32),
        grid_spec=pltpu.PrefetchScalarGridSpec(
            num_scalar_prefetch=3,
            grid=(1,),
            in_specs=[pl.BlockSpec((nb_pad, BF_PAD), lambda i, *_: (0, 0)),   # f_bonds
                      pl.BlockSpec((na_pad, AF_PAD), lambda i, *_: (0, 0)),   # f_atoms
                      pl.BlockSpec((BF_PAD, H_PAD), lambda i, *_: (0, 0)),    # W_i^T
                      pl.BlockSpec((H_PAD, H_PAD), lambda i, *_: (0, 0)),     # W_h^T
                      pl.BlockSpec((AF_PAD, H_PAD), lambda i, *_: (0, 0)),    # W_o^T (atoms)
                      pl.BlockSpec((H_PAD, H_PAD), lambda i, *_: (0, 0)),     # W_o^T (msg)
                      pl.BlockSpec((1, H_PAD), lambda i, *_: (0, 0))],        # b_o
            out_specs=pl.BlockSpec((na_pad, H_PAD), lambda i, *_: (0, 0)),
            scratch_shapes=[pltpu.VMEM((nb_pad, H_PAD), jnp.float32),   # input  (W_i(f_bonds))
                            pltpu.VMEM((nb_pad, H_PAD), jnp.float32),   # message (resident)
                            pltpu.VMEM((na_pad, H_PAD), jnp.float32),   # a_message per atom
                            pltpu.VMEM((nb_pad, H_PAD), jnp.float32)]), # gathered bond tile
        compiler_params=pltpu.CompilerParams(
            dimension_semantics=("arbitrary",)),   # grid=(1,): no pointless megacore split
    )(a2b_flat, b2a_p, b2revb_p, f_bonds_p, f_atoms_p,
      prepared["w_i_t"], prepared["w_h_t"], prepared["w_o_a_t"], prepared["w_o_m_t"],
      prepared["b_o"])

    atom_hiddens = atom_hiddens[:n_atoms, :HIDDEN]

    # glue: per-molecule narrow + pad + stack (a_scope is static host metadata, ragged)
    L = max(a_size for _, a_size in a_scope)
    mol_vecs = []
    for a_start, a_size in a_scope:
        h = atom_hiddens[a_start:a_start + a_size]
        h = jnp.pad(h, ((0, L - a_size), (0, 0)))
        mol_vecs.append(h)
    return jnp.stack(mol_vecs, axis=0)   # [n_mols, L, hidden]


# ---- pure-numpy reference mirroring the PyTorch forward (real gathers, f32) -----------------
def reference_forward(f_atoms, f_bonds, a2b, b2a, b2revb, a_scope, params):
    f_atoms = np.asarray(f_atoms); f_bonds = np.asarray(f_bonds)
    a2b = np.asarray(a2b); b2a = np.asarray(b2a); b2revb = np.asarray(b2revb)
    W_i = np.asarray(params["W_i"]); W_h = np.asarray(params["W_h"])
    W_o = np.asarray(params["W_o"]); b_o = np.asarray(params["b_o"])

    inp = f_bonds @ W_i.T
    message = np.maximum(inp, 0.0)
    for _ in range(DEPTH - 1):
        nei_a_message = message[a2b]                 # [n_atoms, max_nb, hidden]
        a_message = nei_a_message.sum(axis=1)
        rev_message = message[b2revb]
        message = a_message[b2a] - rev_message
        message = message @ W_h.T
        message = np.maximum(inp + message, 0.0)
    nei_a_message = message[a2b]
    a_message = nei_a_message.sum(axis=1)
    a_input = np.concatenate([f_atoms, a_message], axis=1)
    atom_hiddens = np.maximum(a_input @ W_o.T + b_o, 0.0)

    L = max(a_size for _, a_size in a_scope)
    mol_vecs = []
    for a_start, a_size in a_scope:
        h = atom_hiddens[a_start:a_start + a_size]
        h = np.pad(h, ((0, L - a_size), (0, 0)))
        mol_vecs.append(h)
    return np.stack(mol_vecs, axis=0)


if __name__ == "__main__":
    key = jax.random.PRNGKey(0)
    k1, k2, k3, k4, k5, k6, k7, k8, k9 = jax.random.split(key, 9)

    # Synthetic BatchMolGraph components (index 0 is the zero-padding atom/bond, like chemprop).
    f_atoms = jax.random.normal(k1, (N_ATOMS, ATOM_FDIM), jnp.float32)
    f_bonds = jax.random.normal(k2, (N_BONDS, BOND_FDIM), jnp.float32)
    f_atoms = f_atoms.at[0].set(0.0)
    f_bonds = f_bonds.at[0].set(0.0)
    a2b = jax.random.randint(k3, (N_ATOMS, MAX_NB), 0, N_BONDS, dtype=jnp.int32)
    b2a = jax.random.randint(k4, (N_BONDS,), 0, N_ATOMS, dtype=jnp.int32)
    b2revb = jax.random.randint(k5, (N_BONDS,), 0, N_BONDS, dtype=jnp.int32)
    a_scope = [(1, 6), (7, 8)]          # (a_start, a_size) per molecule -> L = 8

    # Deterministic parameter init (shapes from __init__; bias=False for W_i/W_h).
    params = {
        "W_i": 0.1 * jax.random.normal(k6, (HIDDEN, BOND_FDIM), jnp.float32),
        "W_h": 0.1 * jax.random.normal(k7, (HIDDEN, HIDDEN), jnp.float32),
        "W_o": 0.1 * jax.random.normal(k8, (HIDDEN, ATOM_FDIM + HIDDEN), jnp.float32),
        "b_o": 0.1 * jax.random.normal(k9, (HIDDEN,), jnp.float32),
    }

    prepared = prepare_params(params)   # one-time weight preprocessing (not per-forward)

    out = mpn_encoder_forward(f_atoms, f_bonds, a2b, b2a, b2revb, a_scope, prepared)
    out = jax.block_until_ready(out)

    ref = reference_forward(f_atoms, f_bonds, a2b, b2a, b2revb, a_scope, params)
    assert out.shape == ref.shape == (2, 8, HIDDEN), (out.shape, ref.shape)
    # bf16 MXU operands (f32 accumulation) vs. f32 numpy reference -> modest tolerance.
    np.testing.assert_allclose(np.asarray(out), ref, rtol=3e-2, atol=3e-2)

    print("KERNEL_OK")
</pallas_src>

<mosaic_0001>
module attributes {stable_mosaic.version = 11 : i64} {
  func.func @kernel(%arg0: i32, %arg1: memref<64xi32, #tpu.memory_space<smem>>, %arg2: memref<32xi32, #tpu.memory_space<smem>>, %arg3: memref<32xi32, #tpu.memory_space<smem>>, %arg4: memref<32x128xbf16, #tpu.memory_space<vmem>>, %arg5: memref<16x128xbf16, #tpu.memory_space<vmem>>, %arg6: memref<128x128xbf16, #tpu.memory_space<vmem>>, %arg7: memref<128x128xbf16, #tpu.memory_space<vmem>>, %arg8: memref<128x128xbf16, #tpu.memory_space<vmem>>, %arg9: memref<128x128xbf16, #tpu.memory_space<vmem>>, %arg10: memref<1x128xf32, #tpu.memory_space<vmem>>, %arg11: memref<16x128xf32, #tpu.memory_space<vmem>>, %arg12: memref<32x128xf32, #tpu.memory_space<vmem>>, %arg13: memref<32x128xf32, #tpu.memory_space<vmem>>, %arg14: memref<16x128xf32, #tpu.memory_space<vmem>>, %arg15: memref<32x128xf32, #tpu.memory_space<vmem>>) attributes {dimension_semantics = [#tpu.dimension_semantics<arbitrary>], iteration_bounds = array<i64: 1>, scalar_prefetch = 3 : i64, scratch_operands = 4 : i64, tpu.core_type = #tpu.core_type<tc>, window_params = [{pipeline_mode = #tpu.pipeline_mode<synchronous>, transform_indices = @transform_0, window_bounds = array<i64: 32, 128>}, {pipeline_mode = #tpu.pipeline_mode<synchronous>, transform_indices = @transform_1, window_bounds = array<i64: 16, 128>}, {pipeline_mode = #tpu.pipeline_mode<synchronous>, transform_indices = @transform_2, window_bounds = array<i64: 128, 128>}, {pipeline_mode = #tpu.pipeline_mode<synchronous>, transform_indices = @transform_3, window_bounds = array<i64: 128, 128>}, {pipeline_mode = #tpu.pipeline_mode<synchronous>, transform_indices = @transform_4, window_bounds = array<i64: 128, 128>}, {pipeline_mode = #tpu.pipeline_mode<synchronous>, transform_indices = @transform_5, window_bounds = array<i64: 128, 128>}, {pipeline_mode = #tpu.pipeline_mode<synchronous>, transform_indices = @transform_6, window_bounds = array<i64: 1, 128>}, {pipeline_mode = #tpu.pipeline_mode<synchronous>, transform_indices = @transform_7, window_bounds = array<i64: 16, 128>}]} {
    %c0 = arith.constant 0 : index
    %c0_0 = arith.constant 0 : index
    %0 = vector.load %arg4[%c0, %c0_0] : memref<32x128xbf16, #tpu.memory_space<vmem>>, vector<32x128xbf16>
    %c0_1 = arith.constant 0 : index
    %c0_2 = arith.constant 0 : index
    %1 = vector.load %arg6[%c0_1, %c0_2] : memref<128x128xbf16, #tpu.memory_space<vmem>>, vector<128x128xbf16>
    %cst = arith.constant dense<0.000000e+00> : vector<32x128xf32>
    %2 = tpu.matmul %0, %1, %cst {dimension_numbers = #tpu.dot_dimension_numbers<[1], [0], [0], [1], [0, 0, 1, 1], [], []>} : vector<32x128xbf16>, vector<128x128xbf16>, vector<32x128xf32> -> vector<32x128xf32>
    %c0_3 = arith.constant 0 : index
    %c0_4 = arith.constant 0 : index
    %3 = vector.load %arg12[%c0_3, %c0_4] : memref<32x128xf32, #tpu.memory_space<vmem>>, vector<32x128xf32>
    tpu.vector_store %arg12[%c0_3, %c0_4], %2 {strides = array<i32>} : memref<32x128xf32, #tpu.memory_space<vmem>>, vector<32x128xf32>,
    %cst_5 = arith.constant 0.000000e+00 : f32
    %4 = vector.broadcast %cst_5 : f32 to vector<32x128xf32>
    %5 = arith.maximumf %2, %4 : vector<32x128xf32>
    %c0_6 = arith.constant 0 : index
    %c0_7 = arith.constant 0 : index
    %6 = vector.load %arg13[%c0_6, %c0_7] : memref<32x128xf32, #tpu.memory_space<vmem>>, vector<32x128xf32>
    tpu.vector_store %arg13[%c0_6, %c0_7], %5 {strides = array<i32>} : memref<32x128xf32, #tpu.memory_space<vmem>>, vector<32x128xf32>,
    %c0_8 = arith.constant 0 : index
    %7 = memref.load %arg1[%c0_8] : memref<64xi32, #tpu.memory_space<smem>>
    %8 = arith.index_cast %7 : i32 to index
    %c0_9 = arith.constant 0 : index
    %9 = vector.load %arg13[%8, %c0_9] : memref<32x128xf32, #tpu.memory_space<vmem>>, vector<1x128xf32>
    %c1 = arith.constant 1 : index
    %10 = memref.load %arg1[%c1] : memref<64xi32, #tpu.memory_space<smem>>
    %11 = arith.index_cast %10 : i32 to index
    %c0_10 = arith.constant 0 : index
    %12 = vector.load %arg13[%11, %c0_10] : memref<32x128xf32, #tpu.memory_space<vmem>>, vector<1x128xf32>
    %13 = arith.addf %9, %12 : vector<1x128xf32>
    %c2 = arith.constant 2 : index
    %14 = memref.load %arg1[%c2] : memref<64xi32, #tpu.memory_space<smem>>
    %15 = arith.index_cast %14 : i32 to index
    %c0_11 = arith.constant 0 : index
    %16 = vector.load %arg13[%15, %c0_11] : memref<32x128xf32, #tpu.memory_space<vmem>>, vector<1x128xf32>
    %17 = arith.addf %13, %16 : vector<1x128xf32>
    %c3 = arith.constant 3 : index
    %18 = memref.load %arg1[%c3] : memref<64xi32, #tpu.memory_space<smem>>
    %19 = arith.index_cast %18 : i32 to index
    %c0_12 = arith.constant 0 : index
    %20 = vector.load %arg13[%19, %c0_12] : memref<32x128xf32, #tpu.memory_space<vmem>>, vector<1x128xf32>
    %21 = arith.addf %17, %20 : vector<1x128xf32>
    %c0_13 = arith.constant 0 : index
    %c0_14 = arith.constant 0 : index
    %22 = vector.load %arg14[%c0_13, %c0_14] : memref<16x128xf32, #tpu.memory_space<vmem>>, vector<1x128xf32>
    tpu.vector_store %arg14[%c0_13, %c0_14], %21 {strides = array<i32>} : memref<16x128xf32, #tpu.memory_space<vmem>>, vector<1x128xf32>,
    %c4 = arith.constant 4 : index
    %23 = memref.load %arg1[%c4] : memref<64xi32, #tpu.memory_space<smem>>
    %24 = arith.index_cast %23 : i32 to index
    %c0_15 = arith.constant 0 : index
    %25 = vector.load %arg13[%24, %c0_15] : memref<32x128xf32, #tpu.memory_space<vmem>>, vector<1x128xf32>
    %c5 = arith.constant 5 : index
    %26 = memref.load %arg1[%c5] : memref<64xi32, #tpu.memory_space<smem>>
    %27 = arith.index_cast %26 : i32 to index
    %c0_16 = arith.constant 0 : index
    %28 = vector.load %arg13[%27, %c0_16] : memref<32x128xf32, #tpu.memory_space<vmem>>, vector<1x128xf32>
    %29 = arith.addf %25, %28 : vector<1x128xf32>
    %c6 = arith.constant 6 : index
    %30 = memref.load %arg1[%c6] : memref<64xi32, #tpu.memory_space<smem>>
    %31 = arith.index_cast %30 : i32 to index
    %c0_17 = arith.constant 0 : index
    %32 = vector.load %arg13[%31, %c0_17] : memref<32x128xf32, #tpu.memory_space<vmem>>, vector<1x128xf32>
    %33 = arith.addf %29, %32 : vector<1x128xf32>
    %c7 = arith.constant 7 : index
    %34 = memref.load %arg1[%c7] : memref<64xi32, #tpu.memory_space<smem>>
    %35 = arith.index_cast %34 : i32 to index
    %c0_18 = arith.constant 0 : index
    %36 = vector.load %arg13[%35, %c0_18] : memref<32x128xf32, #tpu.memory_space<vmem>>, vector<1x128xf32>
    %37 = arith.addf %33, %36 : vector<1x128xf32>
    %c1_19 = arith.constant 1 : index
    %c0_20 = arith.constant 0 : index
    %38 = vector.load %arg14[%c1_19, %c0_20] : memref<16x128xf32, #tpu.memory_space<vmem>>, vector<1x128xf32>
    tpu.vector_store %arg14[%c1_19, %c0_20], %37 {strides = array<i32>} : memref<16x128xf32, #tpu.memory_space<vmem>>, vector<1x128xf32>,
    %c8 = arith.constant 8 : index
    %39 = memref.load %arg1[%c8] : memref<64xi32, #tpu.memory_space<smem>>
    %40 = arith.index_cast %39 : i32 to index
    %c0_21 = arith.constant 0 : index
    %41 = vector.load %arg13[%40, %c0_21] : memref<32x128xf32, #tpu.memory_space<vmem>>, vector<1x128xf32>
    %c9 = arith.constant 9 : index
    %42 = memref.load %arg1[%c9] : memref<64xi32, #tpu.memory_space<smem>>
    %43 = arith.index_cast %42 : i32 to index
    %c0_22 = arith.constant 0 : index
    %44 = vector.load %arg13[%43, %c0_22] : memref<32x128xf32, #tpu.memory_space<vmem>>, vector<1x128xf32>
    %45 = arith.addf %41, %44 : vector<1x128xf32>
    %c10 = arith.constant 10 : index
    %46 = memref.load %arg1[%c10] : memref<64xi32, #tpu.memory_space<smem>>
    %47 = arith.index_cast %46 : i32 to index
    %c0_23 = arith.constant 0 : index
    %48 = vector.load %arg13[%47, %c0_23] : memref<32x128xf32, #tpu.memory_space<vmem>>, vector<1x128xf32>
    %49 = arith.addf %45, %48 : vector<1x128xf32>
    %c11 = arith.constant 11 : index
    %50 = memref.load %arg1[%c11] : memref<64xi32, #tpu.memory_space<smem>>
    %51 = arith.index_cast %50 : i32 to index
    %c0_24 = arith.constant 0 : index
    %52 = vector.load %arg13[%51, %c0_24] : memref<32x128xf32, #tpu.memory_space<vmem>>, vector<1x128xf32>
    %53 = arith.addf %49, %52 : vector<1x128xf32>
    %c2_25 = arith.constant 2 : index
    %c0_26 = arith.constant 0 : index
    %54 = vector.load %arg14[%c2_25, %c0_26] : memref<16x128xf32, #tpu.memory_space<vmem>>, vector<1x128xf32>
    tpu.vector_store %arg14[%c2_25, %c0_26], %53 {strides = array<i32>} : memref<16x128xf32, #tpu.memory_space<vmem>>, vector<1x128xf32>,
    %c12 = arith.constant 12 : index
    %55 = memref.load %arg1[%c12] : memref<64xi32, #tpu.memory_space<smem>>
    %56 = arith.index_cast %55 : i32 to index
    %c0_27 = arith.constant 0 : index
    %57 = vector.load %arg13[%56, %c0_27] : memref<32x128xf32, #tpu.memory_space<vmem>>, vector<1x128xf32>
    %c13 = arith.constant 13 : index
    %58 = memref.load %arg1[%c13] : memref<64xi32, #tpu.memory_space<smem>>
    %59 = arith.index_cast %58 : i32 to index
    %c0_28 = arith.constant 0 : index
    %60 = vector.load %arg13[%59, %c0_28] : memref<32x128xf32, #tpu.memory_space<vmem>>, vector<1x128xf32>
    %61 = arith.addf %57, %60 : vector<1x128xf32>
    %c14 = arith.constant 14 : index
    %62 = memref.load %arg1[%c14] : memref<64xi32, #tpu.memory_space<smem>>
    %63 = arith.index_cast %62 : i32 to index
    %c0_29 = arith.constant 0 : index
    %64 = vector.load %arg13[%63, %c0_29] : memref<32x128xf32, #tpu.memory_space<vmem>>, vector<1x128xf32>
    %65 = arith.addf %61, %64 : vector<1x128xf32>
    %c15 = arith.constant 15 : index
    %66 = memref.load %arg1[%c15] : memref<64xi32, #tpu.memory_space<smem>>
    %67 = arith.index_cast %66 : i32 to index
    %c0_30 = arith.constant 0 : index
    %68 = vector.load %arg13[%67, %c0_30] : memref<32x128xf32, #tpu.memory_space<vmem>>, vector<1x128xf32>
    %69 = arith.addf %65, %68 : vector<1x128xf32>
    %c3_31 = arith.constant 3 : index
    %c0_32 = arith.constant 0 : index
    %70 = vector.load %arg14[%c3_31, %c0_32] : memref<16x128xf32, #tpu.memory_space<vmem>>, vector<1x128xf32>
    tpu.vector_store %arg14[%c3_31, %c0_32], %69 {strides = array<i32>} : memref<16x128xf32, #tpu.memory_space<vmem>>, vector<1x128xf32>,
    %c16 = arith.constant 16 : index
    %71 = memref.load %arg1[%c16] : memref<64xi32, #tpu.memory_space<smem>>
    %72 = arith.index_cast %71 : i32 to index
    %c0_33 = arith.constant 0 : index
    %73 = vector.load %arg13[%72, %c0_33] : memref<32x128xf32, #tpu.memory_space<vmem>>, vector<1x128xf32>
    %c17 = arith.constant 17 : index
    %74 = memref.load %arg1[%c17] : memref<64xi32, #tpu.memory_space<smem>>
    %75 = arith.index_cast %74 : i32 to index
    %c0_34 = arith.constant 0 : index
    %76 = vector.load %arg13[%75, %c0_34] : memref<32x128xf32, #tpu.memory_space<vmem>>, vector<1x128xf32>
    %77 = arith.addf %73, %76 : vector<1x128xf32>
    %c18 = arith.constant 18 : index
    %78 = memref.load %arg1[%c18] : memref<64xi32, #tpu.memory_space<smem>>
    %79 = arith.index_cast %78 : i32 to index
    %c0_35 = arith.constant 0 : index
    %80 = vector.load %arg13[%79, %c0_35] : memref<32x128xf32, #tpu.memory_space<vmem>>, vector<1x128xf32>
    %81 = arith.addf %77, %80 : vector<1x128xf32>
    %c19 = arith.constant 19 : index
    %82 = memref.load %arg1[%c19] : memref<64xi32, #tpu.memory_space<smem>>
    %83 = arith.index_cast %82 : i32 to index
    %c0_36 = arith.constant 0 : index
    %84 = vector.load %arg13[%83, %c0_36] : memref<32x128xf32, #tpu.memory_space<vmem>>, vector<1x128xf32>
    %85 = arith.addf %81, %84 : vector<1x128xf32>
    %c4_37 = arith.constant 4 : index
    %c0_38 = arith.constant 0 : index
    %86 = vector.load %arg14[%c4_37, %c0_38] : memref<16x128xf32, #tpu.memory_space<vmem>>, vector<1x128xf32>
    tpu.vector_store %arg14[%c4_37, %c0_38], %85 {strides = array<i32>} : memref<16x128xf32, #tpu.memory_space<vmem>>, vector<1x128xf32>,
    %c20 = arith.constant 20 : index
    %87 = memref.load %arg1[%c20] : memref<64xi32, #tpu.memory_space<smem>>
    %88 = arith.index_cast %87 : i32 to index
    %c0_39 = arith.constant 0 : index
    %89 = vector.load %arg13[%88, %c0_39] : memref<32x128xf32, #tpu.memory_space<vmem>>, vector<1x128xf32>
    %c21 = arith.constant 21 : index
    %90 = memref.load %arg1[%c21] : memref<64xi32, #tpu.memory_space<smem>>
    %91 = arith.index_cast %90 : i32 to index
    %c0_40 = arith.constant 0 : index
    %92 = vector.load %arg13[%91, %c0_40] : memref<32x128xf32, #tpu.memory_space<vmem>>, vector<1x128xf32>
    %93 = arith.addf %89, %92 : vector<1x128xf32>
    %c22 = arith.constant 22 : index
    %94 = memref.load %arg1[%c22] : memref<64xi32, #tpu.memory_space<smem>>
    %95 = arith.index_cast %94 : i32 to index
    %c0_41 = arith.constant 0 : index
    %96 = vector.load %arg13[%95, %c0_41] : memref<32x128xf32, #tpu.memory_space<vmem>>, vector<1x128xf32>
    %97 = arith.addf %93, %96 : vector<1x128xf32>
    %c23 = arith.constant 23 : index
    %98 = memref.load %arg1[%c23] : memref<64xi32, #tpu.memory_space<smem>>
    %99 = arith.index_cast %98 : i32 to index
    %c0_42 = arith.constant 0 : index
    %100 = vector.load %arg13[%99, %c0_42] : memref<32x128xf32, #tpu.memory_space<vmem>>, vector<1x128xf32>
    %101 = arith.addf %97, %100 : vector<1x128xf32>
    %c5_43 = arith.constant 5 : index
    %c0_44 = arith.constant 0 : index
    %102 = vector.load %arg14[%c5_43, %c0_44] : memref<16x128xf32, #tpu.memory_space<vmem>>, vector<1x128xf32>
    tpu.vector_store %arg14[%c5_43, %c0_44], %101 {strides = array<i32>} : memref<16x128xf32, #tpu.memory_space<vmem>>, vector<1x128xf32>,
    %c24 = arith.constant 24 : index
    %103 = memref.load %arg1[%c24] : memref<64xi32, #tpu.memory_space<smem>>
    %104 = arith.index_cast %103 : i32 to index
    %c0_45 = arith.constant 0 : index
    %105 = vector.load %arg13[%104, %c0_45] : memref<32x128xf32, #tpu.memory_space<vmem>>, vector<1x128xf32>
    %c25 = arith.constant 25 : index
    %106 = memref.load %arg1[%c25] : memref<64xi32, #tpu.memory_space<smem>>
    %107 = arith.index_cast %106 : i32 to index
    %c0_46 = arith.constant 0 : index
    %108 = vector.load %arg13[%107, %c0_46] : memref<32x128xf32, #tpu.memory_space<vmem>>, vector<1x128xf32>
    %109 = arith.addf %105, %108 : vector<1x128xf32>
    %c26 = arith.constant 26 : index
    %110 = memref.load %arg1[%c26] : memref<64xi32, #tpu.memory_space<smem>>
    %111 = arith.index_cast %110 : i32 to index
    %c0_47 = arith.constant 0 : index
    %112 = vector.load %arg13[%111, %c0_47] : memref<32x128xf32, #tpu.memory_space<vmem>>, vector<1x128xf32>
    %113 = arith.addf %109, %112 : vector<1x128xf32>
    %c27 = arith.constant 27 : index
    %114 = memref.load %arg1[%c27] : memref<64xi32, #tpu.memory_space<smem>>
    %115 = arith.index_cast %114 : i32 to index
    %c0_48 = arith.constant 0 : index
    %116 = vector.load %arg13[%115, %c0_48] : memref<32x128xf32, #tpu.memory_space<vmem>>, vector<1x128xf32>
    %117 = arith.addf %113, %116 : vector<1x128xf32>
    %c6_49 = arith.constant 6 : index
    %c0_50 = arith.constant 0 : index
    %118 = vector.load %arg14[%c6_49, %c0_50] : memref<16x128xf32, #tpu.memory_space<vmem>>, vector<1x128xf32>
    tpu.vector_store %arg14[%c6_49, %c0_50], %117 {strides = array<i32>} : memref<16x128xf32, #tpu.memory_space<vmem>>, vector<1x128xf32>,
    %c28 = arith.constant 28 : index
    %119 = memref.load %arg1[%c28] : memref<64xi32, #tpu.memory_space<smem>>
    %120 = arith.index_cast %119 : i32 to index
    %c0_51 = arith.constant 0 : index
    %121 = vector.load %arg13[%120, %c0_51] : memref<32x128xf32, #tpu.memory_space<vmem>>, vector<1x128xf32>
    %c29 = arith.constant 29 : index
    %122 = memref.load %arg1[%c29] : memref<64xi32, #tpu.memory_space<smem>>
    %123 = arith.index_cast %122 : i32 to index
    %c0_52 = arith.constant 0 : index
    %124 = vector.load %arg13[%123, %c0_52] : memref<32x128xf32, #tpu.memory_space<vmem>>, vector<1x128xf32>
    %125 = arith.addf %121, %124 : vector<1x128xf32>
    %c30 = arith.constant 30 : index
    %126 = memref.load %arg1[%c30] : memref<64xi32, #tpu.memory_space<smem>>
    %127 = arith.index_cast %126 : i32 to index
    %c0_53 = arith.constant 0 : index
    %128 = vector.load %arg13[%127, %c0_53] : memref<32x128xf32, #tpu.memory_space<vmem>>, vector<1x128xf32>
    %129 = arith.addf %125, %128 : vector<1x128xf32>
    %c31 = arith.constant 31 : index
    %130 = memref.load %arg1[%c31] : memref<64xi32, #tpu.memory_space<smem>>
    %131 = arith.index_cast %130 : i32 to index
    %c0_54 = arith.constant 0 : index
    %132 = vector.load %arg13[%131, %c0_54] : memref<32x128xf32, #tpu.memory_space<vmem>>, vector<1x128xf32>
    %133 = arith.addf %129, %132 : vector<1x128xf32>
    %c7_55 = arith.constant 7 : index
    %c0_56 = arith.constant 0 : index
    %134 = vector.load %arg14[%c7_55, %c0_56] : memref<16x128xf32, #tpu.memory_space<vmem>>, vector<1x128xf32>
    tpu.vector_store %arg14[%c7_55, %c0_56], %133 {strides = array<i32>} : memref<16x128xf32, #tpu.memory_space<vmem>>, vector<1x128xf32>,
    %c32 = arith.constant 32 : index
    %135 = memref.load %arg1[%c32] : memref<64xi32, #tpu.memory_space<smem>>
    %136 = arith.index_cast %135 : i32 to index
    %c0_57 = arith.constant 0 : index
    %137 = vector.load %arg13[%136, %c0_57] : memref<32x128xf32, #tpu.memory_space<vmem>>, vector<1x128xf32>
    %c33 = arith.constant 33 : index
    %138 = memref.load %arg1[%c33] : memref<64xi32, #tpu.memory_space<smem>>
    %139 = arith.index_cast %138 : i32 to index
    %c0_58 = arith.constant 0 : index
    %140 = vector.load %arg13[%139, %c0_58] : memref<32x128xf32, #tpu.memory_space<vmem>>, vector<1x128xf32>
    %141 = arith.addf %137, %140 : vector<1x128xf32>
    %c34 = arith.constant 34 : index
    %142 = memref.load %arg1[%c34] : memref<64xi32, #tpu.memory_space<smem>>
    %143 = arith.index_cast %142 : i32 to index
    %c0_59 = arith.constant 0 : index
    %144 = vector.load %arg13[%143, %c0_59] : memref<32x128xf32, #tpu.memory_space<vmem>>, vector<1x128xf32>
    %145 = arith.addf %141, %144 : vector<1x128xf32>
    %c35 = arith.constant 35 : index
    %146 = memref.load %arg1[%c35] : memref<64xi32, #tpu.memory_space<smem>>
    %147 = arith.index_cast %146 : i32 to index
    %c0_60 = arith.constant 0 : index
    %148 = vector.load %arg13[%147, %c0_60] : memref<32x128xf32, #tpu.memory_space<vmem>>, vector<1x128xf32>
    %149 = arith.addf %145, %148 : vector<1x128xf32>
    %c8_61 = arith.constant 8 : index
    %c0_62 = arith.constant 0 : index
    %150 = vector.load %arg14[%c8_61, %c0_62] : memref<16x128xf32, #tpu.memory_space<vmem>>, vector<1x128xf32>
    tpu.vector_store %arg14[%c8_61, %c0_62], %149 {strides = array<i32>} : memref<16x128xf32, #tpu.memory_space<vmem>>, vector<1x128xf32>,
    %c36 = arith.constant 36 : index
    %151 = memref.load %arg1[%c36] : memref<64xi32, #tpu.memory_space<smem>>
    %152 = arith.index_cast %151 : i32 to index
    %c0_63 = arith.constant 0 : index
    %153 = vector.load %arg13[%152, %c0_63] : memref<32x128xf32, #tpu.memory_space<vmem>>, vector<1x128xf32>
    %c37 = arith.constant 37 : index
    %154 = memref.load %arg1[%c37] : memref<64xi32, #tpu.memory_space<smem>>
    %155 = arith.index_cast %154 : i32 to index
    %c0_64 = arith.constant 0 : index
    %156 = vector.load %arg13[%155, %c0_64] : memref<32x128xf32, #tpu.memory_space<vmem>>, vector<1x128xf32>
    %157 = arith.addf %153, %156 : vector<1x128xf32>
    %c38 = arith.constant 38 : index
    %158 = memref.load %arg1[%c38] : memref<64xi32, #tpu.memory_space<smem>>
    %159 = arith.index_cast %158 : i32 to index
    %c0_65 = arith.constant 0 : index
    %160 = vector.load %arg13[%159, %c0_65] : memref<32x128xf32, #tpu.memory_space<vmem>>, vector<1x128xf32>
    %161 = arith.addf %157, %160 : vector<1x128xf32>
    %c39 = arith.constant 39 : index
    %162 = memref.load %arg1[%c39] : memref<64xi32, #tpu.memory_space<smem>>
    %163 = arith.index_cast %162 : i32 to index
    %c0_66 = arith.constant 0 : index
    %164 = vector.load %arg13[%163, %c0_66] : memref<32x128xf32, #tpu.memory_space<vmem>>, vector<1x128xf32>
    %165 = arith.addf %161, %164 : vector<1x128xf32>
    %c9_67 = arith.constant 9 : index
    %c0_68 = arith.constant 0 : index
    %166 = vector.load %arg14[%c9_67, %c0_68] : memref<16x128xf32, #tpu.memory_space<vmem>>, vector<1x128xf32>
    tpu.vector_store %arg14[%c9_67, %c0_68], %165 {strides = array<i32>} : memref<16x128xf32, #tpu.memory_space<vmem>>, vector<1x128xf32>,
    %c40 = arith.constant 40 : index
    %167 = memref.load %arg1[%c40] : memref<64xi32, #tpu.memory_space<smem>>
    %168 = arith.index_cast %167 : i32 to index
    %c0_69 = arith.constant 0 : index
    %169 = vector.load %arg13[%168, %c0_69] : memref<32x128xf32, #tpu.memory_space<vmem>>, vector<1x128xf32>
    %c41 = arith.constant 41 : index
    %170 = memref.load %arg1[%c41] : memref<64xi32, #tpu.memory_space<smem>>
    %171 = arith.index_cast %170 : i32 to index
    %c0_70 = arith.constant 0 : index
    %172 = vector.load %arg13[%171, %c0_70] : memref<32x128xf32, #tpu.memory_space<vmem>>, vector<1x128xf32>
    %173 = arith.addf %169, %172 : vector<1x128xf32>
    %c42 = arith.constant 42 : index
    %174 = memref.load %arg1[%c42] : memref<64xi32, #tpu.memory_space<smem>>
    %175 = arith.index_cast %174 : i32 to index
    %c0_71 = arith.constant 0 : index
    %176 = vector.load %arg13[%175, %c0_71] : memref<32x128xf32, #tpu.memory_space<vmem>>, vector<1x128xf32>
    %177 = arith.addf %173, %176 : vector<1x128xf32>
    %c43 = arith.constant 43 : index
    %178 = memref.load %arg1[%c43] : memref<64xi32, #tpu.memory_space<smem>>
    %179 = arith.index_cast %178 : i32 to index
    %c0_72 = arith.constant 0 : index
    %180 = vector.load %arg13[%179, %c0_72] : memref<32x128xf32, #tpu.memory_space<vmem>>, vector<1x128xf32>
    %181 = arith.addf %177, %180 : vector<1x128xf32>
    %c10_73 = arith.constant 10 : index
    %c0_74 = arith.constant 0 : index
    %182 = vector.load %arg14[%c10_73, %c0_74] : memref<16x128xf32, #tpu.memory_space<vmem>>, vector<1x128xf32>
    tpu.vector_store %arg14[%c10_73, %c0_74], %181 {strides = array<i32>} : memref<16x128xf32, #tpu.memory_space<vmem>>, vector<1x128xf32>,
    %c44 = arith.constant 44 : index
    %183 = memref.load %arg1[%c44] : memref<64xi32, #tpu.memory_space<smem>>
    %184 = arith.index_cast %183 : i32 to index
    %c0_75 = arith.constant 0 : index
    %185 = vector.load %arg13[%184, %c0_75] : memref<32x128xf32, #tpu.memory_space<vmem>>, vector<1x128xf32>
    %c45 = arith.constant 45 : index
    %186 = memref.load %arg1[%c45] : memref<64xi32, #tpu.memory_space<smem>>
    %187 = arith.index_cast %186 : i32 to index
    %c0_76 = arith.constant 0 : index
    %188 = vector.load %arg13[%187, %c0_76] : memref<32x128xf32, #tpu.memory_space<vmem>>, vector<1x128xf32>
    %189 = arith.addf %185, %188 : vector<1x128xf32>
    %c46 = arith.constant 46 : index
    %190 = memref.load %arg1[%c46] : memref<64xi32, #tpu.memory_space<smem>>
    %191 = arith.index_cast %190 : i32 to index
    %c0_77 = arith.constant 0 : index
    %192 = vector.load %arg13[%191, %c0_77] : memref<32x128xf32, #tpu.memory_space<vmem>>, vector<1x128xf32>
    %193 = arith.addf %189, %192 : vector<1x128xf32>
    %c47 = arith.constant 47 : index
    %194 = memref.load %arg1[%c47] : memref<64xi32, #tpu.memory_space<smem>>
    %195 = arith.index_cast %194 : i32 to index
    %c0_78 = arith.constant 0 : index
    %196 = vector.load %arg13[%195, %c0_78] : memref<32x128xf32, #tpu.memory_space<vmem>>, vector<1x128xf32>
    %197 = arith.addf %193, %196 : vector<1x128xf32>
    %c11_79 = arith.constant 11 : index
    %c0_80 = arith.constant 0 : index
    %198 = vector.load %arg14[%c11_79, %c0_80] : memref<16x128xf32, #tpu.memory_space<vmem>>, vector<1x128xf32>
    tpu.vector_store %arg14[%c11_79, %c0_80], %197 {strides = array<i32>} : memref<16x128xf32, #tpu.memory_space<vmem>>, vector<1x128xf32>,
    %c48 = arith.constant 48 : index
    %199 = memref.load %arg1[%c48] : memref<64xi32, #tpu.memory_space<smem>>
    %200 = arith.index_cast %199 : i32 to index
    %c0_81 = arith.constant 0 : index
    %201 = vector.load %arg13[%200, %c0_81] : memref<32x128xf32, #tpu.memory_space<vmem>>, vector<1x128xf32>
    %c49 = arith.constant 49 : index
    %202 = memref.load %arg1[%c49] : memref<64xi32, #tpu.memory_space<smem>>
    %203 = arith.index_cast %202 : i32 to index
    %c0_82 = arith.constant 0 : index
    %204 = vector.load %arg13[%203, %c0_82] : memref<32x128xf32, #tpu.memory_space<vmem>>, vector<1x128xf32>
    %205 = arith.addf %201, %204 : vector<1x128xf32>
    %c50 = arith.constant 50 : index
    %206 = memref.load %arg1[%c50] : memref<64xi32, #tpu.memory_space<smem>>
    %207 = arith.index_cast %206 : i32 to index
    %c0_83 = arith.constant 0 : index
    %208 = vector.load %arg13[%207, %c0_83] : memref<32x128xf32, #tpu.memory_space<vmem>>, vector<1x128xf32>
    %209 = arith.addf %205, %208 : vector<1x128xf32>
    %c51 = arith.constant 51 : index
    %210 = memref.load %arg1[%c51] : memref<64xi32, #tpu.memory_space<smem>>
    %211 = arith.index_cast %210 : i32 to index
    %c0_84 = arith.constant 0 : index
    %212 = vector.load %arg13[%211, %c0_84] : memref<32x128xf32, #tpu.memory_space<vmem>>, vector<1x128xf32>
    %213 = arith.addf %209, %212 : vector<1x128xf32>
    %c12_85 = arith.constant 12 : index
    %c0_86 = arith.constant 0 : index
    %214 = vector.load %arg14[%c12_85, %c0_86] : memref<16x128xf32, #tpu.memory_space<vmem>>, vector<1x128xf32>
    tpu.vector_store %arg14[%c12_85, %c0_86], %213 {strides = array<i32>} : memref<16x128xf32, #tpu.memory_space<vmem>>, vector<1x128xf32>,
    %c52 = arith.constant 52 : index
    %215 = memref.load %arg1[%c52] : memref<64xi32, #tpu.memory_space<smem>>
    %216 = arith.index_cast %215 : i32 to index
    %c0_87 = arith.constant 0 : index
    %217 = vector.load %arg13[%216, %c0_87] : memref<32x128xf32, #tpu.memory_space<vmem>>, vector<1x128xf32>
    %c53 = arith.constant 53 : index
    %218 = memref.load %arg1[%c53] : memref<64xi32, #tpu.memory_space<smem>>
    %219 = arith.index_cast %218 : i32 to index
    %c0_88 = arith.constant 0 : index
    %220 = vector.load %arg13[%219, %c0_88] : memref<32x128xf32, #tpu.memory_space<vmem>>, vector<1x128xf32>
    %221 = arith.addf %217, %220 : vector<1x128xf32>
    %c54 = arith.constant 54 : index
    %222 = memref.load %arg1[%c54] : memref<64xi32, #tpu.memory_space<smem>>
    %223 = arith.index_cast %222 : i32 to index
    %c0_89 = arith.constant 0 : index
    %224 = vector.load %arg13[%223, %c0_89] : memref<32x128xf32, #tpu.memory_space<vmem>>, vector<1x128xf32>
    %225 = arith.addf %221, %224 : vector<1x128xf32>
    %c55 = arith.constant 55 : index
    %226 = memref.load %arg1[%c55] : memref<64xi32, #tpu.memory_space<smem>>
    %227 = arith.index_cast %226 : i32 to index
    %c0_90 = arith.constant 0 : index
    %228 = vector.load %arg13[%227, %c0_90] : memref<32x128xf32, #tpu.memory_space<vmem>>, vector<1x128xf32>
    %229 = arith.addf %225, %228 : vector<1x128xf32>
    %c13_91 = arith.constant 13 : index
    %c0_92 = arith.constant 0 : index
    %230 = vector.load %arg14[%c13_91, %c0_92] : memref<16x128xf32, #tpu.memory_space<vmem>>, vector<1x128xf32>
    tpu.vector_store %arg14[%c13_91, %c0_92], %229 {strides = array<i32>} : memref<16x128xf32, #tpu.memory_space<vmem>>, vector<1x128xf32>,
    %c56 = arith.constant 56 : index
    %231 = memref.load %arg1[%c56] : memref<64xi32, #tpu.memory_space<smem>>
    %232 = arith.index_cast %231 : i32 to index
    %c0_93 = arith.constant 0 : index
    %233 = vector.load %arg13[%232, %c0_93] : memref<32x128xf32, #tpu.memory_space<vmem>>, vector<1x128xf32>
    %c57 = arith.constant 57 : index
    %234 = memref.load %arg1[%c57] : memref<64xi32, #tpu.memory_space<smem>>
    %235 = arith.index_cast %234 : i32 to index
    %c0_94 = arith.constant 0 : index
    %236 = vector.load %arg13[%235, %c0_94] : memref<32x128xf32, #tpu.memory_space<vmem>>, vector<1x128xf32>
    %237 = arith.addf %233, %236 : vector<1x128xf32>
    %c58 = arith.constant 58 : index
    %238 = memref.load %arg1[%c58] : memref<64xi32, #tpu.memory_space<smem>>
    %239 = arith.index_cast %238 : i32 to index
    %c0_95 = arith.constant 0 : index
    %240 = vector.load %arg13[%239, %c0_95] : memref<32x128xf32, #tpu.memory_space<vmem>>, vector<1x128xf32>
    %241 = arith.addf %237, %240 : vector<1x128xf32>
    %c59 = arith.constant 59 : index
    %242 = memref.load %arg1[%c59] : memref<64xi32, #tpu.memory_space<smem>>
    %243 = arith.index_cast %242 : i32 to index
    %c0_96 = arith.constant 0 : index
    %244 = vector.load %arg13[%243, %c0_96] : memref<32x128xf32, #tpu.memory_space<vmem>>, vector<1x128xf32>
    %245 = arith.addf %241, %244 : vector<1x128xf32>
    %c14_97 = arith.constant 14 : index
    %c0_98 = arith.constant 0 : index
    %246 = vector.load %arg14[%c14_97, %c0_98] : memref<16x128xf32, #tpu.memory_space<vmem>>, vector<1x128xf32>
    tpu.vector_store %arg14[%c14_97, %c0_98], %245 {strides = array<i32>} : memref<16x128xf32, #tpu.memory_space<vmem>>, vector<1x128xf32>,
    %c60 = arith.constant 60 : index
    %247 = memref.load %arg1[%c60] : memref<64xi32, #tpu.memory_space<smem>>
    %248 = arith.index_cast %247 : i32 to index
    %c0_99 = arith.constant 0 : index
    %249 = vector.load %arg13[%248, %c0_99] : memref<32x128xf32, #tpu.memory_space<vmem>>, vector<1x128xf32>
    %c61 = arith.constant 61 : index
    %250 = memref.load %arg1[%c61] : memref<64xi32, #tpu.memory_space<smem>>
    %251 = arith.index_cast %250 : i32 to index
    %c0_100 = arith.constant 0 : index
    %252 = vector.load %arg13[%251, %c0_100] : memref<32x128xf32, #tpu.memory_space<vmem>>, vector<1x128xf32>
    %253 = arith.addf %249, %252 : vector<1x128xf32>
    %c62 = arith.constant 62 : index
    %254 = memref.load %arg1[%c62] : memref<64xi32, #tpu.memory_space<smem>>
    %255 = arith.index_cast %254 : i32 to index
    %c0_101 = arith.constant 0 : index
    %256 = vector.load %arg13[%255, %c0_101] : memref<32x128xf32, #tpu.memory_space<vmem>>, vector<1x128xf32>
    %257 = arith.addf %253, %256 : vector<1x128xf32>
    %c63 = arith.constant 63 : index
    %258 = memref.load %arg1[%c63] : memref<64xi32, #tpu.memory_space<smem>>
    %259 = arith.index_cast %258 : i32 to index
    %c0_102 = arith.constant 0 : index
    %260 = vector.load %arg13[%259, %c0_102] : memref<32x128xf32, #tpu.memory_space<vmem>>, vector<1x128xf32>
    %261 = arith.addf %257, %260 : vector<1x128xf32>
    %c15_103 = arith.constant 15 : index
    %c0_104 = arith.constant 0 : index
    %262 = vector.load %arg14[%c15_103, %c0_104] : memref<16x128xf32, #tpu.memory_space<vmem>>, vector<1x128xf32>
    tpu.vector_store %arg14[%c15_103, %c0_104], %261 {strides = array<i32>} : memref<16x128xf32, #tpu.memory_space<vmem>>, vector<1x128xf32>,
    %c0_105 = arith.constant 0 : index
    %263 = memref.load %arg2[%c0_105] : memref<32xi32, #tpu.memory_space<smem>>
    %264 = arith.index_cast %263 : i32 to index
    %c0_106 = arith.constant 0 : index
    %265 = vector.load %arg14[%264, %c0_106] : memref<16x128xf32, #tpu.memory_space<vmem>>, vector<1x128xf32>
    %c0_107 = arith.constant 0 : index
    %266 = memref.load %arg3[%c0_107] : memref<32xi32, #tpu.memory_space<smem>>
    %267 = arith.index_cast %266 : i32 to index
    %c0_108 = arith.constant 0 : index
    %268 = vector.load %arg13[%267, %c0_108] : memref<32x128xf32, #tpu.memory_space<vmem>>, vector<1x128xf32>
    %269 = arith.subf %265, %268 : vector<1x128xf32>
    %c0_109 = arith.constant 0 : index
    %c0_110 = arith.constant 0 : index
    %270 = vector.load %arg15[%c0_109, %c0_110] : memref<32x128xf32, #tpu.memory_space<vmem>>, vector<1x128xf32>
    tpu.vector_store %arg15[%c0_109, %c0_110], %269 {strides = array<i32>} : memref<32x128xf32, #tpu.memory_space<vmem>>, vector<1x128xf32>,
    %c1_111 = arith.constant 1 : index
    %271 = memref.load %arg2[%c1_111] : memref<32xi32, #tpu.memory_space<smem>>
    %272 = arith.index_cast %271 : i32 to index
    %c0_112 = arith.constant 0 : index
    %273 = vector.load %arg14[%272, %c0_112] : memref<16x128xf32, #tpu.memory_space<vmem>>, vector<1x128xf32>
    %c1_113 = arith.constant 1 : index
    %274 = memref.load %arg3[%c1_113] : memref<32xi32, #tpu.memory_space<smem>>
    %275 = arith.index_cast %274 : i32 to index
    %c0_114 = arith.constant 0 : index
    %276 = vector.load %arg13[%275, %c0_114] : memref<32x128xf32, #tpu.memory_space<vmem>>, vector<1x128xf32>
    %277 = arith.subf %273, %276 : vector<1x128xf32>
    %c1_115 = arith.constant 1 : index
    %c0_116 = arith.constant 0 : index
    %278 = vector.load %arg15[%c1_115, %c0_116] : memref<32x128xf32, #tpu.memory_space<vmem>>, vector<1x128xf32>
    tpu.vector_store %arg15[%c1_115, %c0_116], %277 {strides = array<i32>} : memref<32x128xf32, #tpu.memory_space<vmem>>, vector<1x128xf32>,
    %c2_117 = arith.constant 2 : index
    %279 = memref.load %arg2[%c2_117] : memref<32xi32, #tpu.memory_space<smem>>
    %280 = arith.index_cast %279 : i32 to index
    %c0_118 = arith.constant 0 : index
    %281 = vector.load %arg14[%280, %c0_118] : memref<16x128xf32, #tpu.memory_space<vmem>>, vector<1x128xf32>
    %c2_119 = arith.constant 2 : index
    %282 = memref.load %arg3[%c2_119] : memref<32xi32, #tpu.memory_space<smem>>
    %283 = arith.index_cast %282 : i32 to index
    %c0_120 = arith.constant 0 : index
    %284 = vector.load %arg13[%283, %c0_120] : memref<32x128xf32, #tpu.memory_space<vmem>>, vector<1x128xf32>
    %285 = arith.subf %281, %284 : vector<1x128xf32>
    %c2_121 = arith.constant 2 : index
    %c0_122 = arith.constant 0 : index
    %286 = vector.load %arg15[%c2_121, %c0_122] : memref<32x128xf32, #tpu.memory_space<vmem>>, vector<1x128xf32>
    tpu.vector_store %arg15[%c2_121, %c0_122], %285 {strides = array<i32>} : memref<32x128xf32, #tpu.memory_space<vmem>>, vector<1x128xf32>,
    %c3_123 = arith.constant 3 : index
    %287 = memref.load %arg2[%c3_123] : memref<32xi32, #tpu.memory_space<smem>>
    %288 = arith.index_cast %287 : i32 to index
    %c0_124 = arith.constant 0 : index
    %289 = vector.load %arg14[%288, %c0_124] : memref<16x128xf32, #tpu.memory_space<vmem>>, vector<1x128xf32>
    %c3_125 = arith.constant 3 : index
    %290 = memref.load %arg3[%c3_125] : memref<32xi32, #tpu.memory_space<smem>>
    %291 = arith.index_cast %290 : i32 to index
    %c0_126 = arith.constant 0 : index
    %292 = vector.load %arg13[%291, %c0_126] : memref<32x128xf32, #tpu.memory_space<vmem>>, vector<1x128xf32>
    %293 = arith.subf %289, %292 : vector<1x128xf32>
    %c3_127 = arith.constant 3 : index
    %c0_128 = arith.constant 0 : index
    %294 = vector.load %arg15[%c3_127, %c0_128] : memref<32x128xf32, #tpu.memory_space<vmem>>, vector<1x128xf32>
    tpu.vector_store %arg15[%c3_127, %c0_128], %293 {strides = array<i32>} : memref<32x128xf32, #tpu.memory_space<vmem>>, vector<1x128xf32>,
    %c4_129 = arith.constant 4 : index
    %295 = memref.load %arg2[%c4_129] : memref<32xi32, #tpu.memory_space<smem>>
    %296 = arith.index_cast %295 : i32 to index
    %c0_130 = arith.constant 0 : index
    %297 = vector.load %arg14[%296, %c0_130] : memref<16x128xf32, #tpu.memory_space<vmem>>, vector<1x128xf32>
    %c4_131 = arith.constant 4 : index
    %298 = memref.load %arg3[%c4_131] : memref<32xi32, #tpu.memory_space<smem>>
    %299 = arith.index_cast %298 : i32 to index
    %c0_132 = arith.constant 0 : index
    %300 = vector.load %arg13[%299, %c0_132] : memref<32x128xf32, #tpu.memory_space<vmem>>, vector<1x128xf32>
    %301 = arith.subf %297, %300 : vector<1x128xf32>
    %c4_133 = arith.constant 4 : index
    %c0_134 = arith.constant 0 : index
    %302 = vector.load %arg15[%c4_133, %c0_134] : memref<32x128xf32, #tpu.memory_space<vmem>>, vector<1x128xf32>
    tpu.vector_store %arg15[%c4_133, %c0_134], %301 {strides = array<i32>} : memref<32x128xf32, #tpu.memory_space<vmem>>, vector<1x128xf32>,
    %c5_135 = arith.constant 5 : index
    %303 = memref.load %arg2[%c5_135] : memref<32xi32, #tpu.memory_space<smem>>
    %304 = arith.index_cast %303 : i32 to index
    %c0_136 = arith.constant 0 : index
    %305 = vector.load %arg14[%304, %c0_136] : memref<16x128xf32, #tpu.memory_space<vmem>>, vector<1x128xf32>
    %c5_137 = arith.constant 5 : index
    %306 = memref.load %arg3[%c5_137] : memref<32xi32, #tpu.memory_space<smem>>
    %307 = arith.index_cast %306 : i32 to index
    %c0_138 = arith.constant 0 : index
    %308 = vector.load %arg13[%307, %c0_138] : memref<32x128xf32, #tpu.memory_space<vmem>>, vector<1x128xf32>
    %309 = arith.subf %305, %308 : vector<1x128xf32>
    %c5_139 = arith.constant 5 : index
    %c0_140 = arith.constant 0 : index
    %310 = vector.load %arg15[%c5_139, %c0_140] : memref<32x128xf32, #tpu.memory_space<vmem>>, vector<1x128xf32>
    tpu.vector_store %arg15[%c5_139, %c0_140], %309 {strides = array<i32>} : memref<32x128xf32, #tpu.memory_space<vmem>>, vector<1x128xf32>,
    %c6_141 = arith.constant 6 : index
    %311 = memref.load %arg2[%c6_141] : memref<32xi32, #tpu.memory_space<smem>>
    %312 = arith.index_cast %311 : i32 to index
    %c0_142 = arith.constant 0 : index
    %313 = vector.load %arg14[%312, %c0_142] : memref<16x128xf32, #tpu.memory_space<vmem>>, vector<1x128xf32>
    %c6_143 = arith.constant 6 : index
    %314 = memref.load %arg3[%c6_143] : memref<32xi32, #tpu.memory_space<smem>>
    %315 = arith.index_cast %314 : i32 to index
    %c0_144 = arith.constant 0 : index
    %316 = vector.load %arg13[%315, %c0_144] : memref<32x128xf32, #tpu.memory_space<vmem>>, vector<1x128xf32>
    %317 = arith.subf %313, %316 : vector<1x128xf32>
    %c6_145 = arith.constant 6 : index
    %c0_146 = arith.constant 0 : index
    %318 = vector.load %arg15[%c6_145, %c0_146] : memref<32x128xf32, #tpu.memory_space<vmem>>, vector<1x128xf32>
    tpu.vector_store %arg15[%c6_145, %c0_146], %317 {strides = array<i32>} : memref<32x128xf32, #tpu.memory_space<vmem>>, vector<1x128xf32>,
    %c7_147 = arith.constant 7 : index
    %319 = memref.load %arg2[%c7_147] : memref<32xi32, #tpu.memory_space<smem>>
    %320 = arith.index_cast %319 : i32 to index
    %c0_148 = arith.constant 0 : index
    %321 = vector.load %arg14[%320, %c0_148] : memref<16x128xf32, #tpu.memory_space<vmem>>, vector<1x128xf32>
    %c7_149 = arith.constant 7 : index
    %322 = memref.load %arg3[%c7_149] : memref<32xi32, #tpu.memory_space<smem>>
    %323 = arith.index_cast %322 : i32 to index
    %c0_150 = arith.constant 0 : index
    %324 = vector.load %arg13[%323, %c0_150] : memref<32x128xf32, #tpu.memory_space<vmem>>, vector<1x128xf32>
    %325 = arith.subf %321, %324 : vector<1x128xf32>
    %c7_151 = arith.constant 7 : index
    %c0_152 = arith.constant 0 : index
    %326 = vector.load %arg15[%c7_151, %c0_152] : memref<32x128xf32, #tpu.memory_space<vmem>>, vector<1x128xf32>
    tpu.vector_store %arg15[%c7_151, %c0_152], %325 {strides = array<i32>} : memref<32x128xf32, #tpu.memory_space<vmem>>, vector<1x128xf32>,
    %c8_153 = arith.constant 8 : index
    %327 = memref.load %arg2[%c8_153] : memref<32xi32, #tpu.memory_space<smem>>
    %328 = arith.index_cast %327 : i32 to index
    %c0_154 = arith.constant 0 : index
    %329 = vector.load %arg14[%328, %c0_154] : memref<16x128xf32, #tpu.memory_space<vmem>>, vector<1x128xf32>
    %c8_155 = arith.constant 8 : index
    %330 = memref.load %arg3[%c8_155] : memref<32xi32, #tpu.memory_space<smem>>
    %331 = arith.index_cast %330 : i32 to index
    %c0_156 = arith.constant 0 : index
    %332 = vector.load %arg13[%331, %c0_156] : memref<32x128xf32, #tpu.memory_space<vmem>>, vector<1x128xf32>
    %333 = arith.subf %329, %332 : vector<1x128xf32>
    %c8_157 = arith.constant 8 : index
    %c0_158 = arith.constant 0 : index
    %334 = vector.load %arg15[%c8_157, %c0_158] : memref<32x128xf32, #tpu.memory_space<vmem>>, vector<1x128xf32>
    tpu.vector_store %arg15[%c8_157, %c0_158], %333 {strides = array<i32>} : memref<32x128xf32, #tpu.memory_space<vmem>>, vector<1x128xf32>,
    %c9_159 = arith.constant 9 : index
    %335 = memref.load %arg2[%c9_159] : memref<32xi32, #tpu.memory_space<smem>>
    %336 = arith.index_cast %335 : i32 to index
    %c0_160 = arith.constant 0 : index
    %337 = vector.load %arg14[%336, %c0_160] : memref<16x128xf32, #tpu.memory_space<vmem>>, vector<1x128xf32>
    %c9_161 = arith.constant 9 : index
    %338 = memref.load %arg3[%c9_161] : memref<32xi32, #tpu.memory_space<smem>>
    %339 = arith.index_cast %338 : i32 to index
    %c0_162 = arith.constant 0 : index
    %340 = vector.load %arg13[%339, %c0_162] : memref<32x128xf32, #tpu.memory_space<vmem>>, vector<1x128xf32>
    %341 = arith.subf %337, %340 : vector<1x128xf32>
    %c9_163 = arith.constant 9 : index
    %c0_164 = arith.constant 0 : index
    %342 = vector.load %arg15[%c9_163, %c0_164] : memref<32x128xf32, #tpu.memory_space<vmem>>, vector<1x128xf32>
    tpu.vector_store %arg15[%c9_163, %c0_164], %341 {strides = array<i32>} : memref<32x128xf32, #tpu.memory_space<vmem>>, vector<1x128xf32>,
    %c10_165 = arith.constant 10 : index
    %343 = memref.load %arg2[%c10_165] : memref<32xi32, #tpu.memory_space<smem>>
    %344 = arith.index_cast %343 : i32 to index
    %c0_166 = arith.constant 0 : index
    %345 = vector.load %arg14[%344, %c0_166] : memref<16x128xf32, #tpu.memory_space<vmem>>, vector<1x128xf32>
    %c10_167 = arith.constant 10 : index
    %346 = memref.load %arg3[%c10_167] : memref<32xi32, #tpu.memory_space<smem>>
    %347 = arith.index_cast %346 : i32 to index
    %c0_168 = arith.constant 0 : index
    %348 = vector.load %arg13[%347, %c0_168] : memref<32x128xf32, #tpu.memory_space<vmem>>, vector<1x128xf32>
    %349 = arith.subf %345, %348 : vector<1x128xf32>
    %c10_169 = arith.constant 10 : index
    %c0_170 = arith.constant 0 : index
    %350 = vector.load %arg15[%c10_169, %c0_170] : memref<32x128xf32, #tpu.memory_space<vmem>>, vector<1x128xf32>
    tpu.vector_store %arg15[%c10_169, %c0_170], %349 {strides = array<i32>} : memref<32x128xf32, #tpu.memory_space<vmem>>, vector<1x128xf32>,
    %c11_171 = arith.constant 11 : index
    %351 = memref.load %arg2[%c11_171] : memref<32xi32, #tpu.memory_space<smem>>
    %352 = arith.index_cast %351 : i32 to index
    %c0_172 = arith.constant 0 : index
    %353 = vector.load %arg14[%352, %c0_172] : memref<16x128xf32, #tpu.memory_space<vmem>>, vector<1x128xf32>
    %c11_173 = arith.constant 11 : index
    %354 = memref.load %arg3[%c11_173] : memref<32xi32, #tpu.memory_space<smem>>
    %355 = arith.index_cast %354 : i32 to index
    %c0_174 = arith.constant 0 : index
    %356 = vector.load %arg13[%355, %c0_174] : memref<32x128xf32, #tpu.memory_space<vmem>>, vector<1x128xf32>
    %357 = arith.subf %353, %356 : vector<1x128xf32>
    %c11_175 = arith.constant 11 : index
    %c0_176 = arith.constant 0 : index
    %358 = vector.load %arg15[%c11_175, %c0_176] : memref<32x128xf32, #tpu.memory_space<vmem>>, vector<1x128xf32>
    tpu.vector_store %arg15[%c11_175, %c0_176], %357 {strides = array<i32>} : memref<32x128xf32, #tpu.memory_space<vmem>>, vector<1x128xf32>,
    %c12_177 = arith.constant 12 : index
    %359 = memref.load %arg2[%c12_177] : memref<32xi32, #tpu.memory_space<smem>>
    %360 = arith.index_cast %359 : i32 to index
    %c0_178 = arith.constant 0 : index
    %361 = vector.load %arg14[%360, %c0_178] : memref<16x128xf32, #tpu.memory_space<vmem>>, vector<1x128xf32>
    %c12_179 = arith.constant 12 : index
    %362 = memref.load %arg3[%c12_179] : memref<32xi32, #tpu.memory_space<smem>>
    %363 = arith.index_cast %362 : i32 to index
    %c0_180 = arith.constant 0 : index
    %364 = vector.load %arg13[%363, %c0_180] : memref<32x128xf32, #tpu.memory_space<vmem>>, vector<1x128xf32>
    %365 = arith.subf %361, %364 : vector<1x128xf32>
    %c12_181 = arith.constant 12 : index
    %c0_182 = arith.constant 0 : index
    %366 = vector.load %arg15[%c12_181, %c0_182] : memref<32x128xf32, #tpu.memory_space<vmem>>, vector<1x128xf32>
    tpu.vector_store %arg15[%c12_181, %c0_182], %365 {strides = array<i32>} : memref<32x128xf32, #tpu.memory_space<vmem>>, vector<1x128xf32>,
    %c13_183 = arith.constant 13 : index
    %367 = memref.load %arg2[%c13_183] : memref<32xi32, #tpu.memory_space<smem>>
    %368 = arith.index_cast %367 : i32 to index
    %c0_184 = arith.constant 0 : index
    %369 = vector.load %arg14[%368, %c0_184] : memref<16x128xf32, #tpu.memory_space<vmem>>, vector<1x128xf32>
    %c13_185 = arith.constant 13 : index
    %370 = memref.load %arg3[%c13_185] : memref<32xi32, #tpu.memory_space<smem>>
    %371 = arith.index_cast %370 : i32 to index
    %c0_186 = arith.constant 0 : index
    %372 = vector.load %arg13[%371, %c0_186] : memref<32x128xf32, #tpu.memory_space<vmem>>, vector<1x128xf32>
    %373 = arith.subf %369, %372 : vector<1x128xf32>
    %c13_187 = arith.constant 13 : index
    %c0_188 = arith.constant 0 : index
    %374 = vector.load %arg15[%c13_187, %c0_188] : memref<32x128xf32, #tpu.memory_space<vmem>>, vector<1x128xf32>
    tpu.vector_store %arg15[%c13_187, %c0_188], %373 {strides = array<i32>} : memref<32x128xf32, #tpu.memory_space<vmem>>, vector<1x128xf32>,
    %c14_189 = arith.constant 14 : index
    %375 = memref.load %arg2[%c14_189] : memref<32xi32, #tpu.memory_space<smem>>
    %376 = arith.index_cast %375 : i32 to index
    %c0_190 = arith.constant 0 : index
    %377 = vector.load %arg14[%376, %c0_190] : memref<16x128xf32, #tpu.memory_space<vmem>>, vector<1x128xf32>
    %c14_191 = arith.constant 14 : index
    %378 = memref.load %arg3[%c14_191] : memref<32xi32, #tpu.memory_space<smem>>
    %379 = arith.index_cast %378 : i32 to index
    %c0_192 = arith.constant 0 : index
    %380 = vector.load %arg13[%379, %c0_192] : memref<32x128xf32, #tpu.memory_space<vmem>>, vector<1x128xf32>
    %381 = arith.subf %377, %380 : vector<1x128xf32>
    %c14_193 = arith.constant 14 : index
    %c0_194 = arith.constant 0 : index
    %382 = vector.load %arg15[%c14_193, %c0_194] : memref<32x128xf32, #tpu.memory_space<vmem>>, vector<1x128xf32>
    tpu.vector_store %arg15[%c14_193, %c0_194], %381 {strides = array<i32>} : memref<32x128xf32, #tpu.memory_space<vmem>>, vector<1x128xf32>,
    %c15_195 = arith.constant 15 : index
    %383 = memref.load %arg2[%c15_195] : memref<32xi32, #tpu.memory_space<smem>>
    %384 = arith.index_cast %383 : i32 to index
    %c0_196 = arith.constant 0 : index
    %385 = vector.load %arg14[%384, %c0_196] : memref<16x128xf32, #tpu.memory_space<vmem>>, vector<1x128xf32>
    %c15_197 = arith.constant 15 : index
    %386 = memref.load %arg3[%c15_197] : memref<32xi32, #tpu.memory_space<smem>>
    %387 = arith.index_cast %386 : i32 to index
    %c0_198 = arith.constant 0 : index
    %388 = vector.load %arg13[%387, %c0_198] : memref<32x128xf32, #tpu.memory_space<vmem>>, vector<1x128xf32>
    %389 = arith.subf %385, %388 : vector<1x128xf32>
    %c15_199 = arith.constant 15 : index
    %c0_200 = arith.constant 0 : index
    %390 = vector.load %arg15[%c15_199, %c0_200] : memref<32x128xf32, #tpu.memory_space<vmem>>, vector<1x128xf32>
    tpu.vector_store %arg15[%c15_199, %c0_200], %389 {strides = array<i32>} : memref<32x128xf32, #tpu.memory_space<vmem>>, vector<1x128xf32>,
    %c16_201 = arith.constant 16 : index
    %391 = memref.load %arg2[%c16_201] : memref<32xi32, #tpu.memory_space<smem>>
    %392 = arith.index_cast %391 : i32 to index
    %c0_202 = arith.constant 0 : index
    %393 = vector.load %arg14[%392, %c0_202] : memref<16x128xf32, #tpu.memory_space<vmem>>, vector<1x128xf32>
    %c16_203 = arith.constant 16 : index
    %394 = memref.load %arg3[%c16_203] : memref<32xi32, #tpu.memory_space<smem>>
    %395 = arith.index_cast %394 : i32 to index
    %c0_204 = arith.constant 0 : index
    %396 = vector.load %arg13[%395, %c0_204] : memref<32x128xf32, #tpu.memory_space<vmem>>, vector<1x128xf32>
    %397 = arith.subf %393, %396 : vector<1x128xf32>
    %c16_205 = arith.constant 16 : index
    %c0_206 = arith.constant 0 : index
    %398 = vector.load %arg15[%c16_205, %c0_206] : memref<32x128xf32, #tpu.memory_space<vmem>>, vector<1x128xf32>
    tpu.vector_store %arg15[%c16_205, %c0_206], %397 {strides = array<i32>} : memref<32x128xf32, #tpu.memory_space<vmem>>, vector<1x128xf32>,
    %c17_207 = arith.constant 17 : index
    %399 = memref.load %arg2[%c17_207] : memref<32xi32, #tpu.memory_space<smem>>
    %400 = arith.index_cast %399 : i32 to index
    %c0_208 = arith.constant 0 : index
    %401 = vector.load %arg14[%400, %c0_208] : memref<16x128xf32, #tpu.memory_space<vmem>>, vector<1x128xf32>
    %c17_209 = arith.constant 17 : index
    %402 = memref.load %arg3[%c17_209] : memref<32xi32, #tpu.memory_space<smem>>
    %403 = arith.index_cast %402 : i32 to index
    %c0_210 = arith.constant 0 : index
    %404 = vector.load %arg13[%403, %c0_210] : memref<32x128xf32, #tpu.memory_space<vmem>>, vector<1x128xf32>
    %405 = arith.subf %401, %404 : vector<1x128xf32>
    %c17_211 = arith.constant 17 : index
    %c0_212 = arith.constant 0 : index
    %406 = vector.load %arg15[%c17_211, %c0_212] : memref<32x128xf32, #tpu.memory_space<vmem>>, vector<1x128xf32>
    tpu.vector_store %arg15[%c17_211, %c0_212], %405 {strides = array<i32>} : memref<32x128xf32, #tpu.memory_space<vmem>>, vector<1x128xf32>,
    %c18_213 = arith.constant 18 : index
    %407 = memref.load %arg2[%c18_213] : memref<32xi32, #tpu.memory_space<smem>>
    %408 = arith.index_cast %407 : i32 to index
    %c0_214 = arith.constant 0 : index
    %409 = vector.load %arg14[%408, %c0_214] : memref<16x128xf32, #tpu.memory_space<vmem>>, vector<1x128xf32>
    %c18_215 = arith.constant 18 : index
    %410 = memref.load %arg3[%c18_215] : memref<32xi32, #tpu.memory_space<smem>>
    %411 = arith.index_cast %410 : i32 to index
    %c0_216 = arith.constant 0 : index
    %412 = vector.load %arg13[%411, %c0_216] : memref<32x128xf32, #tpu.memory_space<vmem>>, vector<1x128xf32>
    %413 = arith.subf %409, %412 : vector<1x128xf32>
    %c18_217 = arith.constant 18 : index
    %c0_218 = arith.constant 0 : index
    %414 = vector.load %arg15[%c18_217, %c0_218] : memref<32x128xf32, #tpu.memory_space<vmem>>, vector<1x128xf32>
    tpu.vector_store %arg15[%c18_217, %c0_218], %413 {strides = array<i32>} : memref<32x128xf32, #tpu.memory_space<vmem>>, vector<1x128xf32>,
    %c19_219 = arith.constant 19 : index
    %415 = memref.load %arg2[%c19_219] : memref<32xi32, #tpu.memory_space<smem>>
    %416 = arith.index_cast %415 : i32 to index
    %c0_220 = arith.constant 0 : index
    %417 = vector.load %arg14[%416, %c0_220] : memref<16x128xf32, #tpu.memory_space<vmem>>, vector<1x128xf32>
    %c19_221 = arith.constant 19 : index
    %418 = memref.load %arg3[%c19_221] : memref<32xi32, #tpu.memory_space<smem>>
    %419 = arith.index_cast %418 : i32 to index
    %c0_222 = arith.constant 0 : index
    %420 = vector.load %arg13[%419, %c0_222] : memref<32x128xf32, #tpu.memory_space<vmem>>, vector<1x128xf32>
    %421 = arith.subf %417, %420 : vector<1x128xf32>
    %c19_223 = arith.constant 19 : index
    %c0_224 = arith.constant 0 : index
    %422 = vector.load %arg15[%c19_223, %c0_224] : memref<32x128xf32, #tpu.memory_space<vmem>>, vector<1x128xf32>
    tpu.vector_store %arg15[%c19_223, %c0_224], %421 {strides = array<i32>} : memref<32x128xf32, #tpu.memory_space<vmem>>, vector<1x128xf32>,
    %c20_225 = arith.constant 20 : index
    %423 = memref.load %arg2[%c20_225] : memref<32xi32, #tpu.memory_space<smem>>
    %424 = arith.index_cast %423 : i32 to index
    %c0_226 = arith.constant 0 : index
    %425 = vector.load %arg14[%424, %c0_226] : memref<16x128xf32, #tpu.memory_space<vmem>>, vector<1x128xf32>
    %c20_227 = arith.constant 20 : index
    %426 = memref.load %arg3[%c20_227] : memref<32xi32, #tpu.memory_space<smem>>
    %427 = arith.index_cast %426 : i32 to index
    %c0_228 = arith.constant 0 : index
    %428 = vector.load %arg13[%427, %c0_228] : memref<32x128xf32, #tpu.memory_space<vmem>>, vector<1x128xf32>
    %429 = arith.subf %425, %428 : vector<1x128xf32>
    %c20_229 = arith.constant 20 : index
    %c0_230 = arith.constant 0 : index
    %430 = vector.load %arg15[%c20_229, %c0_230] : memref<32x128xf32, #tpu.memory_space<vmem>>, vector<1x128xf32>
    tpu.vector_store %arg15[%c20_229, %c0_230], %429 {strides = array<i32>} : memref<32x128xf32, #tpu.memory_space<vmem>>, vector<1x128xf32>,
    %c21_231 = arith.constant 21 : index
    %431 = memref.load %arg2[%c21_231] : memref<32xi32, #tpu.memory_space<smem>>
    %432 = arith.index_cast %431 : i32 to index
    %c0_232 = arith.constant 0 : index
    %433 = vector.load %arg14[%432, %c0_232] : memref<16x128xf32, #tpu.memory_space<vmem>>, vector<1x128xf32>
    %c21_233 = arith.constant 21 : index
    %434 = memref.load %arg3[%c21_233] : memref<32xi32, #tpu.memory_space<smem>>
    %435 = arith.index_cast %434 : i32 to index
    %c0_234 = arith.constant 0 : index
    %436 = vector.load %arg13[%435, %c0_234] : memref<32x128xf32, #tpu.memory_space<vmem>>, vector<1x128xf32>
    %437 = arith.subf %433, %436 : vector<1x128xf32>
    %c21_235 = arith.constant 21 : index
    %c0_236 = arith.constant 0 : index
    %438 = vector.load %arg15[%c21_235, %c0_236] : memref<32x128xf32, #tpu.memory_space<vmem>>, vector<1x128xf32>
    tpu.vector_store %arg15[%c21_235, %c0_236], %437 {strides = array<i32>} : memref<32x128xf32, #tpu.memory_space<vmem>>, vector<1x128xf32>,
    %c22_237 = arith.constant 22 : index
    %439 = memref.load %arg2[%c22_237] : memref<32xi32, #tpu.memory_space<smem>>
    %440 = arith.index_cast %439 : i32 to index
    %c0_238 = arith.constant 0 : index
    %441 = vector.load %arg14[%440, %c0_238] : memref<16x128xf32, #tpu.memory_space<vmem>>, vector<1x128xf32>
    %c22_239 = arith.constant 22 : index
    %442 = memref.load %arg3[%c22_239] : memref<32xi32, #tpu.memory_space<smem>>
    %443 = arith.index_cast %442 : i32 to index
    %c0_240 = arith.constant 0 : index
    %444 = vector.load %arg13[%443, %c0_240] : memref<32x128xf32, #tpu.memory_space<vmem>>, vector<1x128xf32>
    %445 = arith.subf %441, %444 : vector<1x128xf32>
    %c22_241 = arith.constant 22 : index
    %c0_242 = arith.constant 0 : index
    %446 = vector.load %arg15[%c22_241, %c0_242] : memref<32x128xf32, #tpu.memory_space<vmem>>, vector<1x128xf32>
    tpu.vector_store %arg15[%c22_241, %c0_242], %445 {strides = array<i32>} : memref<32x128xf32, #tpu.memory_space<vmem>>, vector<1x128xf32>,
    %c23_243 = arith.constant 23 : index
    %447 = memref.load %arg2[%c23_243] : memref<32xi32, #tpu.memory_space<smem>>
    %448 = arith.index_cast %447 : i32 to index
    %c0_244 = arith.constant 0 : index
    %449 = vector.load %arg14[%448, %c0_244] : memref<16x128xf32, #tpu.memory_space<vmem>>, vector<1x128xf32>
    %c23_245 = arith.constant 23 : index
    %450 = memref.load %arg3[%c23_245] : memref<32xi32, #tpu.memory_space<smem>>
    %451 = arith.index_cast %450 : i32 to index
    %c0_246 = arith.constant 0 : index
    %452 = vector.load %arg13[%451, %c0_246] : memref<32x128xf32, #tpu.memory_space<vmem>>, vector<1x128xf32>
    %453 = arith.subf %449, %452 : vector<1x128xf32>
    %c23_247 = arith.constant 23 : index
    %c0_248 = arith.constant 0 : index
    %454 = vector.load %arg15[%c23_247, %c0_248] : memref<32x128xf32, #tpu.memory_space<vmem>>, vector<1x128xf32>
    tpu.vector_store %arg15[%c23_247, %c0_248], %453 {strides = array<i32>} : memref<32x128xf32, #tpu.memory_space<vmem>>, vector<1x128xf32>,
    %c24_249 = arith.constant 24 : index
    %455 = memref.load %arg2[%c24_249] : memref<32xi32, #tpu.memory_space<smem>>
    %456 = arith.index_cast %455 : i32 to index
    %c0_250 = arith.constant 0 : index
    %457 = vector.load %arg14[%456, %c0_250] : memref<16x128xf32, #tpu.memory_space<vmem>>, vector<1x128xf32>
    %c24_251 = arith.constant 24 : index
    %458 = memref.load %arg3[%c24_251] : memref<32xi32, #tpu.memory_space<smem>>
    %459 = arith.index_cast %458 : i32 to index
    %c0_252 = arith.constant 0 : index
    %460 = vector.load %arg13[%459, %c0_252] : memref<32x128xf32, #tpu.memory_space<vmem>>, vector<1x128xf32>
    %461 = arith.subf %457, %460 : vector<1x128xf32>
    %c24_253 = arith.constant 24 : index
    %c0_254 = arith.constant 0 : index
    %462 = vector.load %arg15[%c24_253, %c0_254] : memref<32x128xf32, #tpu.memory_space<vmem>>, vector<1x128xf32>
    tpu.vector_store %arg15[%c24_253, %c0_254], %461 {strides = array<i32>} : memref<32x128xf32, #tpu.memory_space<vmem>>, vector<1x128xf32>,
    %c25_255 = arith.constant 25 : index
    %463 = memref.load %arg2[%c25_255] : memref<32xi32, #tpu.memory_space<smem>>
    %464 = arith.index_cast %463 : i32 to index
    %c0_256 = arith.constant 0 : index
    %465 = vector.load %arg14[%464, %c0_256] : memref<16x128xf32, #tpu.memory_space<vmem>>, vector<1x128xf32>
    %c25_257 = arith.constant 25 : index
    %466 = memref.load %arg3[%c25_257] : memref<32xi32, #tpu.memory_space<smem>>
    %467 = arith.index_cast %466 : i32 to index
    %c0_258 = arith.constant 0 : index
    %468 = vector.load %arg13[%467, %c0_258] : memref<32x128xf32, #tpu.memory_space<vmem>>, vector<1x128xf32>
    %469 = arith.subf %465, %468 : vector<1x128xf32>
    %c25_259 = arith.constant 25 : index
    %c0_260 = arith.constant 0 : index
    %470 = vector.load %arg15[%c25_259, %c0_260] : memref<32x128xf32, #tpu.memory_space<vmem>>, vector<1x128xf32>
    tpu.vector_store %arg15[%c25_259, %c0_260], %469 {strides = array<i32>} : memref<32x128xf32, #tpu.memory_space<vmem>>, vector<1x128xf32>,
    %c26_261 = arith.constant 26 : index
    %471 = memref.load %arg2[%c26_261] : memref<32xi32, #tpu.memory_space<smem>>
    %472 = arith.index_cast %471 : i32 to index
    %c0_262 = arith.constant 0 : index
    %473 = vector.load %arg14[%472, %c0_262] : memref<16x128xf32, #tpu.memory_space<vmem>>, vector<1x128xf32>
    %c26_263 = arith.constant 26 : index
    %474 = memref.load %arg3[%c26_263] : memref<32xi32, #tpu.memory_space<smem>>
    %475 = arith.index_cast %474 : i32 to index
    %c0_264 = arith.constant 0 : index
    %476 = vector.load %arg13[%475, %c0_264] : memref<32x128xf32, #tpu.memory_space<vmem>>, vector<1x128xf32>
    %477 = arith.subf %473, %476 : vector<1x128xf32>
    %c26_265 = arith.constant 26 : index
    %c0_266 = arith.constant 0 : index
    %478 = vector.load %arg15[%c26_265, %c0_266] : memref<32x128xf32, #tpu.memory_space<vmem>>, vector<1x128xf32>
    tpu.vector_store %arg15[%c26_265, %c0_266], %477 {strides = array<i32>} : memref<32x128xf32, #tpu.memory_space<vmem>>, vector<1x128xf32>,
    %c27_267 = arith.constant 27 : index
    %479 = memref.load %arg2[%c27_267] : memref<32xi32, #tpu.memory_space<smem>>
    %480 = arith.index_cast %479 : i32 to index
    %c0_268 = arith.constant 0 : index
    %481 = vector.load %arg14[%480, %c0_268] : memref<16x128xf32, #tpu.memory_space<vmem>>, vector<1x128xf32>
    %c27_269 = arith.constant 27 : index
    %482 = memref.load %arg3[%c27_269] : memref<32xi32, #tpu.memory_space<smem>>
    %483 = arith.index_cast %482 : i32 to index
    %c0_270 = arith.constant 0 : index
    %484 = vector.load %arg13[%483, %c0_270] : memref<32x128xf32, #tpu.memory_space<vmem>>, vector<1x128xf32>
    %485 = arith.subf %481, %484 : vector<1x128xf32>
    %c27_271 = arith.constant 27 : index
    %c0_272 = arith.constant 0 : index
    %486 = vector.load %arg15[%c27_271, %c0_272] : memref<32x128xf32, #tpu.memory_space<vmem>>, vector<1x128xf32>
    tpu.vector_store %arg15[%c27_271, %c0_272], %485 {strides = array<i32>} : memref<32x128xf32, #tpu.memory_space<vmem>>, vector<1x128xf32>,
    %c28_273 = arith.constant 28 : index
    %487 = memref.load %arg2[%c28_273] : memref<32xi32, #tpu.memory_space<smem>>
    %488 = arith.index_cast %487 : i32 to index
    %c0_274 = arith.constant 0 : index
    %489 = vector.load %arg14[%488, %c0_274] : memref<16x128xf32, #tpu.memory_space<vmem>>, vector<1x128xf32>
    %c28_275 = arith.constant 28 : index
    %490 = memref.load %arg3[%c28_275] : memref<32xi32, #tpu.memory_space<smem>>
    %491 = arith.index_cast %490 : i32 to index
    %c0_276 = arith.constant 0 : index
    %492 = vector.load %arg13[%491, %c0_276] : memref<32x128xf32, #tpu.memory_space<vmem>>, vector<1x128xf32>
    %493 = arith.subf %489, %492 : vector<1x128xf32>
    %c28_277 = arith.constant 28 : index
    %c0_278 = arith.constant 0 : index
    %494 = vector.load %arg15[%c28_277, %c0_278] : memref<32x128xf32, #tpu.memory_space<vmem>>, vector<1x128xf32>
    tpu.vector_store %arg15[%c28_277, %c0_278], %493 {strides = array<i32>} : memref<32x128xf32, #tpu.memory_space<vmem>>, vector<1x128xf32>,
    %c29_279 = arith.constant 29 : index
    %495 = memref.load %arg2[%c29_279] : memref<32xi32, #tpu.memory_space<smem>>
    %496 = arith.index_cast %495 : i32 to index
    %c0_280 = arith.constant 0 : index
    %497 = vector.load %arg14[%496, %c0_280] : memref<16x128xf32, #tpu.memory_space<vmem>>, vector<1x128xf32>
    %c29_281 = arith.constant 29 : index
    %498 = memref.load %arg3[%c29_281] : memref<32xi32, #tpu.memory_space<smem>>
    %499 = arith.index_cast %498 : i32 to index
    %c0_282 = arith.constant 0 : index
    %500 = vector.load %arg13[%499, %c0_282] : memref<32x128xf32, #tpu.memory_space<vmem>>, vector<1x128xf32>
    %501 = arith.subf %497, %500 : vector<1x128xf32>
    %c29_283 = arith.constant 29 : index
    %c0_284 = arith.constant 0 : index
    %502 = vector.load %arg15[%c29_283, %c0_284] : memref<32x128xf32, #tpu.memory_space<vmem>>, vector<1x128xf32>
    tpu.vector_store %arg15[%c29_283, %c0_284], %501 {strides = array<i32>} : memref<32x128xf32, #tpu.memory_space<vmem>>, vector<1x128xf32>,
    %c30_285 = arith.constant 30 : index
    %503 = memref.load %arg2[%c30_285] : memref<32xi32, #tpu.memory_space<smem>>
    %504 = arith.index_cast %503 : i32 to index
    %c0_286 = arith.constant 0 : index
    %505 = vector.load %arg14[%504, %c0_286] : memref<16x128xf32, #tpu.memory_space<vmem>>, vector<1x128xf32>
    %c30_287 = arith.constant 30 : index
    %506 = memref.load %arg3[%c30_287] : memref<32xi32, #tpu.memory_space<smem>>
    %507 = arith.index_cast %506 : i32 to index
    %c0_288 = arith.constant 0 : index
    %508 = vector.load %arg13[%507, %c0_288] : memref<32x128xf32, #tpu.memory_space<vmem>>, vector<1x128xf32>
    %509 = arith.subf %505, %508 : vector<1x128xf32>
    %c30_289 = arith.constant 30 : index
    %c0_290 = arith.constant 0 : index
    %510 = vector.load %arg15[%c30_289, %c0_290] : memref<32x128xf32, #tpu.memory_space<vmem>>, vector<1x128xf32>
    tpu.vector_store %arg15[%c30_289, %c0_290], %509 {strides = array<i32>} : memref<32x128xf32, #tpu.memory_space<vmem>>, vector<1x128xf32>,
    %c31_291 = arith.constant 31 : index
    %511 = memref.load %arg2[%c31_291] : memref<32xi32, #tpu.memory_space<smem>>
    %512 = arith.index_cast %511 : i32 to index
    %c0_292 = arith.constant 0 : index
    %513 = vector.load %arg14[%512, %c0_292] : memref<16x128xf32, #tpu.memory_space<vmem>>, vector<1x128xf32>
    %c31_293 = arith.constant 31 : index
    %514 = memref.load %arg3[%c31_293] : memref<32xi32, #tpu.memory_space<smem>>
    %515 = arith.index_cast %514 : i32 to index
    %c0_294 = arith.constant 0 : index
    %516 = vector.load %arg13[%515, %c0_294] : memref<32x128xf32, #tpu.memory_space<vmem>>, vector<1x128xf32>
    %517 = arith.subf %513, %516 : vector<1x128xf32>
    %c31_295 = arith.constant 31 : index
    %c0_296 = arith.constant 0 : index
    %518 = vector.load %arg15[%c31_295, %c0_296] : memref<32x128xf32, #tpu.memory_space<vmem>>, vector<1x128xf32>
    tpu.vector_store %arg15[%c31_295, %c0_296], %517 {strides = array<i32>} : memref<32x128xf32, #tpu.memory_space<vmem>>, vector<1x128xf32>,
    %c0_297 = arith.constant 0 : index
    %c0_298 = arith.constant 0 : index
    %519 = vector.load %arg15[%c0_297, %c0_298] : memref<32x128xf32, #tpu.memory_space<vmem>>, vector<32x128xf32>
    %520 = arith.truncf %519 : vector<32x128xf32> to vector<32x128xbf16>
    %c0_299 = arith.constant 0 : index
    %c0_300 = arith.constant 0 : index
    %521 = vector.load %arg7[%c0_299, %c0_300] : memref<128x128xbf16, #tpu.memory_space<vmem>>, vector<128x128xbf16>
    %cst_301 = arith.constant dense<0.000000e+00> : vector<32x128xf32>
    %522 = tpu.matmul %520, %521, %cst_301 {dimension_numbers = #tpu.dot_dimension_numbers<[1], [0], [0], [1], [0, 0, 1, 1], [], []>} : vector<32x128xbf16>, vector<128x128xbf16>, vector<32x128xf32> -> vector<32x128xf32>
    %c0_302 = arith.constant 0 : index
    %c0_303 = arith.constant 0 : index
    %523 = vector.load %arg12[%c0_302, %c0_303] : memref<32x128xf32, #tpu.memory_space<vmem>>, vector<32x128xf32>
    %524 = arith.addf %523, %522 : vector<32x128xf32>
    %cst_304 = arith.constant 0.000000e+00 : f32
    %525 = vector.broadcast %cst_304 : f32 to vector<32x128xf32>
    %526 = arith.maximumf %524, %525 : vector<32x128xf32>
    %c0_305 = arith.constant 0 : index
    %c0_306 = arith.constant 0 : index
    %527 = vector.load %arg13[%c0_305, %c0_306] : memref<32x128xf32, #tpu.memory_space<vmem>>, vector<32x128xf32>
    tpu.vector_store %arg13[%c0_305, %c0_306], %526 {strides = array<i32>} : memref<32x128xf32, #tpu.memory_space<vmem>>, vector<32x128xf32>,
    %c0_307 = arith.constant 0 : index
    %528 = memref.load %arg1[%c0_307] : memref<64xi32, #tpu.memory_space<smem>>
    %529 = arith.index_cast %528 : i32 to index
    %c0_308 = arith.constant 0 : index
    %530 = vector.load %arg13[%529, %c0_308] : memref<32x128xf32, #tpu.memory_space<vmem>>, vector<1x128xf32>
    %c1_309 = arith.constant 1 : index
    %531 = memref.load %arg1[%c1_309] : memref<64xi32, #tpu.memory_space<smem>>
    %532 = arith.index_cast %531 : i32 to index
    %c0_310 = arith.constant 0 : index
    %533 = vector.load %arg13[%532, %c0_310] : memref<32x128xf32, #tpu.memory_space<vmem>>, vector<1x128xf32>
    %534 = arith.addf %530, %533 : vector<1x128xf32>
    %c2_311 = arith.constant 2 : index
    %535 = memref.load %arg1[%c2_311] : memref<64xi32, #tpu.memory_space<smem>>
    %536 = arith.index_cast %535 : i32 to index
    %c0_312 = arith.constant 0 : index
    %537 = vector.load %arg13[%536, %c0_312] : memref<32x128xf32, #tpu.memory_space<vmem>>, vector<1x128xf32>
    %538 = arith.addf %534, %537 : vector<1x128xf32>
    %c3_313 = arith.constant 3 : index
    %539 = memref.load %arg1[%c3_313] : memref<64xi32, #tpu.memory_space<smem>>
    %540 = arith.index_cast %539 : i32 to index
    %c0_314 = arith.constant 0 : index
    %541 = vector.load %arg13[%540, %c0_314] : memref<32x128xf32, #tpu.memory_space<vmem>>, vector<1x128xf32>
    %542 = arith.addf %538, %541 : vector<1x128xf32>
    %c0_315 = arith.constant 0 : index
    %c0_316 = arith.constant 0 : index
    %543 = vector.load %arg14[%c0_315, %c0_316] : memref<16x128xf32, #tpu.memory_space<vmem>>, vector<1x128xf32>
    tpu.vector_store %arg14[%c0_315, %c0_316], %542 {strides = array<i32>} : memref<16x128xf32, #tpu.memory_space<vmem>>, vector<1x128xf32>,
    %c4_317 = arith.constant 4 : index
    %544 = memref.load %arg1[%c4_317] : memref<64xi32, #tpu.memory_space<smem>>
    %545 = arith.index_cast %544 : i32 to index
    %c0_318 = arith.constant 0 : index
    %546 = vector.load %arg13[%545, %c0_318] : memref<32x128xf32, #tpu.memory_space<vmem>>, vector<1x128xf32>
    %c5_319 = arith.constant 5 : index
    %547 = memref.load %arg1[%c5_319] : memref<64xi32, #tpu.memory_space<smem>>
    %548 = arith.index_cast %547 : i32 to index
    %c0_320 = arith.constant 0 : index
    %549 = vector.load %arg13[%548, %c0_320] : memref<32x128xf32, #tpu.memory_space<vmem>>, vector<1x128xf32>
    %550 = arith.addf %546, %549 : vector<1x128xf32>
    %c6_321 = arith.constant 6 : index
    %551 = memref.load %arg1[%c6_321] : memref<64xi32, #tpu.memory_space<smem>>
    %552 = arith.index_cast %551 : i32 to index
    %c0_322 = arith.constant 0 : index
    %553 = vector.load %arg13[%552, %c0_322] : memref<32x128xf32, #tpu.memory_space<vmem>>, vector<1x128xf32>
    %554 = arith.addf %550, %553 : vector<1x128xf32>
    %c7_323 = arith.constant 7 : index
    %555 = memref.load %arg1[%c7_323] : memref<64xi32, #tpu.memory_space<smem>>
    %556 = arith.index_cast %555 : i32 to index
    %c0_324 = arith.constant 0 : index
    %557 = vector.load %arg13[%556, %c0_324] : memref<32x128xf32, #tpu.memory_space<vmem>>, vector<1x128xf32>
    %558 = arith.addf %554, %557 : vector<1x128xf32>
    %c1_325 = arith.constant 1 : index
    %c0_326 = arith.constant 0 : index
    %559 = vector.load %arg14[%c1_325, %c0_326] : memref<16x128xf32, #tpu.memory_space<vmem>>, vector<1x128xf32>
    tpu.vector_store %arg14[%c1_325, %c0_326], %558 {strides = array<i32>} : memref<16x128xf32, #tpu.memory_space<vmem>>, vector<1x128xf32>,
    %c8_327 = arith.constant 8 : index
    %560 = memref.load %arg1[%c8_327] : memref<64xi32, #tpu.memory_space<smem>>
    %561 = arith.index_cast %560 : i32 to index
    %c0_328 = arith.constant 0 : index
    %562 = vector.load %arg13[%561, %c0_328] : memref<32x128xf32, #tpu.memory_space<vmem>>, vector<1x128xf32>
    %c9_329 = arith.constant 9 : index
    %563 = memref.load %arg1[%c9_329] : memref<64xi32, #tpu.memory_space<smem>>
    %564 = arith.index_cast %563 : i32 to index
    %c0_330 = arith.constant 0 : index
    %565 = vector.load %arg13[%564, %c0_330] : memref<32x128xf32, #tpu.memory_space<vmem>>, vector<1x128xf32>
    %566 = arith.addf %562, %565 : vector<1x128xf32>
    %c10_331 = arith.constant 10 : index
    %567 = memref.load %arg1[%c10_331] : memref<64xi32, #tpu.memory_space<smem>>
    %568 = arith.index_cast %567 : i32 to index
    %c0_332 = arith.constant 0 : index
    %569 = vector.load %arg13[%568, %c0_332] : memref<32x128xf32, #tpu.memory_space<vmem>>, vector<1x128xf32>
    %570 = arith.addf %566, %569 : vector<1x128xf32>
    %c11_333 = arith.constant 11 : index
    %571 = memref.load %arg1[%c11_333] : memref<64xi32, #tpu.memory_space<smem>>
    %572 = arith.index_cast %571 : i32 to index
    %c0_334 = arith.constant 0 : index
    %573 = vector.load %arg13[%572, %c0_334] : memref<32x128xf32, #tpu.memory_space<vmem>>, vector<1x128xf32>
    %574 = arith.addf %570, %573 : vector<1x128xf32>
    %c2_335 = arith.constant 2 : index
    %c0_336 = arith.constant 0 : index
    %575 = vector.load %arg14[%c2_335, %c0_336] : memref<16x128xf32, #tpu.memory_space<vmem>>, vector<1x128xf32>
    tpu.vector_store %arg14[%c2_335, %c0_336], %574 {strides = array<i32>} : memref<16x128xf32, #tpu.memory_space<vmem>>, vector<1x128xf32>,
    %c12_337 = arith.constant 12 : index
    %576 = memref.load %arg1[%c12_337] : memref<64xi32, #tpu.memory_space<smem>>
    %577 = arith.index_cast %576 : i32 to index
    %c0_338 = arith.constant 0 : index
    %578 = vector.load %arg13[%577, %c0_338] : memref<32x128xf32, #tpu.memory_space<vmem>>, vector<1x128xf32>
    %c13_339 = arith.constant 13 : index
    %579 = memref.load %arg1[%c13_339] : memref<64xi32, #tpu.memory_space<smem>>
    %580 = arith.index_cast %579 : i32 to index
    %c0_340 = arith.constant 0 : index
    %581 = vector.load %arg13[%580, %c0_340] : memref<32x128xf32, #tpu.memory_space<vmem>>, vector<1x128xf32>
    %582 = arith.addf %578, %581 : vector<1x128xf32>
    %c14_341 = arith.constant 14 : index
    %583 = memref.load %arg1[%c14_341] : memref<64xi32, #tpu.memory_space<smem>>
    %584 = arith.index_cast %583 : i32 to index
    %c0_342 = arith.constant 0 : index
    %585 = vector.load %arg13[%584, %c0_342] : memref<32x128xf32, #tpu.memory_space<vmem>>, vector<1x128xf32>
    %586 = arith.addf %582, %585 : vector<1x128xf32>
    %c15_343 = arith.constant 15 : index
    %587 = memref.load %arg1[%c15_343] : memref<64xi32, #tpu.memory_space<smem>>
    %588 = arith.index_cast %587 : i32 to index
    %c0_344 = arith.constant 0 : index
    %589 = vector.load %arg13[%588, %c0_344] : memref<32x128xf32, #tpu.memory_space<vmem>>, vector<1x128xf32>
    %590 = arith.addf %586, %589 : vector<1x128xf32>
    %c3_345 = arith.constant 3 : index
    %c0_346 = arith.constant 0 : index
    %591 = vector.load %arg14[%c3_345, %c0_346] : memref<16x128xf32, #tpu.memory_space<vmem>>, vector<1x128xf32>
    tpu.vector_store %arg14[%c3_345, %c0_346], %590 {strides = array<i32>} : memref<16x128xf32, #tpu.memory_space<vmem>>, vector<1x128xf32>,
    %c16_347 = arith.constant 16 : index
    %592 = memref.load %arg1[%c16_347] : memref<64xi32, #tpu.memory_space<smem>>
    %593 = arith.index_cast %592 : i32 to index
    %c0_348 = arith.constant 0 : index
    %594 = vector.load %arg13[%593, %c0_348] : memref<32x128xf32, #tpu.memory_space<vmem>>, vector<1x128xf32>
    %c17_349 = arith.constant 17 : index
    %595 = memref.load %arg1[%c17_349] : memref<64xi32, #tpu.memory_space<smem>>
    %596 = arith.index_cast %595 : i32 to index
    %c0_350 = arith.constant 0 : index
    %597 = vector.load %arg13[%596, %c0_350] : memref<32x128xf32, #tpu.memory_space<vmem>>, vector<1x128xf32>
    %598 = arith.addf %594, %597 : vector<1x128xf32>
    %c18_351 = arith.constant 18 : index
    %599 = memref.load %arg1[%c18_351] : memref<64xi32, #tpu.memory_space<smem>>
    %600 = arith.index_cast %599 : i32 to index
    %c0_352 = arith.constant 0 : index
    %601 = vector.load %arg13[%600, %c0_352] : memref<32x128xf32, #tpu.memory_space<vmem>>, vector<1x128xf32>
    %602 = arith.addf %598, %601 : vector<1x128xf32>
    %c19_353 = arith.constant 19 : index
    %603 = memref.load %arg1[%c19_353] : memref<64xi32, #tpu.memory_space<smem>>
    %604 = arith.index_cast %603 : i32 to index
    %c0_354 = arith.constant 0 : index
    %605 = vector.load %arg13[%604, %c0_354] : memref<32x128xf32, #tpu.memory_space<vmem>>, vector<1x128xf32>
    %606 = arith.addf %602, %605 : vector<1x128xf32>
    %c4_355 = arith.constant 4 : index
    %c0_356 = arith.constant 0 : index
    %607 = vector.load %arg14[%c4_355, %c0_356] : memref<16x128xf32, #tpu.memory_space<vmem>>, vector<1x128xf32>
    tpu.vector_store %arg14[%c4_355, %c0_356], %606 {strides = array<i32>} : memref<16x128xf32, #tpu.memory_space<vmem>>, vector<1x128xf32>,
    %c20_357 = arith.constant 20 : index
    %608 = memref.load %arg1[%c20_357] : memref<64xi32, #tpu.memory_space<smem>>
    %609 = arith.index_cast %608 : i32 to index
    %c0_358 = arith.constant 0 : index
    %610 = vector.load %arg13[%609, %c0_358] : memref<32x128xf32, #tpu.memory_space<vmem>>, vector<1x128xf32>
    %c21_359 = arith.constant 21 : index
    %611 = memref.load %arg1[%c21_359] : memref<64xi32, #tpu.memory_space<smem>>
    %612 = arith.index_cast %611 : i32 to index
    %c0_360 = arith.constant 0 : index
    %613 = vector.load %arg13[%612, %c0_360] : memref<32x128xf32, #tpu.memory_space<vmem>>, vector<1x128xf32>
    %614 = arith.addf %610, %613 : vector<1x128xf32>
    %c22_361 = arith.constant 22 : index
    %615 = memref.load %arg1[%c22_361] : memref<64xi32, #tpu.memory_space<smem>>
    %616 = arith.index_cast %615 : i32 to index
    %c0_362 = arith.constant 0 : index
    %617 = vector.load %arg13[%616, %c0_362] : memref<32x128xf32, #tpu.memory_space<vmem>>, vector<1x128xf32>
    %618 = arith.addf %614, %617 : vector<1x128xf32>
    %c23_363 = arith.constant 23 : index
    %619 = memref.load %arg1[%c23_363] : memref<64xi32, #tpu.memory_space<smem>>
    %620 = arith.index_cast %619 : i32 to index
    %c0_364 = arith.constant 0 : index
    %621 = vector.load %arg13[%620, %c0_364] : memref<32x128xf32, #tpu.memory_space<vmem>>, vector<1x128xf32>
    %622 = arith.addf %618, %621 : vector<1x128xf32>
    %c5_365 = arith.constant 5 : index
    %c0_366 = arith.constant 0 : index
    %623 = vector.load %arg14[%c5_365, %c0_366] : memref<16x128xf32, #tpu.memory_space<vmem>>, vector<1x128xf32>
    tpu.vector_store %arg14[%c5_365, %c0_366], %622 {strides = array<i32>} : memref<16x128xf32, #tpu.memory_space<vmem>>, vector<1x128xf32>,
    %c24_367 = arith.constant 24 : index
    %624 = memref.load %arg1[%c24_367] : memref<64xi32, #tpu.memory_space<smem>>
    %625 = arith.index_cast %624 : i32 to index
    %c0_368 = arith.constant 0 : index
    %626 = vector.load %arg13[%625, %c0_368] : memref<32x128xf32, #tpu.memory_space<vmem>>, vector<1x128xf32>
    %c25_369 = arith.constant 25 : index
    %627 = memref.load %arg1[%c25_369] : memref<64xi32, #tpu.memory_space<smem>>
    %628 = arith.index_cast %627 : i32 to index
    %c0_370 = arith.constant 0 : index
    %629 = vector.load %arg13[%628, %c0_370] : memref<32x128xf32, #tpu.memory_space<vmem>>, vector<1x128xf32>
    %630 = arith.addf %626, %629 : vector<1x128xf32>
    %c26_371 = arith.constant 26 : index
    %631 = memref.load %arg1[%c26_371] : memref<64xi32, #tpu.memory_space<smem>>
    %632 = arith.index_cast %631 : i32 to index
    %c0_372 = arith.constant 0 : index
    %633 = vector.load %arg13[%632, %c0_372] : memref<32x128xf32, #tpu.memory_space<vmem>>, vector<1x128xf32>
    %634 = arith.addf %630, %633 : vector<1x128xf32>
    %c27_373 = arith.constant 27 : index
    %635 = memref.load %arg1[%c27_373] : memref<64xi32, #tpu.memory_space<smem>>
    %636 = arith.index_cast %635 : i32 to index
    %c0_374 = arith.constant 0 : index
    %637 = vector.load %arg13[%636, %c0_374] : memref<32x128xf32, #tpu.memory_space<vmem>>, vector<1x128xf32>
    %638 = arith.addf %634, %637 : vector<1x128xf32>
    %c6_375 = arith.constant 6 : index
    %c0_376 = arith.constant 0 : index
    %639 = vector.load %arg14[%c6_375, %c0_376] : memref<16x128xf32, #tpu.memory_space<vmem>>, vector<1x128xf32>
    tpu.vector_store %arg14[%c6_375, %c0_376], %638 {strides = array<i32>} : memref<16x128xf32, #tpu.memory_space<vmem>>, vector<1x128xf32>,
    %c28_377 = arith.constant 28 : index
    %640 = memref.load %arg1[%c28_377] : memref<64xi32, #tpu.memory_space<smem>>
    %641 = arith.index_cast %640 : i32 to index
    %c0_378 = arith.constant 0 : index
    %642 = vector.load %arg13[%641, %c0_378] : memref<32x128xf32, #tpu.memory_space<vmem>>, vector<1x128xf32>
    %c29_379 = arith.constant 29 : index
    %643 = memref.load %arg1[%c29_379] : memref<64xi32, #tpu.memory_space<smem>>
    %644 = arith.index_cast %643 : i32 to index
    %c0_380 = arith.constant 0 : index
    %645 = vector.load %arg13[%644, %c0_380] : memref<32x128xf32, #tpu.memory_space<vmem>>, vector<1x128xf32>
    %646 = arith.addf %642, %645 : vector<1x128xf32>
    %c30_381 = arith.constant 30 : index
    %647 = memref.load %arg1[%c30_381] : memref<64xi32, #tpu.memory_space<smem>>
    %648 = arith.index_cast %647 : i32 to index
    %c0_382 = arith.constant 0 : index
    %649 = vector.load %arg13[%648, %c0_382] : memref<32x128xf32, #tpu.memory_space<vmem>>, vector<1x128xf32>
    %650 = arith.addf %646, %649 : vector<1x128xf32>
    %c31_383 = arith.constant 31 : index
    %651 = memref.load %arg1[%c31_383] : memref<64xi32, #tpu.memory_space<smem>>
    %652 = arith.index_cast %651 : i32 to index
    %c0_384 = arith.constant 0 : index
    %653 = vector.load %arg13[%652, %c0_384] : memref<32x128xf32, #tpu.memory_space<vmem>>, vector<1x128xf32>
    %654 = arith.addf %650, %653 : vector<1x128xf32>
    %c7_385 = arith.constant 7 : index
    %c0_386 = arith.constant 0 : index
    %655 = vector.load %arg14[%c7_385, %c0_386] : memref<16x128xf32, #tpu.memory_space<vmem>>, vector<1x128xf32>
    tpu.vector_store %arg14[%c7_385, %c0_386], %654 {strides = array<i32>} : memref<16x128xf32, #tpu.memory_space<vmem>>, vector<1x128xf32>,
    %c32_387 = arith.constant 32 : index
    %656 = memref.load %arg1[%c32_387] : memref<64xi32, #tpu.memory_space<smem>>
    %657 = arith.index_cast %656 : i32 to index
    %c0_388 = arith.constant 0 : index
    %658 = vector.load %arg13[%657, %c0_388] : memref<32x128xf32, #tpu.memory_space<vmem>>, vector<1x128xf32>
    %c33_389 = arith.constant 33 : index
    %659 = memref.load %arg1[%c33_389] : memref<64xi32, #tpu.memory_space<smem>>
    %660 = arith.index_cast %659 : i32 to index
    %c0_390 = arith.constant 0 : index
    %661 = vector.load %arg13[%660, %c0_390] : memref<32x128xf32, #tpu.memory_space<vmem>>, vector<1x128xf32>
    %662 = arith.addf %658, %661 : vector<1x128xf32>
    %c34_391 = arith.constant 34 : index
    %663 = memref.load %arg1[%c34_391] : memref<64xi32, #tpu.memory_space<smem>>
    %664 = arith.index_cast %663 : i32 to index
    %c0_392 = arith.constant 0 : index
    %665 = vector.load %arg13[%664, %c0_392] : memref<32x128xf32, #tpu.memory_space<vmem>>, vector<1x128xf32>
    %666 = arith.addf %662, %665 : vector<1x128xf32>
    %c35_393 = arith.constant 35 : index
    %667 = memref.load %arg1[%c35_393] : memref<64xi32, #tpu.memory_space<smem>>
    %668 = arith.index_cast %667 : i32 to index
    %c0_394 = arith.constant 0 : index
    %669 = vector.load %arg13[%668, %c0_394] : memref<32x128xf32, #tpu.memory_space<vmem>>, vector<1x128xf32>
    %670 = arith.addf %666, %669 : vector<1x128xf32>
    %c8_395 = arith.constant 8 : index
    %c0_396 = arith.constant 0 : index
    %671 = vector.load %arg14[%c8_395, %c0_396] : memref<16x128xf32, #tpu.memory_space<vmem>>, vector<1x128xf32>
    tpu.vector_store %arg14[%c8_395, %c0_396], %670 {strides = array<i32>} : memref<16x128xf32, #tpu.memory_space<vmem>>, vector<1x128xf32>,
    %c36_397 = arith.constant 36 : index
    %672 = memref.load %arg1[%c36_397] : memref<64xi32, #tpu.memory_space<smem>>
    %673 = arith.index_cast %672 : i32 to index
    %c0_398 = arith.constant 0 : index
    %674 = vector.load %arg13[%673, %c0_398] : memref<32x128xf32, #tpu.memory_space<vmem>>, vector<1x128xf32>
    %c37_399 = arith.constant 37 : index
    %675 = memref.load %arg1[%c37_399] : memref<64xi32, #tpu.memory_space<smem>>
    %676 = arith.index_cast %675 : i32 to index
    %c0_400 = arith.constant 0 : index
    %677 = vector.load %arg13[%676, %c0_400] : memref<32x128xf32, #tpu.memory_space<vmem>>, vector<1x128xf32>
    %678 = arith.addf %674, %677 : vector<1x128xf32>
    %c38_401 = arith.constant 38 : index
    %679 = memref.load %arg1[%c38_401] : memref<64xi32, #tpu.memory_space<smem>>
    %680 = arith.index_cast %679 : i32 to index
    %c0_402 = arith.constant 0 : index
    %681 = vector.load %arg13[%680, %c0_402] : memref<32x128xf32, #tpu.memory_space<vmem>>, vector<1x128xf32>
    %682 = arith.addf %678, %681 : vector<1x128xf32>
    %c39_403 = arith.constant 39 : index
    %683 = memref.load %arg1[%c39_403] : memref<64xi32, #tpu.memory_space<smem>>
    %684 = arith.index_cast %683 : i32 to index
    %c0_404 = arith.constant 0 : index
    %685 = vector.load %arg13[%684, %c0_404] : memref<32x128xf32, #tpu.memory_space<vmem>>, vector<1x128xf32>
    %686 = arith.addf %682, %685 : vector<1x128xf32>
    %c9_405 = arith.constant 9 : index
    %c0_406 = arith.constant 0 : index
    %687 = vector.load %arg14[%c9_405, %c0_406] : memref<16x128xf32, #tpu.memory_space<vmem>>, vector<1x128xf32>
    tpu.vector_store %arg14[%c9_405, %c0_406], %686 {strides = array<i32>} : memref<16x128xf32, #tpu.memory_space<vmem>>, vector<1x128xf32>,
    %c40_407 = arith.constant 40 : index
    %688 = memref.load %arg1[%c40_407] : memref<64xi32, #tpu.memory_space<smem>>
    %689 = arith.index_cast %688 : i32 to index
    %c0_408 = arith.constant 0 : index
    %690 = vector.load %arg13[%689, %c0_408] : memref<32x128xf32, #tpu.memory_space<vmem>>, vector<1x128xf32>
    %c41_409 = arith.constant 41 : index
    %691 = memref.load %arg1[%c41_409] : memref<64xi32, #tpu.memory_space<smem>>
    %692 = arith.index_cast %691 : i32 to index
    %c0_410 = arith.constant 0 : index
    %693 = vector.load %arg13[%692, %c0_410] : memref<32x128xf32, #tpu.memory_space<vmem>>, vector<1x128xf32>
    %694 = arith.addf %690, %693 : vector<1x128xf32>
    %c42_411 = arith.constant 42 : index
    %695 = memref.load %arg1[%c42_411] : memref<64xi32, #tpu.memory_space<smem>>
    %696 = arith.index_cast %695 : i32 to index
    %c0_412 = arith.constant 0 : index
    %697 = vector.load %arg13[%696, %c0_412] : memref<32x128xf32, #tpu.memory_space<vmem>>, vector<1x128xf32>
    %698 = arith.addf %694, %697 : vector<1x128xf32>
    %c43_413 = arith.constant 43 : index
    %699 = memref.load %arg1[%c43_413] : memref<64xi32, #tpu.memory_space<smem>>
    %700 = arith.index_cast %699 : i32 to index
    %c0_414 = arith.constant 0 : index
    %701 = vector.load %arg13[%700, %c0_414] : memref<32x128xf32, #tpu.memory_space<vmem>>, vector<1x128xf32>
    %702 = arith.addf %698, %701 : vector<1x128xf32>
    %c10_415 = arith.constant 10 : index
    %c0_416 = arith.constant 0 : index
    %703 = vector.load %arg14[%c10_415, %c0_416] : memref<16x128xf32, #tpu.memory_space<vmem>>, vector<1x128xf32>
    tpu.vector_store %arg14[%c10_415, %c0_416], %702 {strides = array<i32>} : memref<16x128xf32, #tpu.memory_space<vmem>>, vector<1x128xf32>,
    %c44_417 = arith.constant 44 : index
    %704 = memref.load %arg1[%c44_417] : memref<64xi32, #tpu.memory_space<smem>>
    %705 = arith.index_cast %704 : i32 to index
    %c0_418 = arith.constant 0 : index
    %706 = vector.load %arg13[%705, %c0_418] : memref<32x128xf32, #tpu.memory_space<vmem>>, vector<1x128xf32>
    %c45_419 = arith.constant 45 : index
    %707 = memref.load %arg1[%c45_419] : memref<64xi32, #tpu.memory_space<smem>>
    %708 = arith.index_cast %707 : i32 to index
    %c0_420 = arith.constant 0 : index
    %709 = vector.load %arg13[%708, %c0_420] : memref<32x128xf32, #tpu.memory_space<vmem>>, vector<1x128xf32>
    %710 = arith.addf %706, %709 : vector<1x128xf32>
    %c46_421 = arith.constant 46 : index
    %711 = memref.load %arg1[%c46_421] : memref<64xi32, #tpu.memory_space<smem>>
    %712 = arith.index_cast %711 : i32 to index
    %c0_422 = arith.constant 0 : index
    %713 = vector.load %arg13[%712, %c0_422] : memref<32x128xf32, #tpu.memory_space<vmem>>, vector<1x128xf32>
    %714 = arith.addf %710, %713 : vector<1x128xf32>
    %c47_423 = arith.constant 47 : index
    %715 = memref.load %arg1[%c47_423] : memref<64xi32, #tpu.memory_space<smem>>
    %716 = arith.index_cast %715 : i32 to index
    %c0_424 = arith.constant 0 : index
    %717 = vector.load %arg13[%716, %c0_424] : memref<32x128xf32, #tpu.memory_space<vmem>>, vector<1x128xf32>
    %718 = arith.addf %714, %717 : vector<1x128xf32>
    %c11_425 = arith.constant 11 : index
    %c0_426 = arith.constant 0 : index
    %719 = vector.load %arg14[%c11_425, %c0_426] : memref<16x128xf32, #tpu.memory_space<vmem>>, vector<1x128xf32>
    tpu.vector_store %arg14[%c11_425, %c0_426], %718 {strides = array<i32>} : memref<16x128xf32, #tpu.memory_space<vmem>>, vector<1x128xf32>,
    %c48_427 = arith.constant 48 : index
    %720 = memref.load %arg1[%c48_427] : memref<64xi32, #tpu.memory_space<smem>>
    %721 = arith.index_cast %720 : i32 to index
    %c0_428 = arith.constant 0 : index
    %722 = vector.load %arg13[%721, %c0_428] : memref<32x128xf32, #tpu.memory_space<vmem>>, vector<1x128xf32>
    %c49_429 = arith.constant 49 : index
    %723 = memref.load %arg1[%c49_429] : memref<64xi32, #tpu.memory_space<smem>>
    %724 = arith.index_cast %723 : i32 to index
    %c0_430 = arith.constant 0 : index
    %725 = vector.load %arg13[%724, %c0_430] : memref<32x128xf32, #tpu.memory_space<vmem>>, vector<1x128xf32>
    %726 = arith.addf %722, %725 : vector<1x128xf32>
    %c50_431 = arith.constant 50 : index
    %727 = memref.load %arg1[%c50_431] : memref<64xi32, #tpu.memory_space<smem>>
    %728 = arith.index_cast %727 : i32 to index
    %c0_432 = arith.constant 0 : index
    %729 = vector.load %arg13[%728, %c0_432] : memref<32x128xf32, #tpu.memory_space<vmem>>, vector<1x128xf32>
    %730 = arith.addf %726, %729 : vector<1x128xf32>
    %c51_433 = arith.constant 51 : index
    %731 = memref.load %arg1[%c51_433] : memref<64xi32, #tpu.memory_space<smem>>
    %732 = arith.index_cast %731 : i32 to index
    %c0_434 = arith.constant 0 : index
    %733 = vector.load %arg13[%732, %c0_434] : memref<32x128xf32, #tpu.memory_space<vmem>>, vector<1x128xf32>
    %734 = arith.addf %730, %733 : vector<1x128xf32>
    %c12_435 = arith.constant 12 : index
    %c0_436 = arith.constant 0 : index
    %735 = vector.load %arg14[%c12_435, %c0_436] : memref<16x128xf32, #tpu.memory_space<vmem>>, vector<1x128xf32>
    tpu.vector_store %arg14[%c12_435, %c0_436], %734 {strides = array<i32>} : memref<16x128xf32, #tpu.memory_space<vmem>>, vector<1x128xf32>,
    %c52_437 = arith.constant 52 : index
    %736 = memref.load %arg1[%c52_437] : memref<64xi32, #tpu.memory_space<smem>>
    %737 = arith.index_cast %736 : i32 to index
    %c0_438 = arith.constant 0 : index
    %738 = vector.load %arg13[%737, %c0_438] : memref<32x128xf32, #tpu.memory_space<vmem>>, vector<1x128xf32>
    %c53_439 = arith.constant 53 : index
    %739 = memref.load %arg1[%c53_439] : memref<64xi32, #tpu.memory_space<smem>>
    %740 = arith.index_cast %739 : i32 to index
    %c0_440 = arith.constant 0 : index
    %741 = vector.load %arg13[%740, %c0_440] : memref<32x128xf32, #tpu.memory_space<vmem>>, vector<1x128xf32>
    %742 = arith.addf %738, %741 : vector<1x128xf32>
    %c54_441 = arith.constant 54 : index
    %743 = memref.load %arg1[%c54_441] : memref<64xi32, #tpu.memory_space<smem>>
    %744 = arith.index_cast %743 : i32 to index
    %c0_442 = arith.constant 0 : index
    %745 = vector.load %arg13[%744, %c0_442] : memref<32x128xf32, #tpu.memory_space<vmem>>, vector<1x128xf32>
    %746 = arith.addf %742, %745 : vector<1x128xf32>
    %c55_443 = arith.constant 55 : index
    %747 = memref.load %arg1[%c55_443] : memref<64xi32, #tpu.memory_space<smem>>
    %748 = arith.index_cast %747 : i32 to index
    %c0_444 = arith.constant 0 : index
    %749 = vector.load %arg13[%748, %c0_444] : memref<32x128xf32, #tpu.memory_space<vmem>>, vector<1x128xf32>
    %750 = arith.addf %746, %749 : vector<1x128xf32>
    %c13_445 = arith.constant 13 : index
    %c0_446 = arith.constant 0 : index
    %751 = vector.load %arg14[%c13_445, %c0_446] : memref<16x128xf32, #tpu.memory_space<vmem>>, vector<1x128xf32>
    tpu.vector_store %arg14[%c13_445, %c0_446], %750 {strides = array<i32>} : memref<16x128xf32, #tpu.memory_space<vmem>>, vector<1x128xf32>,
    %c56_447 = arith.constant 56 : index
    %752 = memref.load %arg1[%c56_447] : memref<64xi32, #tpu.memory_space<smem>>
    %753 = arith.index_cast %752 : i32 to index
    %c0_448 = arith.constant 0 : index
    %754 = vector.load %arg13[%753, %c0_448] : memref<32x128xf32, #tpu.memory_space<vmem>>, vector<1x128xf32>
    %c57_449 = arith.constant 57 : index
    %755 = memref.load %arg1[%c57_449] : memref<64xi32, #tpu.memory_space<smem>>
    %756 = arith.index_cast %755 : i32 to index
    %c0_450 = arith.constant 0 : index
    %757 = vector.load %arg13[%756, %c0_450] : memref<32x128xf32, #tpu.memory_space<vmem>>, vector<1x128xf32>
    %758 = arith.addf %754, %757 : vector<1x128xf32>
    %c58_451 = arith.constant 58 : index
    %759 = memref.load %arg1[%c58_451] : memref<64xi32, #tpu.memory_space<smem>>
    %760 = arith.index_cast %759 : i32 to index
    %c0_452 = arith.constant 0 : index
    %761 = vector.load %arg13[%760, %c0_452] : memref<32x128xf32, #tpu.memory_space<vmem>>, vector<1x128xf32>
    %762 = arith.addf %758, %761 : vector<1x128xf32>
    %c59_453 = arith.constant 59 : index
    %763 = memref.load %arg1[%c59_453] : memref<64xi32, #tpu.memory_space<smem>>
    %764 = arith.index_cast %763 : i32 to index
    %c0_454 = arith.constant 0 : index
    %765 = vector.load %arg13[%764, %c0_454] : memref<32x128xf32, #tpu.memory_space<vmem>>, vector<1x128xf32>
    %766 = arith.addf %762, %765 : vector<1x128xf32>
    %c14_455 = arith.constant 14 : index
    %c0_456 = arith.constant 0 : index
    %767 = vector.load %arg14[%c14_455, %c0_456] : memref<16x128xf32, #tpu.memory_space<vmem>>, vector<1x128xf32>
    tpu.vector_store %arg14[%c14_455, %c0_456], %766 {strides = array<i32>} : memref<16x128xf32, #tpu.memory_space<vmem>>, vector<1x128xf32>,
    %c60_457 = arith.constant 60 : index
    %768 = memref.load %arg1[%c60_457] : memref<64xi32, #tpu.memory_space<smem>>
    %769 = arith.index_cast %768 : i32 to index
    %c0_458 = arith.constant 0 : index
    %770 = vector.load %arg13[%769, %c0_458] : memref<32x128xf32, #tpu.memory_space<vmem>>, vector<1x128xf32>
    %c61_459 = arith.constant 61 : index
    %771 = memref.load %arg1[%c61_459] : memref<64xi32, #tpu.memory_space<smem>>
    %772 = arith.index_cast %771 : i32 to index
    %c0_460 = arith.constant 0 : index
    %773 = vector.load %arg13[%772, %c0_460] : memref<32x128xf32, #tpu.memory_space<vmem>>, vector<1x128xf32>
    %774 = arith.addf %770, %773 : vector<1x128xf32>
    %c62_461 = arith.constant 62 : index
    %775 = memref.load %arg1[%c62_461] : memref<64xi32, #tpu.memory_space<smem>>
    %776 = arith.index_cast %775 : i32 to index
    %c0_462 = arith.constant 0 : index
    %777 = vector.load %arg13[%776, %c0_462] : memref<32x128xf32, #tpu.memory_space<vmem>>, vector<1x128xf32>
    %778 = arith.addf %774, %777 : vector<1x128xf32>
    %c63_463 = arith.constant 63 : index
    %779 = memref.load %arg1[%c63_463] : memref<64xi32, #tpu.memory_space<smem>>
    %780 = arith.index_cast %779 : i32 to index
    %c0_464 = arith.constant 0 : index
    %781 = vector.load %arg13[%780, %c0_464] : memref<32x128xf32, #tpu.memory_space<vmem>>, vector<1x128xf32>
    %782 = arith.addf %778, %781 : vector<1x128xf32>
    %c15_465 = arith.constant 15 : index
    %c0_466 = arith.constant 0 : index
    %783 = vector.load %arg14[%c15_465, %c0_466] : memref<16x128xf32, #tpu.memory_space<vmem>>, vector<1x128xf32>
    tpu.vector_store %arg14[%c15_465, %c0_466], %782 {strides = array<i32>} : memref<16x128xf32, #tpu.memory_space<vmem>>, vector<1x128xf32>,
    %c0_467 = arith.constant 0 : index
    %784 = memref.load %arg2[%c0_467] : memref<32xi32, #tpu.memory_space<smem>>
    %785 = arith.index_cast %784 : i32 to index
    %c0_468 = arith.constant 0 : index
    %786 = vector.load %arg14[%785, %c0_468] : memref<16x128xf32, #tpu.memory_space<vmem>>, vector<1x128xf32>
    %c0_469 = arith.constant 0 : index
    %787 = memref.load %arg3[%c0_469] : memref<32xi32, #tpu.memory_space<smem>>
    %788 = arith.index_cast %787 : i32 to index
    %c0_470 = arith.constant 0 : index
    %789 = vector.load %arg13[%788, %c0_470] : memref<32x128xf32, #tpu.memory_space<vmem>>, vector<1x128xf32>
    %790 = arith.subf %786, %789 : vector<1x128xf32>
    %c0_471 = arith.constant 0 : index
    %c0_472 = arith.constant 0 : index
    %791 = vector.load %arg15[%c0_471, %c0_472] : memref<32x128xf32, #tpu.memory_space<vmem>>, vector<1x128xf32>
    tpu.vector_store %arg15[%c0_471, %c0_472], %790 {strides = array<i32>} : memref<32x128xf32, #tpu.memory_space<vmem>>, vector<1x128xf32>,
    %c1_473 = arith.constant 1 : index
    %792 = memref.load %arg2[%c1_473] : memref<32xi32, #tpu.memory_space<smem>>
    %793 = arith.index_cast %792 : i32 to index
    %c0_474 = arith.constant 0 : index
    %794 = vector.load %arg14[%793, %c0_474] : memref<16x128xf32, #tpu.memory_space<vmem>>, vector<1x128xf32>
    %c1_475 = arith.constant 1 : index
    %795 = memref.load %arg3[%c1_475] : memref<32xi32, #tpu.memory_space<smem>>
    %796 = arith.index_cast %795 : i32 to index
    %c0_476 = arith.constant 0 : index
    %797 = vector.load %arg13[%796, %c0_476] : memref<32x128xf32, #tpu.memory_space<vmem>>, vector<1x128xf32>
    %798 = arith.subf %794, %797 : vector<1x128xf32>
    %c1_477 = arith.constant 1 : index
    %c0_478 = arith.constant 0 : index
    %799 = vector.load %arg15[%c1_477, %c0_478] : memref<32x128xf32, #tpu.memory_space<vmem>>, vector<1x128xf32>
    tpu.vector_store %arg15[%c1_477, %c0_478], %798 {strides = array<i32>} : memref<32x128xf32, #tpu.memory_space<vmem>>, vector<1x128xf32>,
    %c2_479 = arith.constant 2 : index
    %800 = memref.load %arg2[%c2_479] : memref<32xi32, #tpu.memory_space<smem>>
    %801 = arith.index_cast %800 : i32 to index
    %c0_480 = arith.constant 0 : index
    %802 = vector.load %arg14[%801, %c0_480] : memref<16x128xf32, #tpu.memory_space<vmem>>, vector<1x128xf32>
    %c2_481 = arith.constant 2 : index
    %803 = memref.load %arg3[%c2_481] : memref<32xi32, #tpu.memory_space<smem>>
    %804 = arith.index_cast %803 : i32 to index
    %c0_482 = arith.constant 0 : index
    %805 = vector.load %arg13[%804, %c0_482] : memref<32x128xf32, #tpu.memory_space<vmem>>, vector<1x128xf32>
    %806 = arith.subf %802, %805 : vector<1x128xf32>
    %c2_483 = arith.constant 2 : index
    %c0_484 = arith.constant 0 : index
    %807 = vector.load %arg15[%c2_483, %c0_484] : memref<32x128xf32, #tpu.memory_space<vmem>>, vector<1x128xf32>
    tpu.vector_store %arg15[%c2_483, %c0_484], %806 {strides = array<i32>} : memref<32x128xf32, #tpu.memory_space<vmem>>, vector<1x128xf32>,
    %c3_485 = arith.constant 3 : index
    %808 = memref.load %arg2[%c3_485] : memref<32xi32, #tpu.memory_space<smem>>
    %809 = arith.index_cast %808 : i32 to index
    %c0_486 = arith.constant 0 : index
    %810 = vector.load %arg14[%809, %c0_486] : memref<16x128xf32, #tpu.memory_space<vmem>>, vector<1x128xf32>
    %c3_487 = arith.constant 3 : index
    %811 = memref.load %arg3[%c3_487] : memref<32xi32, #tpu.memory_space<smem>>
    %812 = arith.index_cast %811 : i32 to index
    %c0_488 = arith.constant 0 : index
    %813 = vector.load %arg13[%812, %c0_488] : memref<32x128xf32, #tpu.memory_space<vmem>>, vector<1x128xf32>
    %814 = arith.subf %810, %813 : vector<1x128xf32>
    %c3_489 = arith.constant 3 : index
    %c0_490 = arith.constant 0 : index
    %815 = vector.load %arg15[%c3_489, %c0_490] : memref<32x128xf32, #tpu.memory_space<vmem>>, vector<1x128xf32>
    tpu.vector_store %arg15[%c3_489, %c0_490], %814 {strides = array<i32>} : memref<32x128xf32, #tpu.memory_space<vmem>>, vector<1x128xf32>,
    %c4_491 = arith.constant 4 : index
    %816 = memref.load %arg2[%c4_491] : memref<32xi32, #tpu.memory_space<smem>>
    %817 = arith.index_cast %816 : i32 to index
    %c0_492 = arith.constant 0 : index
    %818 = vector.load %arg14[%817, %c0_492] : memref<16x128xf32, #tpu.memory_space<vmem>>, vector<1x128xf32>
    %c4_493 = arith.constant 4 : index
    %819 = memref.load %arg3[%c4_493] : memref<32xi32, #tpu.memory_space<smem>>
    %820 = arith.index_cast %819 : i32 to index
    %c0_494 = arith.constant 0 : index
    %821 = vector.load %arg13[%820, %c0_494] : memref<32x128xf32, #tpu.memory_space<vmem>>, vector<1x128xf32>
    %822 = arith.subf %818, %821 : vector<1x128xf32>
    %c4_495 = arith.constant 4 : index
    %c0_496 = arith.constant 0 : index
    %823 = vector.load %arg15[%c4_495, %c0_496] : memref<32x128xf32, #tpu.memory_space<vmem>>, vector<1x128xf32>
    tpu.vector_store %arg15[%c4_495, %c0_496], %822 {strides = array<i32>} : memref<32x128xf32, #tpu.memory_space<vmem>>, vector<1x128xf32>,
    %c5_497 = arith.constant 5 : index
    %824 = memref.load %arg2[%c5_497] : memref<32xi32, #tpu.memory_space<smem>>
    %825 = arith.index_cast %824 : i32 to index
    %c0_498 = arith.constant 0 : index
    %826 = vector.load %arg14[%825, %c0_498] : memref<16x128xf32, #tpu.memory_space<vmem>>, vector<1x128xf32>
    %c5_499 = arith.constant 5 : index
    %827 = memref.load %arg3[%c5_499] : memref<32xi32, #tpu.memory_space<smem>>
    %828 = arith.index_cast %827 : i32 to index
    %c0_500 = arith.constant 0 : index
    %829 = vector.load %arg13[%828, %c0_500] : memref<32x128xf32, #tpu.memory_space<vmem>>, vector<1x128xf32>
    %830 = arith.subf %826, %829 : vector<1x128xf32>
    %c5_501 = arith.constant 5 : index
    %c0_502 = arith.constant 0 : index
    %831 = vector.load %arg15[%c5_501, %c0_502] : memref<32x128xf32, #tpu.memory_space<vmem>>, vector<1x128xf32>
    tpu.vector_store %arg15[%c5_501, %c0_502], %830 {strides = array<i32>} : memref<32x128xf32, #tpu.memory_space<vmem>>, vector<1x128xf32>,
    %c6_503 = arith.constant 6 : index
    %832 = memref.load %arg2[%c6_503] : memref<32xi32, #tpu.memory_space<smem>>
    %833 = arith.index_cast %832 : i32 to index
    %c0_504 = arith.constant 0 : index
    %834 = vector.load %arg14[%833, %c0_504] : memref<16x128xf32, #tpu.memory_space<vmem>>, vector<1x128xf32>
    %c6_505 = arith.constant 6 : index
    %835 = memref.load %arg3[%c6_505] : memref<32xi32, #tpu.memory_space<smem>>
    %836 = arith.index_cast %835 : i32 to index
    %c0_506 = arith.constant 0 : index
    %837 = vector.load %arg13[%836, %c0_506] : memref<32x128xf32, #tpu.memory_space<vmem>>, vector<1x128xf32>
    %838 = arith.subf %834, %837 : vector<1x128xf32>
    %c6_507 = arith.constant 6 : index
    %c0_508 = arith.constant 0 : index
    %839 = vector.load %arg15[%c6_507, %c0_508] : memref<32x128xf32, #tpu.memory_space<vmem>>, vector<1x128xf32>
    tpu.vector_store %arg15[%c6_507, %c0_508], %838 {strides = array<i32>} : memref<32x128xf32, #tpu.memory_space<vmem>>, vector<1x128xf32>,
    %c7_509 = arith.constant 7 : index
    %840 = memref.load %arg2[%c7_509] : memref<32xi32, #tpu.memory_space<smem>>
    %841 = arith.index_cast %840 : i32 to index
    %c0_510 = arith.constant 0 : index
    %842 = vector.load %arg14[%841, %c0_510] : memref<16x128xf32, #tpu.memory_space<vmem>>, vector<1x128xf32>
    %c7_511 = arith.constant 7 : index
    %843 = memref.load %arg3[%c7_511] : memref<32xi32, #tpu.memory_space<smem>>
    %844 = arith.index_cast %843 : i32 to index
    %c0_512 = arith.constant 0 : index
    %845 = vector.load %arg13[%844, %c0_512] : memref<32x128xf32, #tpu.memory_space<vmem>>, vector<1x128xf32>
    %846 = arith.subf %842, %845 : vector<1x128xf32>
    %c7_513 = arith.constant 7 : index
    %c0_514 = arith.constant 0 : index
    %847 = vector.load %arg15[%c7_513, %c0_514] : memref<32x128xf32, #tpu.memory_space<vmem>>, vector<1x128xf32>
    tpu.vector_store %arg15[%c7_513, %c0_514], %846 {strides = array<i32>} : memref<32x128xf32, #tpu.memory_space<vmem>>, vector<1x128xf32>,
    %c8_515 = arith.constant 8 : index
    %848 = memref.load %arg2[%c8_515] : memref<32xi32, #tpu.memory_space<smem>>
    %849 = arith.index_cast %848 : i32 to index
    %c0_516 = arith.constant 0 : index
    %850 = vector.load %arg14[%849, %c0_516] : memref<16x128xf32, #tpu.memory_space<vmem>>, vector<1x128xf32>
    %c8_517 = arith.constant 8 : index
    %851 = memref.load %arg3[%c8_517] : memref<32xi32, #tpu.memory_space<smem>>
    %852 = arith.index_cast %851 : i32 to index
    %c0_518 = arith.constant 0 : index
    %853 = vector.load %arg13[%852, %c0_518] : memref<32x128xf32, #tpu.memory_space<vmem>>, vector<1x128xf32>
    %854 = arith.subf %850, %853 : vector<1x128xf32>
    %c8_519 = arith.constant 8 : index
    %c0_520 = arith.constant 0 : index
    %855 = vector.load %arg15[%c8_519, %c0_520] : memref<32x128xf32, #tpu.memory_space<vmem>>, vector<1x128xf32>
    tpu.vector_store %arg15[%c8_519, %c0_520], %854 {strides = array<i32>} : memref<32x128xf32, #tpu.memory_space<vmem>>, vector<1x128xf32>,
    %c9_521 = arith.constant 9 : index
    %856 = memref.load %arg2[%c9_521] : memref<32xi32, #tpu.memory_space<smem>>
    %857 = arith.index_cast %856 : i32 to index
    %c0_522 = arith.constant 0 : index
    %858 = vector.load %arg14[%857, %c0_522] : memref<16x128xf32, #tpu.memory_space<vmem>>, vector<1x128xf32>
    %c9_523 = arith.constant 9 : index
    %859 = memref.load %arg3[%c9_523] : memref<32xi32, #tpu.memory_space<smem>>
    %860 = arith.index_cast %859 : i32 to index
    %c0_524 = arith.constant 0 : index
    %861 = vector.load %arg13[%860, %c0_524] : memref<32x128xf32, #tpu.memory_space<vmem>>, vector<1x128xf32>
    %862 = arith.subf %858, %861 : vector<1x128xf32>
    %c9_525 = arith.constant 9 : index
    %c0_526 = arith.constant 0 : index
    %863 = vector.load %arg15[%c9_525, %c0_526] : memref<32x128xf32, #tpu.memory_space<vmem>>, vector<1x128xf32>
    tpu.vector_store %arg15[%c9_525, %c0_526], %862 {strides = array<i32>} : memref<32x128xf32, #tpu.memory_space<vmem>>, vector<1x128xf32>,
    %c10_527 = arith.constant 10 : index
    %864 = memref.load %arg2[%c10_527] : memref<32xi32, #tpu.memory_space<smem>>
    %865 = arith.index_cast %864 : i32 to index
    %c0_528 = arith.constant 0 : index
    %866 = vector.load %arg14[%865, %c0_528] : memref<16x128xf32, #tpu.memory_space<vmem>>, vector<1x128xf32>
    %c10_529 = arith.constant 10 : index
    %867 = memref.load %arg3[%c10_529] : memref<32xi32, #tpu.memory_space<smem>>
    %868 = arith.index_cast %867 : i32 to index
    %c0_530 = arith.constant 0 : index
    %869 = vector.load %arg13[%868, %c0_530] : memref<32x128xf32, #tpu.memory_space<vmem>>, vector<1x128xf32>
    %870 = arith.subf %866, %869 : vector<1x128xf32>
    %c10_531 = arith.constant 10 : index
    %c0_532 = arith.constant 0 : index
    %871 = vector.load %arg15[%c10_531, %c0_532] : memref<32x128xf32, #tpu.memory_space<vmem>>, vector<1x128xf32>
    tpu.vector_store %arg15[%c10_531, %c0_532], %870 {strides = array<i32>} : memref<32x128xf32, #tpu.memory_space<vmem>>, vector<1x128xf32>,
    %c11_533 = arith.constant 11 : index
    %872 = memref.load %arg2[%c11_533] : memref<32xi32, #tpu.memory_space<smem>>
    %873 = arith.index_cast %872 : i32 to index
    %c0_534 = arith.constant 0 : index
    %874 = vector.load %arg14[%873, %c0_534] : memref<16x128xf32, #tpu.memory_space<vmem>>, vector<1x128xf32>
    %c11_535 = arith.constant 11 : index
    %875 = memref.load %arg3[%c11_535] : memref<32xi32, #tpu.memory_space<smem>>
    %876 = arith.index_cast %875 : i32 to index
    %c0_536 = arith.constant 0 : index
    %877 = vector.load %arg13[%876, %c0_536] : memref<32x128xf32, #tpu.memory_space<vmem>>, vector<1x128xf32>
    %878 = arith.subf %874, %877 : vector<1x128xf32>
    %c11_537 = arith.constant 11 : index
    %c0_538 = arith.constant 0 : index
    %879 = vector.load %arg15[%c11_537, %c0_538] : memref<32x128xf32, #tpu.memory_space<vmem>>, vector<1x128xf32>
    tpu.vector_store %arg15[%c11_537, %c0_538], %878 {strides = array<i32>} : memref<32x128xf32, #tpu.memory_space<vmem>>, vector<1x128xf32>,
    %c12_539 = arith.constant 12 : index
    %880 = memref.load %arg2[%c12_539] : memref<32xi32, #tpu.memory_space<smem>>
    %881 = arith.index_cast %880 : i32 to index
    %c0_540 = arith.constant 0 : index
    %882 = vector.load %arg14[%881, %c0_540] : memref<16x128xf32, #tpu.memory_space<vmem>>, vector<1x128xf32>
    %c12_541 = arith.constant 12 : index
    %883 = memref.load %arg3[%c12_541] : memref<32xi32, #tpu.memory_space<smem>>
    %884 = arith.index_cast %883 : i32 to index
    %c0_542 = arith.constant 0 : index
    %885 = vector.load %arg13[%884, %c0_542] : memref<32x128xf32, #tpu.memory_space<vmem>>, vector<1x128xf32>
    %886 = arith.subf %882, %885 : vector<1x128xf32>
    %c12_543 = arith.constant 12 : index
    %c0_544 = arith.constant 0 : index
    %887 = vector.load %arg15[%c12_543, %c0_544] : memref<32x128xf32, #tpu.memory_space<vmem>>, vector<1x128xf32>
    tpu.vector_store %arg15[%c12_543, %c0_544], %886 {strides = array<i32>} : memref<32x128xf32, #tpu.memory_space<vmem>>, vector<1x128xf32>,
    %c13_545 = arith.constant 13 : index
    %888 = memref.load %arg2[%c13_545] : memref<32xi32, #tpu.memory_space<smem>>
    %889 = arith.index_cast %888 : i32 to index
    %c0_546 = arith.constant 0 : index
    %890 = vector.load %arg14[%889, %c0_546] : memref<16x128xf32, #tpu.memory_space<vmem>>, vector<1x128xf32>
    %c13_547 = arith.constant 13 : index
    %891 = memref.load %arg3[%c13_547] : memref<32xi32, #tpu.memory_space<smem>>
    %892 = arith.index_cast %891 : i32 to index
    %c0_548 = arith.constant 0 : index
    %893 = vector.load %arg13[%892, %c0_548] : memref<32x128xf32, #tpu.memory_space<vmem>>, vector<1x128xf32>
    %894 = arith.subf %890, %893 : vector<1x128xf32>
    %c13_549 = arith.constant 13 : index
    %c0_550 = arith.constant 0 : index
    %895 = vector.load %arg15[%c13_549, %c0_550] : memref<32x128xf32, #tpu.memory_space<vmem>>, vector<1x128xf32>
    tpu.vector_store %arg15[%c13_549, %c0_550], %894 {strides = array<i32>} : memref<32x128xf32, #tpu.memory_space<vmem>>, vector<1x128xf32>,
    %c14_551 = arith.constant 14 : index
    %896 = memref.load %arg2[%c14_551] : memref<32xi32, #tpu.memory_space<smem>>
    %897 = arith.index_cast %896 : i32 to index
    %c0_552 = arith.constant 0 : index
    %898 = vector.load %arg14[%897, %c0_552] : memref<16x128xf32, #tpu.memory_space<vmem>>, vector<1x128xf32>
    %c14_553 = arith.constant 14 : index
    %899 = memref.load %arg3[%c14_553] : memref<32xi32, #tpu.memory_space<smem>>
    %900 = arith.index_cast %899 : i32 to index
    %c0_554 = arith.constant 0 : index
    %901 = vector.load %arg13[%900, %c0_554] : memref<32x128xf32, #tpu.memory_space<vmem>>, vector<1x128xf32>
    %902 = arith.subf %898, %901 : vector<1x128xf32>
    %c14_555 = arith.constant 14 : index
    %c0_556 = arith.constant 0 : index
    %903 = vector.load %arg15[%c14_555, %c0_556] : memref<32x128xf32, #tpu.memory_space<vmem>>, vector<1x128xf32>
    tpu.vector_store %arg15[%c14_555, %c0_556], %902 {strides = array<i32>} : memref<32x128xf32, #tpu.memory_space<vmem>>, vector<1x128xf32>,
    %c15_557 = arith.constant 15 : index
    %904 = memref.load %arg2[%c15_557] : memref<32xi32, #tpu.memory_space<smem>>
    %905 = arith.index_cast %904 : i32 to index
    %c0_558 = arith.constant 0 : index
    %906 = vector.load %arg14[%905, %c0_558] : memref<16x128xf32, #tpu.memory_space<vmem>>, vector<1x128xf32>
    %c15_559 = arith.constant 15 : index
    %907 = memref.load %arg3[%c15_559] : memref<32xi32, #tpu.memory_space<smem>>
    %908 = arith.index_cast %907 : i32 to index
    %c0_560 = arith.constant 0 : index
    %909 = vector.load %arg13[%908, %c0_560] : memref<32x128xf32, #tpu.memory_space<vmem>>, vector<1x128xf32>
    %910 = arith.subf %906, %909 : vector<1x128xf32>
    %c15_561 = arith.constant 15 : index
    %c0_562 = arith.constant 0 : index
    %911 = vector.load %arg15[%c15_561, %c0_562] : memref<32x128xf32, #tpu.memory_space<vmem>>, vector<1x128xf32>
    tpu.vector_store %arg15[%c15_561, %c0_562], %910 {strides = array<i32>} : memref<32x128xf32, #tpu.memory_space<vmem>>, vector<1x128xf32>,
    %c16_563 = arith.constant 16 : index
    %912 = memref.load %arg2[%c16_563] : memref<32xi32, #tpu.memory_space<smem>>
    %913 = arith.index_cast %912 : i32 to index
    %c0_564 = arith.constant 0 : index
    %914 = vector.load %arg14[%913, %c0_564] : memref<16x128xf32, #tpu.memory_space<vmem>>, vector<1x128xf32>
    %c16_565 = arith.constant 16 : index
    %915 = memref.load %arg3[%c16_565] : memref<32xi32, #tpu.memory_space<smem>>
    %916 = arith.index_cast %915 : i32 to index
    %c0_566 = arith.constant 0 : index
    %917 = vector.load %arg13[%916, %c0_566] : memref<32x128xf32, #tpu.memory_space<vmem>>, vector<1x128xf32>
    %918 = arith.subf %914, %917 : vector<1x128xf32>
    %c16_567 = arith.constant 16 : index
    %c0_568 = arith.constant 0 : index
    %919 = vector.load %arg15[%c16_567, %c0_568] : memref<32x128xf32, #tpu.memory_space<vmem>>, vector<1x128xf32>
    tpu.vector_store %arg15[%c16_567, %c0_568], %918 {strides = array<i32>} : memref<32x128xf32, #tpu.memory_space<vmem>>, vector<1x128xf32>,
    %c17_569 = arith.constant 17 : index
    %920 = memref.load %arg2[%c17_569] : memref<32xi32, #tpu.memory_space<smem>>
    %921 = arith.index_cast %920 : i32 to index
    %c0_570 = arith.constant 0 : index
    %922 = vector.load %arg14[%921, %c0_570] : memref<16x128xf32, #tpu.memory_space<vmem>>, vector<1x128xf32>
    %c17_571 = arith.constant 17 : index
    %923 = memref.load %arg3[%c17_571] : memref<32xi32, #tpu.memory_space<smem>>
    %924 = arith.index_cast %923 : i32 to index
    %c0_572 = arith.constant 0 : index
    %925 = vector.load %arg13[%924, %c0_572] : memref<32x128xf32, #tpu.memory_space<vmem>>, vector<1x128xf32>
    %926 = arith.subf %922, %925 : vector<1x128xf32>
    %c17_573 = arith.constant 17 : index
    %c0_574 = arith.constant 0 : index
    %927 = vector.load %arg15[%c17_573, %c0_574] : memref<32x128xf32, #tpu.memory_space<vmem>>, vector<1x128xf32>
    tpu.vector_store %arg15[%c17_573, %c0_574], %926 {strides = array<i32>} : memref<32x128xf32, #tpu.memory_space<vmem>>, vector<1x128xf32>,
    %c18_575 = arith.constant 18 : index
    %928 = memref.load %arg2[%c18_575] : memref<32xi32, #tpu.memory_space<smem>>
    %929 = arith.index_cast %928 : i32 to index
    %c0_576 = arith.constant 0 : index
    %930 = vector.load %arg14[%929, %c0_576] : memref<16x128xf32, #tpu.memory_space<vmem>>, vector<1x128xf32>
    %c18_577 = arith.constant 18 : index
    %931 = memref.load %arg3[%c18_577] : memref<32xi32, #tpu.memory_space<smem>>
    %932 = arith.index_cast %931 : i32 to index
    %c0_578 = arith.constant 0 : index
    %933 = vector.load %arg13[%932, %c0_578] : memref<32x128xf32, #tpu.memory_space<vmem>>, vector<1x128xf32>
    %934 = arith.subf %930, %933 : vector<1x128xf32>
    %c18_579 = arith.constant 18 : index
    %c0_580 = arith.constant 0 : index
    %935 = vector.load %arg15[%c18_579, %c0_580] : memref<32x128xf32, #tpu.memory_space<vmem>>, vector<1x128xf32>
    tpu.vector_store %arg15[%c18_579, %c0_580], %934 {strides = array<i32>} : memref<32x128xf32, #tpu.memory_space<vmem>>, vector<1x128xf32>,
    %c19_581 = arith.constant 19 : index
    %936 = memref.load %arg2[%c19_581] : memref<32xi32, #tpu.memory_space<smem>>
    %937 = arith.index_cast %936 : i32 to index
    %c0_582 = arith.constant 0 : index
    %938 = vector.load %arg14[%937, %c0_582] : memref<16x128xf32, #tpu.memory_space<vmem>>, vector<1x128xf32>
    %c19_583 = arith.constant 19 : index
    %939 = memref.load %arg3[%c19_583] : memref<32xi32, #tpu.memory_space<smem>>
    %940 = arith.index_cast %939 : i32 to index
    %c0_584 = arith.constant 0 : index
    %941 = vector.load %arg13[%940, %c0_584] : memref<32x128xf32, #tpu.memory_space<vmem>>, vector<1x128xf32>
    %942 = arith.subf %938, %941 : vector<1x128xf32>
    %c19_585 = arith.constant 19 : index
    %c0_586 = arith.constant 0 : index
    %943 = vector.load %arg15[%c19_585, %c0_586] : memref<32x128xf32, #tpu.memory_space<vmem>>, vector<1x128xf32>
    tpu.vector_store %arg15[%c19_585, %c0_586], %942 {strides = array<i32>} : memref<32x128xf32, #tpu.memory_space<vmem>>, vector<1x128xf32>,
    %c20_587 = arith.constant 20 : index
    %944 = memref.load %arg2[%c20_587] : memref<32xi32, #tpu.memory_space<smem>>
    %945 = arith.index_cast %944 : i32 to index
    %c0_588 = arith.constant 0 : index
    %946 = vector.load %arg14[%945, %c0_588] : memref<16x128xf32, #tpu.memory_space<vmem>>, vector<1x128xf32>
    %c20_589 = arith.constant 20 : index
    %947 = memref.load %arg3[%c20_589] : memref<32xi32, #tpu.memory_space<smem>>
    %948 = arith.index_cast %947 : i32 to index
    %c0_590 = arith.constant 0 : index
    %949 = vector.load %arg13[%948, %c0_590] : memref<32x128xf32, #tpu.memory_space<vmem>>, vector<1x128xf32>
    %950 = arith.subf %946, %949 : vector<1x128xf32>
    %c20_591 = arith.constant 20 : index
    %c0_592 = arith.constant 0 : index
    %951 = vector.load %arg15[%c20_591, %c0_592] : memref<32x128xf32, #tpu.memory_space<vmem>>, vector<1x128xf32>
    tpu.vector_store %arg15[%c20_591, %c0_592], %950 {strides = array<i32>} : memref<32x128xf32, #tpu.memory_space<vmem>>, vector<1x128xf32>,
    %c21_593 = arith.constant 21 : index
    %952 = memref.load %arg2[%c21_593] : memref<32xi32, #tpu.memory_space<smem>>
    %953 = arith.index_cast %952 : i32 to index
    %c0_594 = arith.constant 0 : index
    %954 = vector.load %arg14[%953, %c0_594] : memref<16x128xf32, #tpu.memory_space<vmem>>, vector<1x128xf32>
    %c21_595 = arith.constant 21 : index
    %955 = memref.load %arg3[%c21_595] : memref<32xi32, #tpu.memory_space<smem>>
    %956 = arith.index_cast %955 : i32 to index
    %c0_596 = arith.constant 0 : index
    %957 = vector.load %arg13[%956, %c0_596] : memref<32x128xf32, #tpu.memory_space<vmem>>, vector<1x128xf32>
    %958 = arith.subf %954, %957 : vector<1x128xf32>
    %c21_597 = arith.constant 21 : index
    %c0_598 = arith.constant 0 : index
    %959 = vector.load %arg15[%c21_597, %c0_598] : memref<32x128xf32, #tpu.memory_space<vmem>>, vector<1x128xf32>
    tpu.vector_store %arg15[%c21_597, %c0_598], %958 {strides = array<i32>} : memref<32x128xf32, #tpu.memory_space<vmem>>, vector<1x128xf32>,
    %c22_599 = arith.constant 22 : index
    %960 = memref.load %arg2[%c22_599] : memref<32xi32, #tpu.memory_space<smem>>
    %961 = arith.index_cast %960 : i32 to index
    %c0_600 = arith.constant 0 : index
    %962 = vector.load %arg14[%961, %c0_600] : memref<16x128xf32, #tpu.memory_space<vmem>>, vector<1x128xf32>
    %c22_601 = arith.constant 22 : index
    %963 = memref.load %arg3[%c22_601] : memref<32xi32, #tpu.memory_space<smem>>
    %964 = arith.index_cast %963 : i32 to index
    %c0_602 = arith.constant 0 : index
    %965 = vector.load %arg13[%964, %c0_602] : memref<32x128xf32, #tpu.memory_space<vmem>>, vector<1x128xf32>
    %966 = arith.subf %962, %965 : vector<1x128xf32>
    %c22_603 = arith.constant 22 : index
    %c0_604 = arith.constant 0 : index
    %967 = vector.load %arg15[%c22_603, %c0_604] : memref<32x128xf32, #tpu.memory_space<vmem>>, vector<1x128xf32>
    tpu.vector_store %arg15[%c22_603, %c0_604], %966 {strides = array<i32>} : memref<32x128xf32, #tpu.memory_space<vmem>>, vector<1x128xf32>,
    %c23_605 = arith.constant 23 : index
    %968 = memref.load %arg2[%c23_605] : memref<32xi32, #tpu.memory_space<smem>>
    %969 = arith.index_cast %968 : i32 to index
    %c0_606 = arith.constant 0 : index
    %970 = vector.load %arg14[%969, %c0_606] : memref<16x128xf32, #tpu.memory_space<vmem>>, vector<1x128xf32>
    %c23_607 = arith.constant 23 : index
    %971 = memref.load %arg3[%c23_607] : memref<32xi32, #tpu.memory_space<smem>>
    %972 = arith.index_cast %971 : i32 to index
    %c0_608 = arith.constant 0 : index
    %973 = vector.load %arg13[%972, %c0_608] : memref<32x128xf32, #tpu.memory_space<vmem>>, vector<1x128xf32>
    %974 = arith.subf %970, %973 : vector<1x128xf32>
    %c23_609 = arith.constant 23 : index
    %c0_610 = arith.constant 0 : index
    %975 = vector.load %arg15[%c23_609, %c0_610] : memref<32x128xf32, #tpu.memory_space<vmem>>, vector<1x128xf32>
    tpu.vector_store %arg15[%c23_609, %c0_610], %974 {strides = array<i32>} : memref<32x128xf32, #tpu.memory_space<vmem>>, vector<1x128xf32>,
    %c24_611 = arith.constant 24 : index
    %976 = memref.load %arg2[%c24_611] : memref<32xi32, #tpu.memory_space<smem>>
    %977 = arith.index_cast %976 : i32 to index
    %c0_612 = arith.constant 0 : index
    %978 = vector.load %arg14[%977, %c0_612] : memref<16x128xf32, #tpu.memory_space<vmem>>, vector<1x128xf32>
    %c24_613 = arith.constant 24 : index
    %979 = memref.load %arg3[%c24_613] : memref<32xi32, #tpu.memory_space<smem>>
    %980 = arith.index_cast %979 : i32 to index
    %c0_614 = arith.constant 0 : index
    %981 = vector.load %arg13[%980, %c0_614] : memref<32x128xf32, #tpu.memory_space<vmem>>, vector<1x128xf32>
    %982 = arith.subf %978, %981 : vector<1x128xf32>
    %c24_615 = arith.constant 24 : index
    %c0_616 = arith.constant 0 : index
    %983 = vector.load %arg15[%c24_615, %c0_616] : memref<32x128xf32, #tpu.memory_space<vmem>>, vector<1x128xf32>
    tpu.vector_store %arg15[%c24_615, %c0_616], %982 {strides = array<i32>} : memref<32x128xf32, #tpu.memory_space<vmem>>, vector<1x128xf32>,
    %c25_617 = arith.constant 25 : index
    %984 = memref.load %arg2[%c25_617] : memref<32xi32, #tpu.memory_space<smem>>
    %985 = arith.index_cast %984 : i32 to index
    %c0_618 = arith.constant 0 : index
    %986 = vector.load %arg14[%985, %c0_618] : memref<16x128xf32, #tpu.memory_space<vmem>>, vector<1x128xf32>
    %c25_619 = arith.constant 25 : index
    %987 = memref.load %arg3[%c25_619] : memref<32xi32, #tpu.memory_space<smem>>
    %988 = arith.index_cast %987 : i32 to index
    %c0_620 = arith.constant 0 : index
    %989 = vector.load %arg13[%988, %c0_620] : memref<32x128xf32, #tpu.memory_space<vmem>>, vector<1x128xf32>
    %990 = arith.subf %986, %989 : vector<1x128xf32>
    %c25_621 = arith.constant 25 : index
    %c0_622 = arith.constant 0 : index
    %991 = vector.load %arg15[%c25_621, %c0_622] : memref<32x128xf32, #tpu.memory_space<vmem>>, vector<1x128xf32>
    tpu.vector_store %arg15[%c25_621, %c0_622], %990 {strides = array<i32>} : memref<32x128xf32, #tpu.memory_space<vmem>>, vector<1x128xf32>,
    %c26_623 = arith.constant 26 : index
    %992 = memref.load %arg2[%c26_623] : memref<32xi32, #tpu.memory_space<smem>>
    %993 = arith.index_cast %992 : i32 to index
    %c0_624 = arith.constant 0 : index
    %994 = vector.load %arg14[%993, %c0_624] : memref<16x128xf32, #tpu.memory_space<vmem>>, vector<1x128xf32>
    %c26_625 = arith.constant 26 : index
    %995 = memref.load %arg3[%c26_625] : memref<32xi32, #tpu.memory_space<smem>>
    %996 = arith.index_cast %995 : i32 to index
    %c0_626 = arith.constant 0 : index
    %997 = vector.load %arg13[%996, %c0_626] : memref<32x128xf32, #tpu.memory_space<vmem>>, vector<1x128xf32>
    %998 = arith.subf %994, %997 : vector<1x128xf32>
    %c26_627 = arith.constant 26 : index
    %c0_628 = arith.constant 0 : index
    %999 = vector.load %arg15[%c26_627, %c0_628] : memref<32x128xf32, #tpu.memory_space<vmem>>, vector<1x128xf32>
    tpu.vector_store %arg15[%c26_627, %c0_628], %998 {strides = array<i32>} : memref<32x128xf32, #tpu.memory_space<vmem>>, vector<1x128xf32>,
    %c27_629 = arith.constant 27 : index
    %1000 = memref.load %arg2[%c27_629] : memref<32xi32, #tpu.memory_space<smem>>
    %1001 = arith.index_cast %1000 : i32 to index
    %c0_630 = arith.constant 0 : index
    %1002 = vector.load %arg14[%1001, %c0_630] : memref<16x128xf32, #tpu.memory_space<vmem>>, vector<1x128xf32>
    %c27_631 = arith.constant 27 : index
    %1003 = memref.load %arg3[%c27_631] : memref<32xi32, #tpu.memory_space<smem>>
    %1004 = arith.index_cast %1003 : i32 to index
    %c0_632 = arith.constant 0 : index
    %1005 = vector.load %arg13[%1004, %c0_632] : memref<32x128xf32, #tpu.memory_space<vmem>>, vector<1x128xf32>
    %1006 = arith.subf %1002, %1005 : vector<1x128xf32>
    %c27_633 = arith.constant 27 : index
    %c0_634 = arith.constant 0 : index
    %1007 = vector.load %arg15[%c27_633, %c0_634] : memref<32x128xf32, #tpu.memory_space<vmem>>, vector<1x128xf32>
    tpu.vector_store %arg15[%c27_633, %c0_634], %1006 {strides = array<i32>} : memref<32x128xf32, #tpu.memory_space<vmem>>, vector<1x128xf32>,
    %c28_635 = arith.constant 28 : index
    %1008 = memref.load %arg2[%c28_635] : memref<32xi32, #tpu.memory_space<smem>>
    %1009 = arith.index_cast %1008 : i32 to index
    %c0_636 = arith.constant 0 : index
    %1010 = vector.load %arg14[%1009, %c0_636] : memref<16x128xf32, #tpu.memory_space<vmem>>, vector<1x128xf32>
    %c28_637 = arith.constant 28 : index
    %1011 = memref.load %arg3[%c28_637] : memref<32xi32, #tpu.memory_space<smem>>
    %1012 = arith.index_cast %1011 : i32 to index
    %c0_638 = arith.constant 0 : index
    %1013 = vector.load %arg13[%1012, %c0_638] : memref<32x128xf32, #tpu.memory_space<vmem>>, vector<1x128xf32>
    %1014 = arith.subf %1010, %1013 : vector<1x128xf32>
    %c28_639 = arith.constant 28 : index
    %c0_640 = arith.constant 0 : index
    %1015 = vector.load %arg15[%c28_639, %c0_640] : memref<32x128xf32, #tpu.memory_space<vmem>>, vector<1x128xf32>
    tpu.vector_store %arg15[%c28_639, %c0_640], %1014 {strides = array<i32>} : memref<32x128xf32, #tpu.memory_space<vmem>>, vector<1x128xf32>,
    %c29_641 = arith.constant 29 : index
    %1016 = memref.load %arg2[%c29_641] : memref<32xi32, #tpu.memory_space<smem>>
    %1017 = arith.index_cast %1016 : i32 to index
    %c0_642 = arith.constant 0 : index
    %1018 = vector.load %arg14[%1017, %c0_642] : memref<16x128xf32, #tpu.memory_space<vmem>>, vector<1x128xf32>
    %c29_643 = arith.constant 29 : index
    %1019 = memref.load %arg3[%c29_643] : memref<32xi32, #tpu.memory_space<smem>>
    %1020 = arith.index_cast %1019 : i32 to index
    %c0_644 = arith.constant 0 : index
    %1021 = vector.load %arg13[%1020, %c0_644] : memref<32x128xf32, #tpu.memory_space<vmem>>, vector<1x128xf32>
    %1022 = arith.subf %1018, %1021 : vector<1x128xf32>
    %c29_645 = arith.constant 29 : index
    %c0_646 = arith.constant 0 : index
    %1023 = vector.load %arg15[%c29_645, %c0_646] : memref<32x128xf32, #tpu.memory_space<vmem>>, vector<1x128xf32>
    tpu.vector_store %arg15[%c29_645, %c0_646], %1022 {strides = array<i32>} : memref<32x128xf32, #tpu.memory_space<vmem>>, vector<1x128xf32>,
    %c30_647 = arith.constant 30 : index
    %1024 = memref.load %arg2[%c30_647] : memref<32xi32, #tpu.memory_space<smem>>
    %1025 = arith.index_cast %1024 : i32 to index
    %c0_648 = arith.constant 0 : index
    %1026 = vector.load %arg14[%1025, %c0_648] : memref<16x128xf32, #tpu.memory_space<vmem>>, vector<1x128xf32>
    %c30_649 = arith.constant 30 : index
    %1027 = memref.load %arg3[%c30_649] : memref<32xi32, #tpu.memory_space<smem>>
    %1028 = arith.index_cast %1027 : i32 to index
    %c0_650 = arith.constant 0 : index
    %1029 = vector.load %arg13[%1028, %c0_650] : memref<32x128xf32, #tpu.memory_space<vmem>>, vector<1x128xf32>
    %1030 = arith.subf %1026, %1029 : vector<1x128xf32>
    %c30_651 = arith.constant 30 : index
    %c0_652 = arith.constant 0 : index
    %1031 = vector.load %arg15[%c30_651, %c0_652] : memref<32x128xf32, #tpu.memory_space<vmem>>, vector<1x128xf32>
    tpu.vector_store %arg15[%c30_651, %c0_652], %1030 {strides = array<i32>} : memref<32x128xf32, #tpu.memory_space<vmem>>, vector<1x128xf32>,
    %c31_653 = arith.constant 31 : index
    %1032 = memref.load %arg2[%c31_653] : memref<32xi32, #tpu.memory_space<smem>>
    %1033 = arith.index_cast %1032 : i32 to index
    %c0_654 = arith.constant 0 : index
    %1034 = vector.load %arg14[%1033, %c0_654] : memref<16x128xf32, #tpu.memory_space<vmem>>, vector<1x128xf32>
    %c31_655 = arith.constant 31 : index
    %1035 = memref.load %arg3[%c31_655] : memref<32xi32, #tpu.memory_space<smem>>
    %1036 = arith.index_cast %1035 : i32 to index
    %c0_656 = arith.constant 0 : index
    %1037 = vector.load %arg13[%1036, %c0_656] : memref<32x128xf32, #tpu.memory_space<vmem>>, vector<1x128xf32>
    %1038 = arith.subf %1034, %1037 : vector<1x128xf32>
    %c31_657 = arith.constant 31 : index
    %c0_658 = arith.constant 0 : index
    %1039 = vector.load %arg15[%c31_657, %c0_658] : memref<32x128xf32, #tpu.memory_space<vmem>>, vector<1x128xf32>
    tpu.vector_store %arg15[%c31_657, %c0_658], %1038 {strides = array<i32>} : memref<32x128xf32, #tpu.memory_space<vmem>>, vector<1x128xf32>,
    %c0_659 = arith.constant 0 : index
    %c0_660 = arith.constant 0 : index
    %1040 = vector.load %arg15[%c0_659, %c0_660] : memref<32x128xf32, #tpu.memory_space<vmem>>, vector<32x128xf32>
    %1041 = arith.truncf %1040 : vector<32x128xf32> to vector<32x128xbf16>
    %c0_661 = arith.constant 0 : index
    %c0_662 = arith.constant 0 : index
    %1042 = vector.load %arg7[%c0_661, %c0_662] : memref<128x128xbf16, #tpu.memory_space<vmem>>, vector<128x128xbf16>
    %cst_663 = arith.constant dense<0.000000e+00> : vector<32x128xf32>
    %1043 = tpu.matmul %1041, %1042, %cst_663 {dimension_numbers = #tpu.dot_dimension_numbers<[1], [0], [0], [1], [0, 0, 1, 1], [], []>} : vector<32x128xbf16>, vector<128x128xbf16>, vector<32x128xf32> -> vector<32x128xf32>
    %c0_664 = arith.constant 0 : index
    %c0_665 = arith.constant 0 : index
    %1044 = vector.load %arg12[%c0_664, %c0_665] : memref<32x128xf32, #tpu.memory_space<vmem>>, vector<32x128xf32>
    %1045 = arith.addf %1044, %1043 : vector<32x128xf32>
    %cst_666 = arith.constant 0.000000e+00 : f32
    %1046 = vector.broadcast %cst_666 : f32 to vector<32x128xf32>
    %1047 = arith.maximumf %1045, %1046 : vector<32x128xf32>
    %c0_667 = arith.constant 0 : index
    %c0_668 = arith.constant 0 : index
    %1048 = vector.load %arg13[%c0_667, %c0_668] : memref<32x128xf32, #tpu.memory_space<vmem>>, vector<32x128xf32>
    tpu.vector_store %arg13[%c0_667, %c0_668], %1047 {strides = array<i32>} : memref<32x128xf32, #tpu.memory_space<vmem>>, vector<32x128xf32>,
    %c0_669 = arith.constant 0 : index
    %1049 = memref.load %arg1[%c0_669] : memref<64xi32, #tpu.memory_space<smem>>
    %1050 = arith.index_cast %1049 : i32 to index
    %c0_670 = arith.constant 0 : index
    %1051 = vector.load %arg13[%1050, %c0_670] : memref<32x128xf32, #tpu.memory_space<vmem>>, vector<1x128xf32>
    %c1_671 = arith.constant 1 : index
    %1052 = memref.load %arg1[%c1_671] : memref<64xi32, #tpu.memory_space<smem>>
    %1053 = arith.index_cast %1052 : i32 to index
    %c0_672 = arith.constant 0 : index
    %1054 = vector.load %arg13[%1053, %c0_672] : memref<32x128xf32, #tpu.memory_space<vmem>>, vector<1x128xf32>
    %1055 = arith.addf %1051, %1054 : vector<1x128xf32>
    %c2_673 = arith.constant 2 : index
    %1056 = memref.load %arg1[%c2_673] : memref<64xi32, #tpu.memory_space<smem>>
    %1057 = arith.index_cast %1056 : i32 to index
    %c0_674 = arith.constant 0 : index
    %1058 = vector.load %arg13[%1057, %c0_674] : memref<32x128xf32, #tpu.memory_space<vmem>>, vector<1x128xf32>
    %1059 = arith.addf %1055, %1058 : vector<1x128xf32>
    %c3_675 = arith.constant 3 : index
    %1060 = memref.load %arg1[%c3_675] : memref<64xi32, #tpu.memory_space<smem>>
    %1061 = arith.index_cast %1060 : i32 to index
    %c0_676 = arith.constant 0 : index
    %1062 = vector.load %arg13[%1061, %c0_676] : memref<32x128xf32, #tpu.memory_space<vmem>>, vector<1x128xf32>
    %1063 = arith.addf %1059, %1062 : vector<1x128xf32>
    %c0_677 = arith.constant 0 : index
    %c0_678 = arith.constant 0 : index
    %1064 = vector.load %arg14[%c0_677, %c0_678] : memref<16x128xf32, #tpu.memory_space<vmem>>, vector<1x128xf32>
    tpu.vector_store %arg14[%c0_677, %c0_678], %1063 {strides = array<i32>} : memref<16x128xf32, #tpu.memory_space<vmem>>, vector<1x128xf32>,
    %c4_679 = arith.constant 4 : index
    %1065 = memref.load %arg1[%c4_679] : memref<64xi32, #tpu.memory_space<smem>>
    %1066 = arith.index_cast %1065 : i32 to index
    %c0_680 = arith.constant 0 : index
    %1067 = vector.load %arg13[%1066, %c0_680] : memref<32x128xf32, #tpu.memory_space<vmem>>, vector<1x128xf32>
    %c5_681 = arith.constant 5 : index
    %1068 = memref.load %arg1[%c5_681] : memref<64xi32, #tpu.memory_space<smem>>
    %1069 = arith.index_cast %1068 : i32 to index
    %c0_682 = arith.constant 0 : index
    %1070 = vector.load %arg13[%1069, %c0_682] : memref<32x128xf32, #tpu.memory_space<vmem>>, vector<1x128xf32>
    %1071 = arith.addf %1067, %1070 : vector<1x128xf32>
    %c6_683 = arith.constant 6 : index
    %1072 = memref.load %arg1[%c6_683] : memref<64xi32, #tpu.memory_space<smem>>
    %1073 = arith.index_cast %1072 : i32 to index
    %c0_684 = arith.constant 0 : index
    %1074 = vector.load %arg13[%1073, %c0_684] : memref<32x128xf32, #tpu.memory_space<vmem>>, vector<1x128xf32>
    %1075 = arith.addf %1071, %1074 : vector<1x128xf32>
    %c7_685 = arith.constant 7 : index
    %1076 = memref.load %arg1[%c7_685] : memref<64xi32, #tpu.memory_space<smem>>
    %1077 = arith.index_cast %1076 : i32 to index
    %c0_686 = arith.constant 0 : index
    %1078 = vector.load %arg13[%1077, %c0_686] : memref<32x128xf32, #tpu.memory_space<vmem>>, vector<1x128xf32>
    %1079 = arith.addf %1075, %1078 : vector<1x128xf32>
    %c1_687 = arith.constant 1 : index
    %c0_688 = arith.constant 0 : index
    %1080 = vector.load %arg14[%c1_687, %c0_688] : memref<16x128xf32, #tpu.memory_space<vmem>>, vector<1x128xf32>
    tpu.vector_store %arg14[%c1_687, %c0_688], %1079 {strides = array<i32>} : memref<16x128xf32, #tpu.memory_space<vmem>>, vector<1x128xf32>,
    %c8_689 = arith.constant 8 : index
    %1081 = memref.load %arg1[%c8_689] : memref<64xi32, #tpu.memory_space<smem>>
    %1082 = arith.index_cast %1081 : i32 to index
    %c0_690 = arith.constant 0 : index
    %1083 = vector.load %arg13[%1082, %c0_690] : memref<32x128xf32, #tpu.memory_space<vmem>>, vector<1x128xf32>
    %c9_691 = arith.constant 9 : index
    %1084 = memref.load %arg1[%c9_691] : memref<64xi32, #tpu.memory_space<smem>>
    %1085 = arith.index_cast %1084 : i32 to index
    %c0_692 = arith.constant 0 : index
    %1086 = vector.load %arg13[%1085, %c0_692] : memref<32x128xf32, #tpu.memory_space<vmem>>, vector<1x128xf32>
    %1087 = arith.addf %1083, %1086 : vector<1x128xf32>
    %c10_693 = arith.constant 10 : index
    %1088 = memref.load %arg1[%c10_693] : memref<64xi32, #tpu.memory_space<smem>>
    %1089 = arith.index_cast %1088 : i32 to index
    %c0_694 = arith.constant 0 : index
    %1090 = vector.load %arg13[%1089, %c0_694] : memref<32x128xf32, #tpu.memory_space<vmem>>, vector<1x128xf32>
    %1091 = arith.addf %1087, %1090 : vector<1x128xf32>
    %c11_695 = arith.constant 11 : index
    %1092 = memref.load %arg1[%c11_695] : memref<64xi32, #tpu.memory_space<smem>>
    %1093 = arith.index_cast %1092 : i32 to index
    %c0_696 = arith.constant 0 : index
    %1094 = vector.load %arg13[%1093, %c0_696] : memref<32x128xf32, #tpu.memory_space<vmem>>, vector<1x128xf32>
    %1095 = arith.addf %1091, %1094 : vector<1x128xf32>
    %c2_697 = arith.constant 2 : index
    %c0_698 = arith.constant 0 : index
    %1096 = vector.load %arg14[%c2_697, %c0_698] : memref<16x128xf32, #tpu.memory_space<vmem>>, vector<1x128xf32>
    tpu.vector_store %arg14[%c2_697, %c0_698], %1095 {strides = array<i32>} : memref<16x128xf32, #tpu.memory_space<vmem>>, vector<1x128xf32>,
    %c12_699 = arith.constant 12 : index
    %1097 = memref.load %arg1[%c12_699] : memref<64xi32, #tpu.memory_space<smem>>
    %1098 = arith.index_cast %1097 : i32 to index
    %c0_700 = arith.constant 0 : index
    %1099 = vector.load %arg13[%1098, %c0_700] : memref<32x128xf32, #tpu.memory_space<vmem>>, vector<1x128xf32>
    %c13_701 = arith.constant 13 : index
    %1100 = memref.load %arg1[%c13_701] : memref<64xi32, #tpu.memory_space<smem>>
    %1101 = arith.index_cast %1100 : i32 to index
    %c0_702 = arith.constant 0 : index
    %1102 = vector.load %arg13[%1101, %c0_702] : memref<32x128xf32, #tpu.memory_space<vmem>>, vector<1x128xf32>
    %1103 = arith.addf %1099, %1102 : vector<1x128xf32>
    %c14_703 = arith.constant 14 : index
    %1104 = memref.load %arg1[%c14_703] : memref<64xi32, #tpu.memory_space<smem>>
    %1105 = arith.index_cast %1104 : i32 to index
    %c0_704 = arith.constant 0 : index
    %1106 = vector.load %arg13[%1105, %c0_704] : memref<32x128xf32, #tpu.memory_space<vmem>>, vector<1x128xf32>
    %1107 = arith.addf %1103, %1106 : vector<1x128xf32>
    %c15_705 = arith.constant 15 : index
    %1108 = memref.load %arg1[%c15_705] : memref<64xi32, #tpu.memory_space<smem>>
    %1109 = arith.index_cast %1108 : i32 to index
    %c0_706 = arith.constant 0 : index
    %1110 = vector.load %arg13[%1109, %c0_706] : memref<32x128xf32, #tpu.memory_space<vmem>>, vector<1x128xf32>
    %1111 = arith.addf %1107, %1110 : vector<1x128xf32>
    %c3_707 = arith.constant 3 : index
    %c0_708 = arith.constant 0 : index
    %1112 = vector.load %arg14[%c3_707, %c0_708] : memref<16x128xf32, #tpu.memory_space<vmem>>, vector<1x128xf32>
    tpu.vector_store %arg14[%c3_707, %c0_708], %1111 {strides = array<i32>} : memref<16x128xf32, #tpu.memory_space<vmem>>, vector<1x128xf32>,
    %c16_709 = arith.constant 16 : index
    %1113 = memref.load %arg1[%c16_709] : memref<64xi32, #tpu.memory_space<smem>>
    %1114 = arith.index_cast %1113 : i32 to index
    %c0_710 = arith.constant 0 : index
    %1115 = vector.load %arg13[%1114, %c0_710] : memref<32x128xf32, #tpu.memory_space<vmem>>, vector<1x128xf32>
    %c17_711 = arith.constant 17 : index
    %1116 = memref.load %arg1[%c17_711] : memref<64xi32, #tpu.memory_space<smem>>
    %1117 = arith.index_cast %1116 : i32 to index
    %c0_712 = arith.constant 0 : index
    %1118 = vector.load %arg13[%1117, %c0_712] : memref<32x128xf32, #tpu.memory_space<vmem>>, vector<1x128xf32>
    %1119 = arith.addf %1115, %1118 : vector<1x128xf32>
    %c18_713 = arith.constant 18 : index
    %1120 = memref.load %arg1[%c18_713] : memref<64xi32, #tpu.memory_space<smem>>
    %1121 = arith.index_cast %1120 : i32 to index
    %c0_714 = arith.constant 0 : index
    %1122 = vector.load %arg13[%1121, %c0_714] : memref<32x128xf32, #tpu.memory_space<vmem>>, vector<1x128xf32>
    %1123 = arith.addf %1119, %1122 : vector<1x128xf32>
    %c19_715 = arith.constant 19 : index
    %1124 = memref.load %arg1[%c19_715] : memref<64xi32, #tpu.memory_space<smem>>
    %1125 = arith.index_cast %1124 : i32 to index
    %c0_716 = arith.constant 0 : index
    %1126 = vector.load %arg13[%1125, %c0_716] : memref<32x128xf32, #tpu.memory_space<vmem>>, vector<1x128xf32>
    %1127 = arith.addf %1123, %1126 : vector<1x128xf32>
    %c4_717 = arith.constant 4 : index
    %c0_718 = arith.constant 0 : index
    %1128 = vector.load %arg14[%c4_717, %c0_718] : memref<16x128xf32, #tpu.memory_space<vmem>>, vector<1x128xf32>
    tpu.vector_store %arg14[%c4_717, %c0_718], %1127 {strides = array<i32>} : memref<16x128xf32, #tpu.memory_space<vmem>>, vector<1x128xf32>,
    %c20_719 = arith.constant 20 : index
    %1129 = memref.load %arg1[%c20_719] : memref<64xi32, #tpu.memory_space<smem>>
    %1130 = arith.index_cast %1129 : i32 to index
    %c0_720 = arith.constant 0 : index
    %1131 = vector.load %arg13[%1130, %c0_720] : memref<32x128xf32, #tpu.memory_space<vmem>>, vector<1x128xf32>
    %c21_721 = arith.constant 21 : index
    %1132 = memref.load %arg1[%c21_721] : memref<64xi32, #tpu.memory_space<smem>>
    %1133 = arith.index_cast %1132 : i32 to index
    %c0_722 = arith.constant 0 : index
    %1134 = vector.load %arg13[%1133, %c0_722] : memref<32x128xf32, #tpu.memory_space<vmem>>, vector<1x128xf32>
    %1135 = arith.addf %1131, %1134 : vector<1x128xf32>
    %c22_723 = arith.constant 22 : index
    %1136 = memref.load %arg1[%c22_723] : memref<64xi32, #tpu.memory_space<smem>>
    %1137 = arith.index_cast %1136 : i32 to index
    %c0_724 = arith.constant 0 : index
    %1138 = vector.load %arg13[%1137, %c0_724] : memref<32x128xf32, #tpu.memory_space<vmem>>, vector<1x128xf32>
    %1139 = arith.addf %1135, %1138 : vector<1x128xf32>
    %c23_725 = arith.constant 23 : index
    %1140 = memref.load %arg1[%c23_725] : memref<64xi32, #tpu.memory_space<smem>>
    %1141 = arith.index_cast %1140 : i32 to index
    %c0_726 = arith.constant 0 : index
    %1142 = vector.load %arg13[%1141, %c0_726] : memref<32x128xf32, #tpu.memory_space<vmem>>, vector<1x128xf32>
    %1143 = arith.addf %1139, %1142 : vector<1x128xf32>
    %c5_727 = arith.constant 5 : index
    %c0_728 = arith.constant 0 : index
    %1144 = vector.load %arg14[%c5_727, %c0_728] : memref<16x128xf32, #tpu.memory_space<vmem>>, vector<1x128xf32>
    tpu.vector_store %arg14[%c5_727, %c0_728], %1143 {strides = array<i32>} : memref<16x128xf32, #tpu.memory_space<vmem>>, vector<1x128xf32>,
    %c24_729 = arith.constant 24 : index
    %1145 = memref.load %arg1[%c24_729] : memref<64xi32, #tpu.memory_space<smem>>
    %1146 = arith.index_cast %1145 : i32 to index
    %c0_730 = arith.constant 0 : index
    %1147 = vector.load %arg13[%1146, %c0_730] : memref<32x128xf32, #tpu.memory_space<vmem>>, vector<1x128xf32>
    %c25_731 = arith.constant 25 : index
    %1148 = memref.load %arg1[%c25_731] : memref<64xi32, #tpu.memory_space<smem>>
    %1149 = arith.index_cast %1148 : i32 to index
    %c0_732 = arith.constant 0 : index
    %1150 = vector.load %arg13[%1149, %c0_732] : memref<32x128xf32, #tpu.memory_space<vmem>>, vector<1x128xf32>
    %1151 = arith.addf %1147, %1150 : vector<1x128xf32>
    %c26_733 = arith.constant 26 : index
    %1152 = memref.load %arg1[%c26_733] : memref<64xi32, #tpu.memory_space<smem>>
    %1153 = arith.index_cast %1152 : i32 to index
    %c0_734 = arith.constant 0 : index
    %1154 = vector.load %arg13[%1153, %c0_734] : memref<32x128xf32, #tpu.memory_space<vmem>>, vector<1x128xf32>
    %1155 = arith.addf %1151, %1154 : vector<1x128xf32>
    %c27_735 = arith.constant 27 : index
    %1156 = memref.load %arg1[%c27_735] : memref<64xi32, #tpu.memory_space<smem>>
    %1157 = arith.index_cast %1156 : i32 to index
    %c0_736 = arith.constant 0 : index
    %1158 = vector.load %arg13[%1157, %c0_736] : memref<32x128xf32, #tpu.memory_space<vmem>>, vector<1x128xf32>
    %1159 = arith.addf %1155, %1158 : vector<1x128xf32>
    %c6_737 = arith.constant 6 : index
    %c0_738 = arith.constant 0 : index
    %1160 = vector.load %arg14[%c6_737, %c0_738] : memref<16x128xf32, #tpu.memory_space<vmem>>, vector<1x128xf32>
    tpu.vector_store %arg14[%c6_737, %c0_738], %1159 {strides = array<i32>} : memref<16x128xf32, #tpu.memory_space<vmem>>, vector<1x128xf32>,
    %c28_739 = arith.constant 28 : index
    %1161 = memref.load %arg1[%c28_739] : memref<64xi32, #tpu.memory_space<smem>>
    %1162 = arith.index_cast %1161 : i32 to index
    %c0_740 = arith.constant 0 : index
    %1163 = vector.load %arg13[%1162, %c0_740] : memref<32x128xf32, #tpu.memory_space<vmem>>, vector<1x128xf32>
    %c29_741 = arith.constant 29 : index
    %1164 = memref.load %arg1[%c29_741] : memref<64xi32, #tpu.memory_space<smem>>
    %1165 = arith.index_cast %1164 : i32 to index
    %c0_742 = arith.constant 0 : index
    %1166 = vector.load %arg13[%1165, %c0_742] : memref<32x128xf32, #tpu.memory_space<vmem>>, vector<1x128xf32>
    %1167 = arith.addf %1163, %1166 : vector<1x128xf32>
    %c30_743 = arith.constant 30 : index
    %1168 = memref.load %arg1[%c30_743] : memref<64xi32, #tpu.memory_space<smem>>
    %1169 = arith.index_cast %1168 : i32 to index
    %c0_744 = arith.constant 0 : index
    %1170 = vector.load %arg13[%1169, %c0_744] : memref<32x128xf32, #tpu.memory_space<vmem>>, vector<1x128xf32>
    %1171 = arith.addf %1167, %1170 : vector<1x128xf32>
    %c31_745 = arith.constant 31 : index
    %1172 = memref.load %arg1[%c31_745] : memref<64xi32, #tpu.memory_space<smem>>
    %1173 = arith.index_cast %1172 : i32 to index
    %c0_746 = arith.constant 0 : index
    %1174 = vector.load %arg13[%1173, %c0_746] : memref<32x128xf32, #tpu.memory_space<vmem>>, vector<1x128xf32>
    %1175 = arith.addf %1171, %1174 : vector<1x128xf32>
    %c7_747 = arith.constant 7 : index
    %c0_748 = arith.constant 0 : index
    %1176 = vector.load %arg14[%c7_747, %c0_748] : memref<16x128xf32, #tpu.memory_space<vmem>>, vector<1x128xf32>
    tpu.vector_store %arg14[%c7_747, %c0_748], %1175 {strides = array<i32>} : memref<16x128xf32, #tpu.memory_space<vmem>>, vector<1x128xf32>,
    %c32_749 = arith.constant 32 : index
    %1177 = memref.load %arg1[%c32_749] : memref<64xi32, #tpu.memory_space<smem>>
    %1178 = arith.index_cast %1177 : i32 to index
    %c0_750 = arith.constant 0 : index
    %1179 = vector.load %arg13[%1178, %c0_750] : memref<32x128xf32, #tpu.memory_space<vmem>>, vector<1x128xf32>
    %c33_751 = arith.constant 33 : index
    %1180 = memref.load %arg1[%c33_751] : memref<64xi32, #tpu.memory_space<smem>>
    %1181 = arith.index_cast %1180 : i32 to index
    %c0_752 = arith.constant 0 : index
    %1182 = vector.load %arg13[%1181, %c0_752] : memref<32x128xf32, #tpu.memory_space<vmem>>, vector<1x128xf32>
    %1183 = arith.addf %1179, %1182 : vector<1x128xf32>
    %c34_753 = arith.constant 34 : index
    %1184 = memref.load %arg1[%c34_753] : memref<64xi32, #tpu.memory_space<smem>>
    %1185 = arith.index_cast %1184 : i32 to index
    %c0_754 = arith.constant 0 : index
    %1186 = vector.load %arg13[%1185, %c0_754] : memref<32x128xf32, #tpu.memory_space<vmem>>, vector<1x128xf32>
    %1187 = arith.addf %1183, %1186 : vector<1x128xf32>
    %c35_755 = arith.constant 35 : index
    %1188 = memref.load %arg1[%c35_755] : memref<64xi32, #tpu.memory_space<smem>>
    %1189 = arith.index_cast %1188 : i32 to index
    %c0_756 = arith.constant 0 : index
    %1190 = vector.load %arg13[%1189, %c0_756] : memref<32x128xf32, #tpu.memory_space<vmem>>, vector<1x128xf32>
    %1191 = arith.addf %1187, %1190 : vector<1x128xf32>
    %c8_757 = arith.constant 8 : index
    %c0_758 = arith.constant 0 : index
    %1192 = vector.load %arg14[%c8_757, %c0_758] : memref<16x128xf32, #tpu.memory_space<vmem>>, vector<1x128xf32>
    tpu.vector_store %arg14[%c8_757, %c0_758], %1191 {strides = array<i32>} : memref<16x128xf32, #tpu.memory_space<vmem>>, vector<1x128xf32>,
    %c36_759 = arith.constant 36 : index
    %1193 = memref.load %arg1[%c36_759] : memref<64xi32, #tpu.memory_space<smem>>
    %1194 = arith.index_cast %1193 : i32 to index
    %c0_760 = arith.constant 0 : index
    %1195 = vector.load %arg13[%1194, %c0_760] : memref<32x128xf32, #tpu.memory_space<vmem>>, vector<1x128xf32>
    %c37_761 = arith.constant 37 : index
    %1196 = memref.load %arg1[%c37_761] : memref<64xi32, #tpu.memory_space<smem>>
    %1197 = arith.index_cast %1196 : i32 to index
    %c0_762 = arith.constant 0 : index
    %1198 = vector.load %arg13[%1197, %c0_762] : memref<32x128xf32, #tpu.memory_space<vmem>>, vector<1x128xf32>
    %1199 = arith.addf %1195, %1198 : vector<1x128xf32>
    %c38_763 = arith.constant 38 : index
    %1200 = memref.load %arg1[%c38_763] : memref<64xi32, #tpu.memory_space<smem>>
    %1201 = arith.index_cast %1200 : i32 to index
    %c0_764 = arith.constant 0 : index
    %1202 = vector.load %arg13[%1201, %c0_764] : memref<32x128xf32, #tpu.memory_space<vmem>>, vector<1x128xf32>
    %1203 = arith.addf %1199, %1202 : vector<1x128xf32>
    %c39_765 = arith.constant 39 : index
    %1204 = memref.load %arg1[%c39_765] : memref<64xi32, #tpu.memory_space<smem>>
    %1205 = arith.index_cast %1204 : i32 to index
    %c0_766 = arith.constant 0 : index
    %1206 = vector.load %arg13[%1205, %c0_766] : memref<32x128xf32, #tpu.memory_space<vmem>>, vector<1x128xf32>
    %1207 = arith.addf %1203, %1206 : vector<1x128xf32>
    %c9_767 = arith.constant 9 : index
    %c0_768 = arith.constant 0 : index
    %1208 = vector.load %arg14[%c9_767, %c0_768] : memref<16x128xf32, #tpu.memory_space<vmem>>, vector<1x128xf32>
    tpu.vector_store %arg14[%c9_767, %c0_768], %1207 {strides = array<i32>} : memref<16x128xf32, #tpu.memory_space<vmem>>, vector<1x128xf32>,
    %c40_769 = arith.constant 40 : index
    %1209 = memref.load %arg1[%c40_769] : memref<64xi32, #tpu.memory_space<smem>>
    %1210 = arith.index_cast %1209 : i32 to index
    %c0_770 = arith.constant 0 : index
    %1211 = vector.load %arg13[%1210, %c0_770] : memref<32x128xf32, #tpu.memory_space<vmem>>, vector<1x128xf32>
    %c41_771 = arith.constant 41 : index
    %1212 = memref.load %arg1[%c41_771] : memref<64xi32, #tpu.memory_space<smem>>
    %1213 = arith.index_cast %1212 : i32 to index
    %c0_772 = arith.constant 0 : index
    %1214 = vector.load %arg13[%1213, %c0_772] : memref<32x128xf32, #tpu.memory_space<vmem>>, vector<1x128xf32>
    %1215 = arith.addf %1211, %1214 : vector<1x128xf32>
    %c42_773 = arith.constant 42 : index
    %1216 = memref.load %arg1[%c42_773] : memref<64xi32, #tpu.memory_space<smem>>
    %1217 = arith.index_cast %1216 : i32 to index
    %c0_774 = arith.constant 0 : index
    %1218 = vector.load %arg13[%1217, %c0_774] : memref<32x128xf32, #tpu.memory_space<vmem>>, vector<1x128xf32>
    %1219 = arith.addf %1215, %1218 : vector<1x128xf32>
    %c43_775 = arith.constant 43 : index
    %1220 = memref.load %arg1[%c43_775] : memref<64xi32, #tpu.memory_space<smem>>
    %1221 = arith.index_cast %1220 : i32 to index
    %c0_776 = arith.constant 0 : index
    %1222 = vector.load %arg13[%1221, %c0_776] : memref<32x128xf32, #tpu.memory_space<vmem>>, vector<1x128xf32>
    %1223 = arith.addf %1219, %1222 : vector<1x128xf32>
    %c10_777 = arith.constant 10 : index
    %c0_778 = arith.constant 0 : index
    %1224 = vector.load %arg14[%c10_777, %c0_778] : memref<16x128xf32, #tpu.memory_space<vmem>>, vector<1x128xf32>
    tpu.vector_store %arg14[%c10_777, %c0_778], %1223 {strides = array<i32>} : memref<16x128xf32, #tpu.memory_space<vmem>>, vector<1x128xf32>,
    %c44_779 = arith.constant 44 : index
    %1225 = memref.load %arg1[%c44_779] : memref<64xi32, #tpu.memory_space<smem>>
    %1226 = arith.index_cast %1225 : i32 to index
    %c0_780 = arith.constant 0 : index
    %1227 = vector.load %arg13[%1226, %c0_780] : memref<32x128xf32, #tpu.memory_space<vmem>>, vector<1x128xf32>
    %c45_781 = arith.constant 45 : index
    %1228 = memref.load %arg1[%c45_781] : memref<64xi32, #tpu.memory_space<smem>>
    %1229 = arith.index_cast %1228 : i32 to index
    %c0_782 = arith.constant 0 : index
    %1230 = vector.load %arg13[%1229, %c0_782] : memref<32x128xf32, #tpu.memory_space<vmem>>, vector<1x128xf32>
    %1231 = arith.addf %1227, %1230 : vector<1x128xf32>
    %c46_783 = arith.constant 46 : index
    %1232 = memref.load %arg1[%c46_783] : memref<64xi32, #tpu.memory_space<smem>>
    %1233 = arith.index_cast %1232 : i32 to index
    %c0_784 = arith.constant 0 : index
    %1234 = vector.load %arg13[%1233, %c0_784] : memref<32x128xf32, #tpu.memory_space<vmem>>, vector<1x128xf32>
    %1235 = arith.addf %1231, %1234 : vector<1x128xf32>
    %c47_785 = arith.constant 47 : index
    %1236 = memref.load %arg1[%c47_785] : memref<64xi32, #tpu.memory_space<smem>>
    %1237 = arith.index_cast %1236 : i32 to index
    %c0_786 = arith.constant 0 : index
    %1238 = vector.load %arg13[%1237, %c0_786] : memref<32x128xf32, #tpu.memory_space<vmem>>, vector<1x128xf32>
    %1239 = arith.addf %1235, %1238 : vector<1x128xf32>
    %c11_787 = arith.constant 11 : index
    %c0_788 = arith.constant 0 : index
    %1240 = vector.load %arg14[%c11_787, %c0_788] : memref<16x128xf32, #tpu.memory_space<vmem>>, vector<1x128xf32>
    tpu.vector_store %arg14[%c11_787, %c0_788], %1239 {strides = array<i32>} : memref<16x128xf32, #tpu.memory_space<vmem>>, vector<1x128xf32>,
    %c48_789 = arith.constant 48 : index
    %1241 = memref.load %arg1[%c48_789] : memref<64xi32, #tpu.memory_space<smem>>
    %1242 = arith.index_cast %1241 : i32 to index
    %c0_790 = arith.constant 0 : index
    %1243 = vector.load %arg13[%1242, %c0_790] : memref<32x128xf32, #tpu.memory_space<vmem>>, vector<1x128xf32>
    %c49_791 = arith.constant 49 : index
    %1244 = memref.load %arg1[%c49_791] : memref<64xi32, #tpu.memory_space<smem>>
    %1245 = arith.index_cast %1244 : i32 to index
    %c0_792 = arith.constant 0 : index
    %1246 = vector.load %arg13[%1245, %c0_792] : memref<32x128xf32, #tpu.memory_space<vmem>>, vector<1x128xf32>
    %1247 = arith.addf %1243, %1246 : vector<1x128xf32>
    %c50_793 = arith.constant 50 : index
    %1248 = memref.load %arg1[%c50_793] : memref<64xi32, #tpu.memory_space<smem>>
    %1249 = arith.index_cast %1248 : i32 to index
    %c0_794 = arith.constant 0 : index
    %1250 = vector.load %arg13[%1249, %c0_794] : memref<32x128xf32, #tpu.memory_space<vmem>>, vector<1x128xf32>
    %1251 = arith.addf %1247, %1250 : vector<1x128xf32>
    %c51_795 = arith.constant 51 : index
    %1252 = memref.load %arg1[%c51_795] : memref<64xi32, #tpu.memory_space<smem>>
    %1253 = arith.index_cast %1252 : i32 to index
    %c0_796 = arith.constant 0 : index
    %1254 = vector.load %arg13[%1253, %c0_796] : memref<32x128xf32, #tpu.memory_space<vmem>>, vector<1x128xf32>
    %1255 = arith.addf %1251, %1254 : vector<1x128xf32>
    %c12_797 = arith.constant 12 : index
    %c0_798 = arith.constant 0 : index
    %1256 = vector.load %arg14[%c12_797, %c0_798] : memref<16x128xf32, #tpu.memory_space<vmem>>, vector<1x128xf32>
    tpu.vector_store %arg14[%c12_797, %c0_798], %1255 {strides = array<i32>} : memref<16x128xf32, #tpu.memory_space<vmem>>, vector<1x128xf32>,
    %c52_799 = arith.constant 52 : index
    %1257 = memref.load %arg1[%c52_799] : memref<64xi32, #tpu.memory_space<smem>>
    %1258 = arith.index_cast %1257 : i32 to index
    %c0_800 = arith.constant 0 : index
    %1259 = vector.load %arg13[%1258, %c0_800] : memref<32x128xf32, #tpu.memory_space<vmem>>, vector<1x128xf32>
    %c53_801 = arith.constant 53 : index
    %1260 = memref.load %arg1[%c53_801] : memref<64xi32, #tpu.memory_space<smem>>
    %1261 = arith.index_cast %1260 : i32 to index
    %c0_802 = arith.constant 0 : index
    %1262 = vector.load %arg13[%1261, %c0_802] : memref<32x128xf32, #tpu.memory_space<vmem>>, vector<1x128xf32>
    %1263 = arith.addf %1259, %1262 : vector<1x128xf32>
    %c54_803 = arith.constant 54 : index
    %1264 = memref.load %arg1[%c54_803] : memref<64xi32, #tpu.memory_space<smem>>
    %1265 = arith.index_cast %1264 : i32 to index
    %c0_804 = arith.constant 0 : index
    %1266 = vector.load %arg13[%1265, %c0_804] : memref<32x128xf32, #tpu.memory_space<vmem>>, vector<1x128xf32>
    %1267 = arith.addf %1263, %1266 : vector<1x128xf32>
    %c55_805 = arith.constant 55 : index
    %1268 = memref.load %arg1[%c55_805] : memref<64xi32, #tpu.memory_space<smem>>
    %1269 = arith.index_cast %1268 : i32 to index
    %c0_806 = arith.constant 0 : index
    %1270 = vector.load %arg13[%1269, %c0_806] : memref<32x128xf32, #tpu.memory_space<vmem>>, vector<1x128xf32>
    %1271 = arith.addf %1267, %1270 : vector<1x128xf32>
    %c13_807 = arith.constant 13 : index
    %c0_808 = arith.constant 0 : index
    %1272 = vector.load %arg14[%c13_807, %c0_808] : memref<16x128xf32, #tpu.memory_space<vmem>>, vector<1x128xf32>
    tpu.vector_store %arg14[%c13_807, %c0_808], %1271 {strides = array<i32>} : memref<16x128xf32, #tpu.memory_space<vmem>>, vector<1x128xf32>,
    %c56_809 = arith.constant 56 : index
    %1273 = memref.load %arg1[%c56_809] : memref<64xi32, #tpu.memory_space<smem>>
    %1274 = arith.index_cast %1273 : i32 to index
    %c0_810 = arith.constant 0 : index
    %1275 = vector.load %arg13[%1274, %c0_810] : memref<32x128xf32, #tpu.memory_space<vmem>>, vector<1x128xf32>
    %c57_811 = arith.constant 57 : index
    %1276 = memref.load %arg1[%c57_811] : memref<64xi32, #tpu.memory_space<smem>>
    %1277 = arith.index_cast %1276 : i32 to index
    %c0_812 = arith.constant 0 : index
    %1278 = vector.load %arg13[%1277, %c0_812] : memref<32x128xf32, #tpu.memory_space<vmem>>, vector<1x128xf32>
    %1279 = arith.addf %1275, %1278 : vector<1x128xf32>
    %c58_813 = arith.constant 58 : index
    %1280 = memref.load %arg1[%c58_813] : memref<64xi32, #tpu.memory_space<smem>>
    %1281 = arith.index_cast %1280 : i32 to index
    %c0_814 = arith.constant 0 : index
    %1282 = vector.load %arg13[%1281, %c0_814] : memref<32x128xf32, #tpu.memory_space<vmem>>, vector<1x128xf32>
    %1283 = arith.addf %1279, %1282 : vector<1x128xf32>
    %c59_815 = arith.constant 59 : index
    %1284 = memref.load %arg1[%c59_815] : memref<64xi32, #tpu.memory_space<smem>>
    %1285 = arith.index_cast %1284 : i32 to index
    %c0_816 = arith.constant 0 : index
    %1286 = vector.load %arg13[%1285, %c0_816] : memref<32x128xf32, #tpu.memory_space<vmem>>, vector<1x128xf32>
    %1287 = arith.addf %1283, %1286 : vector<1x128xf32>
    %c14_817 = arith.constant 14 : index
    %c0_818 = arith.constant 0 : index
    %1288 = vector.load %arg14[%c14_817, %c0_818] : memref<16x128xf32, #tpu.memory_space<vmem>>, vector<1x128xf32>
    tpu.vector_store %arg14[%c14_817, %c0_818], %1287 {strides = array<i32>} : memref<16x128xf32, #tpu.memory_space<vmem>>, vector<1x128xf32>,
    %c60_819 = arith.constant 60 : index
    %1289 = memref.load %arg1[%c60_819] : memref<64xi32, #tpu.memory_space<smem>>
    %1290 = arith.index_cast %1289 : i32 to index
    %c0_820 = arith.constant 0 : index
    %1291 = vector.load %arg13[%1290, %c0_820] : memref<32x128xf32, #tpu.memory_space<vmem>>, vector<1x128xf32>
    %c61_821 = arith.constant 61 : index
    %1292 = memref.load %arg1[%c61_821] : memref<64xi32, #tpu.memory_space<smem>>
    %1293 = arith.index_cast %1292 : i32 to index
    %c0_822 = arith.constant 0 : index
    %1294 = vector.load %arg13[%1293, %c0_822] : memref<32x128xf32, #tpu.memory_space<vmem>>, vector<1x128xf32>
    %1295 = arith.addf %1291, %1294 : vector<1x128xf32>
    %c62_823 = arith.constant 62 : index
    %1296 = memref.load %arg1[%c62_823] : memref<64xi32, #tpu.memory_space<smem>>
    %1297 = arith.index_cast %1296 : i32 to index
    %c0_824 = arith.constant 0 : index
    %1298 = vector.load %arg13[%1297, %c0_824] : memref<32x128xf32, #tpu.memory_space<vmem>>, vector<1x128xf32>
    %1299 = arith.addf %1295, %1298 : vector<1x128xf32>
    %c63_825 = arith.constant 63 : index
    %1300 = memref.load %arg1[%c63_825] : memref<64xi32, #tpu.memory_space<smem>>
    %1301 = arith.index_cast %1300 : i32 to index
    %c0_826 = arith.constant 0 : index
    %1302 = vector.load %arg13[%1301, %c0_826] : memref<32x128xf32, #tpu.memory_space<vmem>>, vector<1x128xf32>
    %1303 = arith.addf %1299, %1302 : vector<1x128xf32>
    %c15_827 = arith.constant 15 : index
    %c0_828 = arith.constant 0 : index
    %1304 = vector.load %arg14[%c15_827, %c0_828] : memref<16x128xf32, #tpu.memory_space<vmem>>, vector<1x128xf32>
    tpu.vector_store %arg14[%c15_827, %c0_828], %1303 {strides = array<i32>} : memref<16x128xf32, #tpu.memory_space<vmem>>, vector<1x128xf32>,
    %c0_829 = arith.constant 0 : index
    %c0_830 = arith.constant 0 : index
    %1305 = vector.load %arg5[%c0_829, %c0_830] : memref<16x128xbf16, #tpu.memory_space<vmem>>, vector<16x128xbf16>
    %c0_831 = arith.constant 0 : index
    %c0_832 = arith.constant 0 : index
    %1306 = vector.load %arg8[%c0_831, %c0_832] : memref<128x128xbf16, #tpu.memory_space<vmem>>, vector<128x128xbf16>
    %cst_833 = arith.constant dense<0.000000e+00> : vector<16x128xf32>
    %1307 = tpu.matmul %1305, %1306, %cst_833 {dimension_numbers = #tpu.dot_dimension_numbers<[1], [0], [0], [1], [0, 0, 1, 1], [], []>} : vector<16x128xbf16>, vector<128x128xbf16>, vector<16x128xf32> -> vector<16x128xf32>
    %c0_834 = arith.constant 0 : index
    %c0_835 = arith.constant 0 : index
    %1308 = vector.load %arg14[%c0_834, %c0_835] : memref<16x128xf32, #tpu.memory_space<vmem>>, vector<16x128xf32>
    %1309 = arith.truncf %1308 : vector<16x128xf32> to vector<16x128xbf16>
    %c0_836 = arith.constant 0 : index
    %c0_837 = arith.constant 0 : index
    %1310 = vector.load %arg9[%c0_836, %c0_837] : memref<128x128xbf16, #tpu.memory_space<vmem>>, vector<128x128xbf16>
    %cst_838 = arith.constant dense<0.000000e+00> : vector<16x128xf32>
    %1311 = tpu.matmul %1309, %1310, %cst_838 {dimension_numbers = #tpu.dot_dimension_numbers<[1], [0], [0], [1], [0, 0, 1, 1], [], []>} : vector<16x128xbf16>, vector<128x128xbf16>, vector<16x128xf32> -> vector<16x128xf32>
    %1312 = arith.addf %1307, %1311 : vector<16x128xf32>
    %c0_839 = arith.constant 0 : index
    %c0_840 = arith.constant 0 : index
    %1313 = vector.load %arg10[%c0_839, %c0_840] : memref<1x128xf32, #tpu.memory_space<vmem>>, vector<1x128xf32>
    %1314 = vector.broadcast %1313 : vector<1x128xf32> to vector<16x128xf32>
    %1315 = arith.addf %1312, %1314 : vector<16x128xf32>
    %cst_841 = arith.constant 0.000000e+00 : f32
    %1316 = vector.broadcast %cst_841 : f32 to vector<16x128xf32>
    %1317 = arith.maximumf %1315, %1316 : vector<16x128xf32>
    %c0_842 = arith.constant 0 : index
    %c0_843 = arith.constant 0 : index
    %1318 = vector.load %arg11[%c0_842, %c0_843] : memref<16x128xf32, #tpu.memory_space<vmem>>, vector<16x128xf32>
    tpu.vector_store %arg11[%c0_842, %c0_843], %1317 {strides = array<i32>} : memref<16x128xf32, #tpu.memory_space<vmem>>, vector<16x128xf32>,
    return
  }
  func.func @transform_0(%arg0: i32, %arg1: memref<64xi32, #tpu.memory_space<smem>>, %arg2: memref<32xi32, #tpu.memory_space<smem>>, %arg3: memref<32xi32, #tpu.memory_space<smem>>) -> (i32, i32) {
    %c0_i32 = arith.constant 0 : i32
    %c0_i32_0 = arith.constant 0 : i32
    %c0_i32_1 = arith.constant 0 : i32
    return %c0_i32, %c0_i32_0 : i32, i32
  }
  func.func @transform_1(%arg0: i32, %arg1: memref<64xi32, #tpu.memory_space<smem>>, %arg2: memref<32xi32, #tpu.memory_space<smem>>, %arg3: memref<32xi32, #tpu.memory_space<smem>>) -> (i32, i32) {
    %c0_i32 = arith.constant 0 : i32
    %c0_i32_0 = arith.constant 0 : i32
    %c0_i32_1 = arith.constant 0 : i32
    return %c0_i32, %c0_i32_0 : i32, i32
  }
  func.func @transform_2(%arg0: i32, %arg1: memref<64xi32, #tpu.memory_space<smem>>, %arg2: memref<32xi32, #tpu.memory_space<smem>>, %arg3: memref<32xi32, #tpu.memory_space<smem>>) -> (i32, i32) {
    %c0_i32 = arith.constant 0 : i32
    %c0_i32_0 = arith.constant 0 : i32
    %c0_i32_1 = arith.constant 0 : i32
    return %c0_i32, %c0_i32_0 : i32, i32
  }
  func.func @transform_3(%arg0: i32, %arg1: memref<64xi32, #tpu.memory_space<smem>>, %arg2: memref<32xi32, #tpu.memory_space<smem>>, %arg3: memref<32xi32, #tpu.memory_space<smem>>) -> (i32, i32) {
    %c0_i32 = arith.constant 0 : i32
    %c0_i32_0 = arith.constant 0 : i32
    %c0_i32_1 = arith.constant 0 : i32
    return %c0_i32, %c0_i32_0 : i32, i32
  }
  func.func @transform_4(%arg0: i32, %arg1: memref<64xi32, #tpu.memory_space<smem>>, %arg2: memref<32xi32, #tpu.memory_space<smem>>, %arg3: memref<32xi32, #tpu.memory_space<smem>>) -> (i32, i32) {
    %c0_i32 = arith.constant 0 : i32
    %c0_i32_0 = arith.constant 0 : i32
    %c0_i32_1 = arith.constant 0 : i32
    return %c0_i32, %c0_i32_0 : i32, i32
  }
  func.func @transform_5(%arg0: i32, %arg1: memref<64xi32, #tpu.memory_space<smem>>, %arg2: memref<32xi32, #tpu.memory_space<smem>>, %arg3: memref<32xi32, #tpu.memory_space<smem>>) -> (i32, i32) {
    %c0_i32 = arith.constant 0 : i32
    %c0_i32_0 = arith.constant 0 : i32
    %c0_i32_1 = arith.constant 0 : i32
    return %c0_i32, %c0_i32_0 : i32, i32
  }
  func.func @transform_6(%arg0: i32, %arg1: memref<64xi32, #tpu.memory_space<smem>>, %arg2: memref<32xi32, #tpu.memory_space<smem>>, %arg3: memref<32xi32, #tpu.memory_space<smem>>) -> (i32, i32) {
    %c0_i32 = arith.constant 0 : i32
    %c0_i32_0 = arith.constant 0 : i32
    %c0_i32_1 = arith.constant 0 : i32
    return %c0_i32, %c0_i32_0 : i32, i32
  }
  func.func @transform_7(%arg0: i32, %arg1: memref<64xi32, #tpu.memory_space<smem>>, %arg2: memref<32xi32, #tpu.memory_space<smem>>, %arg3: memref<32xi32, #tpu.memory_space<smem>>) -> (i32, i32) {
    %c0_i32 = arith.constant 0 : i32
    %c0_i32_0 = arith.constant 0 : i32
    %c0_i32_1 = arith.constant 0 : i32
    return %c0_i32, %c0_i32_0 : i32, i32
  }
}

</mosaic_0001>

<llo_original>
// kernel: tpu_custom_call.1
$region0: #{tpu_custom_call.1}
  #allocation0 [shape = 'u32[]', space=smem, size = 0x4, offset = 0x4, fixed_abs, tag = 'smem constant byte address 0x4 - core index']
  #allocation1 [shape = 'u32[144,128]{1,0:T(1,128)}', space=vmem, size = 0x12000, scoped, tag = 'internal scratch']
  #allocation2 [shape = 'f32[32,128]{1,0:T(8,128)}', space=vmem, size = 0x4000, scoped, tag = 'scratch operand']
  #allocation3 [shape = 'f32[32,128]{1,0:T(8,128)}', space=vmem, size = 0x4000, scoped, tag = 'scratch operand']
  #allocation4 [shape = 'f32[16,128]{1,0:T(8,128)}', space=vmem, size = 0x2000, scoped, tag = 'scratch operand']
  #allocation5 [shape = 'f32[32,128]{1,0:T(8,128)}', space=vmem, size = 0x4000, scoped, tag = 'scratch operand']
  #allocation6 [shape = 's32[1]{0}', space=sflag, size = 0x4, scoped, tag = 'scoped memory for tpu_custom_call.1']
  #allocation7 [shape = 'u8[512]{0}', space=smem, size = 0x200, scoped, tag = 'prefetched SMEM operand 0']
  #allocation8 [shape = 'u8[512]{0}', space=smem, size = 0x200, scoped, tag = 'prefetched SMEM operand 1']
  #allocation9 [shape = 'u8[512]{0}', space=smem, size = 0x200, scoped, tag = 'prefetched SMEM operand 2']
  %s0 = inlined_call_operand.hbm [shape: s32[64], index: 0, kind: input, shape index: {}]
  %s1 = inlined_call_operand.vmem [shape: s32[32], index: 1, kind: input, shape index: {}]
  %s2 = inlined_call_operand.vmem [shape: s32[32], index: 2, kind: input, shape index: {}]
  %s3 = inlined_call_operand.hbm [shape: bf16[32,128], index: 3, kind: input, shape index: {}]
  %s4 = inlined_call_operand.hbm [shape: bf16[16,128], index: 4, kind: input, shape index: {}]
  %s5 = inlined_call_operand.hbm [shape: bf16[128,128], index: 5, kind: input, shape index: {}]
  %s6 = inlined_call_operand.hbm [shape: bf16[128,128], index: 6, kind: input, shape index: {}]
  %s7 = inlined_call_operand.hbm [shape: bf16[128,128], index: 7, kind: input, shape index: {}]
  %s8 = inlined_call_operand.hbm [shape: bf16[128,128], index: 8, kind: input, shape index: {}]
  %s9 = inlined_call_operand.vmem [shape: f32[1,128], index: 9, kind: input, shape index: {}]
  %s10 = inlined_call_operand.hbm [shape: f32[16,128], index: 10, kind: output, shape index: {}]
  %s11 = sld [smem:[#allocation0]]
  $region62: #{tpu_custom_call.1} parent=0
    _
  %s13 = ssub.s32 1, %s11
  %s14 = scalar_select 0, %s13, %s11
  %16 = dma.hbm_to_smem %s0, 16, [#allocation7], [#allocation6]
  %s17 = sshll.u32 %s1, 4
  %s18 = int_to_ptr.vmem [resolvable:$true] %s17
  %20 = dma.vmem_to_smem %s18, 16, [#allocation8], [#allocation6]
  %s21 = sshll.u32 %s2, 4
  %s22 = int_to_ptr.vmem [resolvable:$true] %s21
  %24 = dma.vmem_to_smem %s22, 16, [#allocation9], [#allocation6]
  %25 = dma.done [#allocation6], 48
  %26 = sfence
  $region1: #{tpu_custom_call.1} parent=0
    #allocation10 [shape = 'u8[8192]{0}', space=vmem, size = 0x2000, scoped, tag = 'input window, operand 3, single buffered']
    #allocation11 [shape = 's32[1]{0}', space=sflag, size = 0x4, scoped, tag = 'scoped memory for tpu_custom_call.1']
    #allocation12 [shape = 's32[1]{0}', space=sflag, size = 0x4, scoped, tag = 'scoped memory for tpu_custom_call.1']
    #allocation13 [shape = 'u8[4096]{0}', space=vmem, size = 0x1000, scoped, tag = 'input window, operand 4, single buffered']
    #allocation14 [shape = 's32[1]{0}', space=sflag, size = 0x4, scoped, tag = 'scoped memory for tpu_custom_call.1']
    #allocation15 [shape = 'u8[32768]{0}', space=vmem, size = 0x8000, scoped, tag = 'input window, operand 5, single buffered']
    #allocation16 [shape = 'u8[32768]{0}', space=vmem, size = 0x8000, scoped, tag = 'input window, operand 6, single buffered']
    #allocation17 [shape = 's32[1]{0}', space=sflag, size = 0x4, scoped, tag = 'scoped memory for tpu_custom_call.1']
    #allocation18 [shape = 'u8[32768]{0}', space=vmem, size = 0x8000, scoped, tag = 'input window, operand 7, single buffered']
    #allocation19 [shape = 'u8[32768]{0}', space=vmem, size = 0x8000, scoped, tag = 'input window, operand 8, single buffered']
    #allocation20 [shape = 's32[1]{0}', space=sflag, size = 0x4, scoped, tag = 'scoped memory for tpu_custom_call.1']
    #allocation21 [shape = 'u8[8192]{0}', space=vmem, size = 0x2000, scoped, tag = 'output window, operand 0, single buffered']
    %27 = vsyncpa [#allocation11], 0
    %28 = vsyncpa [#allocation14], 0
    %29 = vsyncpa [#allocation17], 0
    %30 = vsyncpa [#allocation20], 0
    %31 = vsyncpa [#allocation12], 0
    // Predicated region
    $region2: #{tpu_custom_call.1} parent=1 // pred_check
      _
    $region3: #{tpu_custom_call.1} parent=1 // pred_check_branch
      %33 = sbr.rel (0) target = $region5
    $region4: #{tpu_custom_call.1} parent=1 // pred_region
      %s35 = ssub.s32 256, 256
      %36 = vsyncadd [#allocation11], %s35
      %s37 = sshll.u32 [#allocation10], 4
      %s38 = int_to_ptr.vmem [resolvable:$true] %s37
      %43 = dma.hbm_to_vmem [thread:$0]  %s3, 256, %s38, [#allocation11], 64, 64, 4
    $region5: #{tpu_custom_call.1} parent=1 // pred_fallthru
      _
    // Predicated region
    $region6: #{tpu_custom_call.1} parent=1 // pred_check
      _
    $region7: #{tpu_custom_call.1} parent=1 // pred_check_branch
      %45 = sbr.rel (0) target = $region9
    $region8: #{tpu_custom_call.1} parent=1 // pred_region
      %s47 = ssub.s32 128, 128
      %48 = vsyncadd [#allocation14], %s47
      %s49 = sshll.u32 [#allocation13], 4
      %s50 = int_to_ptr.vmem [resolvable:$true] %s49
      %55 = dma.hbm_to_vmem [thread:$0]  %s4, 128, %s50, [#allocation14], 64, 64, 4
    $region9: #{tpu_custom_call.1} parent=1 // pred_fallthru
      _
    // Predicated region
    $region10: #{tpu_custom_call.1} parent=1 // pred_check
      _
    $region11: #{tpu_custom_call.1} parent=1 // pred_check_branch
      %57 = sbr.rel (0) target = $region13
    $region12: #{tpu_custom_call.1} parent=1 // pred_region
      %s59 = ssub.s32 1024, 1024
      %60 = vsyncadd [#allocation14], %s59
      %s61 = sshll.u32 [#allocation15], 4
      %s62 = int_to_ptr.vmem [resolvable:$true] %s61
      %67 = dma.hbm_to_vmem [thread:$0]  %s5, 1024, %s62, [#allocation14], 64, 64, 4
    $region13: #{tpu_custom_call.1} parent=1 // pred_fallthru
      _
    // Predicated region
    $region14: #{tpu_custom_call.1} parent=1 // pred_check
      _
    $region15: #{tpu_custom_call.1} parent=1 // pred_check_branch
      %69 = sbr.rel (0) target = $region17
    $region16: #{tpu_custom_call.1} parent=1 // pred_region
      %s71 = ssub.s32 1024, 1024
      %72 = vsyncadd [#allocation17], %s71
      %s73 = sshll.u32 [#allocation16], 4
      %s74 = int_to_ptr.vmem [resolvable:$true] %s73
      %79 = dma.hbm_to_vmem [thread:$0]  %s6, 1024, %s74, [#allocation17], 64, 64, 4
    $region17: #{tpu_custom_call.1} parent=1 // pred_fallthru
      _
    // Predicated region
    $region18: #{tpu_custom_call.1} parent=1 // pred_check
      _
    $region19: #{tpu_custom_call.1} parent=1 // pred_check_branch
      %81 = sbr.rel (0) target = $region21
    $region20: #{tpu_custom_call.1} parent=1 // pred_region
      %s83 = ssub.s32 1024, 1024
      %84 = vsyncadd [#allocation17], %s83
      %s85 = sshll.u32 [#allocation18], 4
      %s86 = int_to_ptr.vmem [resolvable:$true] %s85
      %91 = dma.hbm_to_vmem [thread:$0]  %s7, 1024, %s86, [#allocation17], 64, 64, 4
    $region21: #{tpu_custom_call.1} parent=1 // pred_fallthru
      _
    // Predicated region
    $region22: #{tpu_custom_call.1} parent=1 // pred_check
      _
    $region23: #{tpu_custom_call.1} parent=1 // pred_check_branch
      %93 = sbr.rel (0) target = $region25
    $region24: #{tpu_custom_call.1} parent=1 // pred_region
      %s95 = ssub.s32 1024, 1024
      %96 = vsyncadd [#allocation20], %s95
      %s97 = sshll.u32 [#allocation19], 4
      %s98 = int_to_ptr.vmem [resolvable:$true] %s97
      %103 = dma.hbm_to_vmem [thread:$0]  %s8, 1024, %s98, [#allocation20], 64, 64, 4
    $region25: #{tpu_custom_call.1} parent=1 // pred_fallthru
      _
    // Predicated region
    $region26: #{tpu_custom_call.1} parent=1 // pred_check
      _
    $region27: #{tpu_custom_call.1} parent=1 // pred_check_branch
      %105 = sbr.rel (0) target = $region29
    $region28: #{tpu_custom_call.1} parent=1 // pred_region
      _
    $region29: #{tpu_custom_call.1} parent=1 // pred_fallthru
      _
    // Predicated region
    $region30: #{tpu_custom_call.1} parent=1 // pred_check
      _
    $region31: #{tpu_custom_call.1} parent=1 // pred_check_branch
      %107 = sbr.rel (0) target = $region33
    $region32: #{tpu_custom_call.1} parent=1 // pred_region
      %108 = dma.done [#allocation11], 256
    $region33: #{tpu_custom_call.1} parent=1 // pred_fallthru
      _
    // Predicated region
    $region34: #{tpu_custom_call.1} parent=1 // pred_check
      _
    $region35: #{tpu_custom_call.1} parent=1 // pred_check_branch
      %110 = sbr.rel (0) target = $region37
    $region36: #{tpu_custom_call.1} parent=1 // pred_region
      %111 = dma.done [#allocation14], 128
    $region37: #{tpu_custom_call.1} parent=1 // pred_fallthru
      _
    // Predicated region
    $region38: #{tpu_custom_call.1} parent=1 // pred_check
      _
    $region39: #{tpu_custom_call.1} parent=1 // pred_check_branch
      %113 = sbr.rel (0) target = $region41
    $region40: #{tpu_custom_call.1} parent=1 // pred_region
      %114 = dma.done [#allocation14], 1024
    $region41: #{tpu_custom_call.1} parent=1 // pred_fallthru
      _
    // Predicated region
    $region42: #{tpu_custom_call.1} parent=1 // pred_check
      _
    $region43: #{tpu_custom_call.1} parent=1 // pred_check_branch
      %116 = sbr.rel (0) target = $region45
    $region44: #{tpu_custom_call.1} parent=1 // pred_region
      %117 = dma.done [#allocation17], 1024
    $region45: #{tpu_custom_call.1} parent=1 // pred_fallthru
      _
    // Predicated region
    $region46: #{tpu_custom_call.1} parent=1 // pred_check
      _
    $region47: #{tpu_custom_call.1} parent=1 // pred_check_branch
      %119 = sbr.rel (0) target = $region49
    $region48: #{tpu_custom_call.1} parent=1 // pred_region
      %120 = dma.done [#allocation17], 1024
    $region49: #{tpu_custom_call.1} parent=1 // pred_fallthru
      _
    // Predicated region
    $region50: #{tpu_custom_call.1} parent=1 // pred_check
      _
    $region51: #{tpu_custom_call.1} parent=1 // pred_check_branch
      %122 = sbr.rel (0) target = $region53
    $region52: #{tpu_custom_call.1} parent=1 // pred_region
      %123 = dma.done [#allocation20], 1024
    $region53: #{tpu_custom_call.1} parent=1 // pred_fallthru
      _
    %v125 = vld [vmem:[#allocation10] sm:$0xf]
    %v126 = vld [vmem:[#allocation10 + $0x4] sm:$0xf]
    %v127 = vld [vmem:[#allocation10 + $0x8] sm:$0xf]
    %v128 = vld [vmem:[#allocation10 + $0xc] sm:$0xf]
    %v129 = vld [vmem:[#allocation15] sm:$0xf]
    %v130 = vld [vmem:[#allocation15 + $0x4] sm:$0xf]
    %v131 = vld [vmem:[#allocation15 + $0x8] sm:$0xf]
    %v132 = vld [vmem:[#allocation15 + $0xc] sm:$0xf]
    %v133 = vld [vmem:[#allocation15 + $0x10] sm:$0xf]
    %v134 = vld [vmem:[#allocation15 + $0x14] sm:$0xf]
    %v135 = vld [vmem:[#allocation15 + $0x18] sm:$0xf]
    %v136 = vld [vmem:[#allocation15 + $0x1c] sm:$0xf]
    %v137 = vld [vmem:[#allocation15 + $0x20] sm:$0xf]
    %v138 = vld [vmem:[#allocation15 + $0x24] sm:$0xf]
    %v139 = vld [vmem:[#allocation15 + $0x28] sm:$0xf]
    %v140 = vld [vmem:[#allocation15 + $0x2c] sm:$0xf]
    %v141 = vld [vmem:[#allocation15 + $0x30] sm:$0xf]
    %v142 = vld [vmem:[#allocation15 + $0x34] sm:$0xf]
    %v143 = vld [vmem:[#allocation15 + $0x38] sm:$0xf]
    %v144 = vld [vmem:[#allocation15 + $0x3c] sm:$0xf]
    %v149 = vunpack.c.l.b16 %v125
    %v150 = vunpack.c.l.b16 %v126
    %v151 = vunpack.c.l.b16 %v127
    %v152 = vunpack.c.l.b16 %v128
    %v153 = vpack.c.b16 %v150, %v149
    %v154 = vpack.c.b16 %v152, %v151
    %v173 = vunpack.c.l.b16 %v129
    %v174 = vunpack.c.l.b16 %v130
    %v175 = vunpack.c.l.b16 %v131
    %v176 = vunpack.c.l.b16 %v132
    %v177 = vunpack.c.l.b16 %v133
    %v178 = vunpack.c.l.b16 %v134
    %v179 = vunpack.c.l.b16 %v135
    %v180 = vunpack.c.l.b16 %v136
    %v181 = vunpack.c.l.b16 %v137
    %v182 = vunpack.c.l.b16 %v138
    %v183 = vunpack.c.l.b16 %v139
    %v184 = vunpack.c.l.b16 %v140
    %v185 = vunpack.c.l.b16 %v141
    %v186 = vunpack.c.l.b16 %v142
    %v187 = vunpack.c.l.b16 %v143
    %v188 = vunpack.c.l.b16 %v144
    %v189 = vpack.c.b16 %v174, %v173
    %v190 = vpack.c.b16 %v176, %v175
    %v191 = vpack.c.b16 %v178, %v177
    %v192 = vpack.c.b16 %v180, %v179
    %v193 = vpack.c.b16 %v182, %v181
    %v194 = vpack.c.b16 %v184, %v183
    %v195 = vpack.c.b16 %v186, %v185
    %v196 = vpack.c.b16 %v188, %v187
    %205 = vmatprep.subr.bf16.mxu0 0
    %206 = vmatpush1.bf16.msra.mxu0 %v196
    %207 = vmatprep.subr.bf16.mxu0 0
    %208 = vmatpush1.bf16.msra.mxu0 %v195
    %209 = vmatprep.subr.bf16.mxu0 0
    %210 = vmatpush1.bf16.msra.mxu0 %v194
    %211 = vmatprep.subr.bf16.mxu0 0
    %212 = vmatpush1.bf16.msra.mxu0 %v193
    %213 = vmatprep.subr.bf16.mxu0 0
    %214 = vmatpush1.bf16.msra.mxu0 %v192
    %215 = vmatprep.subr.bf16.mxu0 0
    %216 = vmatpush1.bf16.msra.mxu0 %v191
    %217 = vmatprep.subr.bf16.mxu0 0
    %218 = vmatpush1.bf16.msra.mxu0 %v190
    %219 = vmatprep.subr.bf16.mxu0 0
    %220 = vmatpush1.bf16.msra.mxu0 %v189
    %221 = vmatprep.subr.bf16.mxu0 0
    %222 = vmatpush2.bf16.msra.mxu0 0
    %223 = vmatprep.subr.bf16.mxu0 0
    %224 = vmatpush2.bf16.msra.mxu0 0
    %225 = vmatprep.subr.bf16.mxu0 0
    %226 = vmatpush2.bf16.msra.mxu0 0
    %227 = vmatprep.subr.bf16.mxu0 0
    %228 = vmatpush2.bf16.msra.mxu0 0
    %229 = vmatprep.subr.bf16.mxu0 0
    %230 = vmatpush2.bf16.msra.mxu0 0
    %231 = vmatprep.subr.bf16.mxu0 0
    %232 = vmatpush2.bf16.msra.mxu0 0
    %233 = vmatprep.subr.bf16.mxu0 0
    %234 = vmatpush2.bf16.msra.mxu0 0
    %235 = vmatprep.subr.bf16.mxu0 0
    %236 = vmatpush2.bf16.msra.mxu0 0
    %237 = vmatprep.mubr.bf16.mxu0 0
    %238 = vmatmul.mubr.bf16.gmra.mxu0 %v153
    %v239 = vpop.f32.mrf.mxu0
    %v240 = vadd.f32 0.0, %v239
    %v241 = vpop.f32.mrf.mxu0
    %v242 = vpop.f32.mrf.mxu0
    %v243 = vadd.f32 0.0, %v242
    %v244 = vpop.f32.mrf.mxu0
    %245 = vmatprep.mubr.bf16.mxu0 0
    %246 = vmatmul.mubr.bf16.gmra.mxu0 %v154
    %v247 = vpop.f32.mrf.mxu0
    %v248 = vadd.f32 0.0, %v247
    %v249 = vpop.f32.mrf.mxu0
    %v250 = vpop.f32.mrf.mxu0
    %v251 = vadd.f32 0.0, %v250
    %v252 = vpop.f32.mrf.mxu0
    %253 = vdwg.mxu0
    %254 = vst [vmem:[#allocation2] sm:$0xff] %v240
    %255 = vst [vmem:[#allocation2 + $0x8] sm:$0xff] %v243
    %256 = vst [vmem:[#allocation2 + $0x10] sm:$0xff] %v248
    %257 = vst [vmem:[#allocation2 + $0x18] sm:$0xff] %v251
    %v258 = vmax.f32 %v240, 0.0
    %v259 = vmax.f32 %v243, 0.0
    %v260 = vmax.f32 %v248, 0.0
    %v261 = vmax.f32 %v251, 0.0
    %262 = vst [vmem:[#allocation3] sm:$0xff] %v258
    %263 = vst [vmem:[#allocation3 + $0x8] sm:$0xff] %v259
    %264 = vst [vmem:[#allocation3 + $0x10] sm:$0xff] %v260
    %265 = vst [vmem:[#allocation3 + $0x18] sm:$0xff] %v261
    %s266 = sld [smem:[#allocation7]]
    %s267 = scalar_lea.vmem [#allocation3], %s266
    %v268 = vld [vmem:[%s267] sm:$0x1]
    %s269 = sld [smem:[#allocation7 + $0x1]]
    %s270 = scalar_lea.vmem [#allocation3], %s269
    %v271 = vld [vmem:[%s270] sm:$0x1]
    %v272 = vadd.f32 %v268, %v271
    %s273 = sld [smem:[#allocation7 + $0x2]]
    %s274 = scalar_lea.vmem [#allocation3], %s273
    %v275 = vld [vmem:[%s274] sm:$0x1]
    %v276 = vadd.f32 %v272, %v275
    %s277 = sld [smem:[#allocation7 + $0x3]]
    %s278 = scalar_lea.vmem [#allocation3], %s277
    %v279 = vld [vmem:[%s278] sm:$0x1]
    %v280 = vadd.f32 %v276, %v279
    %281 = vst [vmem:[#allocation4] sm:$0x1] %v280
    %s282 = sld [smem:[#allocation7 + $0x4]]
    %s283 = scalar_lea.vmem [#allocation3], %s282
    %v284 = vld [vmem:[%s283] sm:$0x1]
    %s285 = sld [smem:[#allocation7 + $0x5]]
    %s286 = scalar_lea.vmem [#allocation3], %s285
    %v287 = vld [vmem:[%s286] sm:$0x1]
    %v288 = vadd.f32 %v284, %v287
    %s289 = sld [smem:[#allocation7 + $0x6]]
    %s290 = scalar_lea.vmem [#allocation3], %s289
    %v291 = vld [vmem:[%s290] sm:$0x1]
    %v292 = vadd.f32 %v288, %v291
    %s293 = sld [smem:[#allocation7 + $0x7]]
    %s294 = scalar_lea.vmem [#allocation3], %s293
    %v295 = vld [vmem:[%s294] sm:$0x1]
    %v296 = vadd.f32 %v292, %v295
    %297 = vst [vmem:[#allocation4 + $0x1] sm:$0x1] %v296
    %s298 = sld [smem:[#allocation7 + $0x8]]
    %s299 = scalar_lea.vmem [#allocation3], %s298
    %v300 = vld [vmem:[%s299] sm:$0x1]
    %s301 = sld [smem:[#allocation7 + $0x9]]
    %s302 = scalar_lea.vmem [#allocation3], %s301
    %v303 = vld [vmem:[%s302] sm:$0x1]
    %v304 = vadd.f32 %v300, %v303
    %s305 = sld [smem:[#allocation7 + $0xa]]
    %s306 = scalar_lea.vmem [#allocation3], %s305
    %v307 = vld [vmem:[%s306] sm:$0x1]
    %v308 = vadd.f32 %v304, %v307
    %s309 = sld [smem:[#allocation7 + $0xb]]
    %s310 = scalar_lea.vmem [#allocation3], %s309
    %v311 = vld [vmem:[%s310] sm:$0x1]
    %v312 = vadd.f32 %v308, %v311
    %313 = vst [vmem:[#allocation4 + $0x2] sm:$0x1] %v312
    %s314 = sld [smem:[#allocation7 + $0xc]]
    %s315 = scalar_lea.vmem [#allocation3], %s314
    %v316 = vld [vmem:[%s315] sm:$0x1]
    %s317 = sld [smem:[#allocation7 + $0xd]]
    %s318 = scalar_lea.vmem [#allocation3], %s317
    %v319 = vld [vmem:[%s318] sm:$0x1]
    %v320 = vadd.f32 %v316, %v319
    %s321 = sld [smem:[#allocation7 + $0xe]]
    %s322 = scalar_lea.vmem [#allocation3], %s321
    %v323 = vld [vmem:[%s322] sm:$0x1]
    %v324 = vadd.f32 %v320, %v323
    %s325 = sld [smem:[#allocation7 + $0xf]]
    %s326 = scalar_lea.vmem [#allocation3], %s325
    %v327 = vld [vmem:[%s326] sm:$0x1]
    %v328 = vadd.f32 %v324, %v327
    %329 = vst [vmem:[#allocation4 + $0x3] sm:$0x1] %v328
    %s330 = sld [smem:[#allocation7 + $0x10]]
    %s331 = scalar_lea.vmem [#allocation3], %s330
    %v332 = vld [vmem:[%s331] sm:$0x1]
    %s333 = sld [smem:[#allocation7 + $0x11]]
    %s334 = scalar_lea.vmem [#allocation3], %s333
    %v335 = vld [vmem:[%s334] sm:$0x1]
    %v336 = vadd.f32 %v332, %v335
    %s337 = sld [smem:[#allocation7 + $0x12]]
    %s338 = scalar_lea.vmem [#allocation3], %s337
    %v339 = vld [vmem:[%s338] sm:$0x1]
    %v340 = vadd.f32 %v336, %v339
    %s341 = sld [smem:[#allocation7 + $0x13]]
    %s342 = scalar_lea.vmem [#allocation3], %s341
    %v343 = vld [vmem:[%s342] sm:$0x1]
    %v344 = vadd.f32 %v340, %v343
    %345 = vst [vmem:[#allocation4 + $0x4] sm:$0x1] %v344
    %s346 = sld [smem:[#allocation7 + $0x14]]
    %s347 = scalar_lea.vmem [#allocation3], %s346
    %v348 = vld [vmem:[%s347] sm:$0x1]
    %s349 = sld [smem:[#allocation7 + $0x15]]
    %s350 = scalar_lea.vmem [#allocation3], %s349
    %v351 = vld [vmem:[%s350] sm:$0x1]
    %v352 = vadd.f32 %v348, %v351
    %s353 = sld [smem:[#allocation7 + $0x16]]
    %s354 = scalar_lea.vmem [#allocation3], %s353
    %v355 = vld [vmem:[%s354] sm:$0x1]
    %v356 = vadd.f32 %v352, %v355
    %s357 = sld [smem:[#allocation7 + $0x17]]
    %s358 = scalar_lea.vmem [#allocation3], %s357
    %v359 = vld [vmem:[%s358] sm:$0x1]
    %v360 = vadd.f32 %v356, %v359
    %361 = vst [vmem:[#allocation4 + $0x5] sm:$0x1] %v360
    %s362 = sld [smem:[#allocation7 + $0x18]]
    %s363 = scalar_lea.vmem [#allocation3], %s362
    %v364 = vld [vmem:[%s363] sm:$0x1]
    %s365 = sld [smem:[#allocation7 + $0x19]]
    %s366 = scalar_lea.vmem [#allocation3], %s365
    %v367 = vld [vmem:[%s366] sm:$0x1]
    %v368 = vadd.f32 %v364, %v367
    %s369 = sld [smem:[#allocation7 + $0x1a]]
    %s370 = scalar_lea.vmem [#allocation3], %s369
    %v371 = vld [vmem:[%s370] sm:$0x1]
    %v372 = vadd.f32 %v368, %v371
    %s373 = sld [smem:[#allocation7 + $0x1b]]
    %s374 = scalar_lea.vmem [#allocation3], %s373
    %v375 = vld [vmem:[%s374] sm:$0x1]
    %v376 = vadd.f32 %v372, %v375
    %377 = vst [vmem:[#allocation4 + $0x6] sm:$0x1] %v376
    %s378 = sld [smem:[#allocation7 + $0x1c]]
    %s379 = scalar_lea.vmem [#allocation3], %s378
    %v380 = vld [vmem:[%s379] sm:$0x1]
    %s381 = sld [smem:[#allocation7 + $0x1d]]
    %s382 = scalar_lea.vmem [#allocation3], %s381
    %v383 = vld [vmem:[%s382] sm:$0x1]
    %v384 = vadd.f32 %v380, %v383
    %s385 = sld [smem:[#allocation7 + $0x1e]]
    %s386 = scalar_lea.vmem [#allocation3], %s385
    %v387 = vld [vmem:[%s386] sm:$0x1]
    %v388 = vadd.f32 %v384, %v387
    %s389 = sld [smem:[#allocation7 + $0x1f]]
    %s390 = scalar_lea.vmem [#allocation3], %s389
    %v391 = vld [vmem:[%s390] sm:$0x1]
    %v392 = vadd.f32 %v388, %v391
    %393 = vst [vmem:[#allocation4 + $0x7] sm:$0x1] %v392
    %s394 = sld [smem:[#allocation7 + $0x20]]
    %s395 = scalar_lea.vmem [#allocation3], %s394
    %v396 = vld [vmem:[%s395] sm:$0x1]
    %s397 = sld [smem:[#allocation7 + $0x21]]
    %s398 = scalar_lea.vmem [#allocation3], %s397
    %v399 = vld [vmem:[%s398] sm:$0x1]
    %v400 = vadd.f32 %v396, %v399
    %s401 = sld [smem:[#allocation7 + $0x22]]
    %s402 = scalar_lea.vmem [#allocation3], %s401
    %v403 = vld [vmem:[%s402] sm:$0x1]
    %v404 = vadd.f32 %v400, %v403
    %s405 = sld [smem:[#allocation7 + $0x23]]
    %s406 = scalar_lea.vmem [#allocation3], %s405
    %v407 = vld [vmem:[%s406] sm:$0x1]
    %v408 = vadd.f32 %v404, %v407
    %409 = vst [vmem:[#allocation4 + $0x8] sm:$0x1] %v408
    %s410 = sld [smem:[#allocation7 + $0x24]]
    %s411 = scalar_lea.vmem [#allocation3], %s410
    %v412 = vld [vmem:[%s411] sm:$0x1]
    %s413 = sld [smem:[#allocation7 + $0x25]]
    %s414 = scalar_lea.vmem [#allocation3], %s413
    %v415 = vld [vmem:[%s414] sm:$0x1]
    %v416 = vadd.f32 %v412, %v415
    %s417 = sld [smem:[#allocation7 + $0x26]]
    %s418 = scalar_lea.vmem [#allocation3], %s417
    %v419 = vld [vmem:[%s418] sm:$0x1]
    %v420 = vadd.f32 %v416, %v419
    %s421 = sld [smem:[#allocation7 + $0x27]]
    %s422 = scalar_lea.vmem [#allocation3], %s421
    %v423 = vld [vmem:[%s422] sm:$0x1]
    %v424 = vadd.f32 %v420, %v423
    %425 = vst [vmem:[#allocation4 + $0x9] sm:$0x1] %v424
    %s426 = sld [smem:[#allocation7 + $0x28]]
    %s427 = scalar_lea.vmem [#allocation3], %s426
    %v428 = vld [vmem:[%s427] sm:$0x1]
    %s429 = sld [smem:[#allocation7 + $0x29]]
    %s430 = scalar_lea.vmem [#allocation3], %s429
    %v431 = vld [vmem:[%s430] sm:$0x1]
    %v432 = vadd.f32 %v428, %v431
    %s433 = sld [smem:[#allocation7 + $0x2a]]
    %s434 = scalar_lea.vmem [#allocation3], %s433
    %v435 = vld [vmem:[%s434] sm:$0x1]
    %v436 = vadd.f32 %v432, %v435
    %s437 = sld [smem:[#allocation7 + $0x2b]]
    %s438 = scalar_lea.vmem [#allocation3], %s437
    %v439 = vld [vmem:[%s438] sm:$0x1]
    %v440 = vadd.f32 %v436, %v439
    %441 = vst [vmem:[#allocation4 + $0xa] sm:$0x1] %v440
    %s442 = sld [smem:[#allocation7 + $0x2c]]
    %s443 = scalar_lea.vmem [#allocation3], %s442
    %v444 = vld [vmem:[%s443] sm:$0x1]
    %s445 = sld [smem:[#allocation7 + $0x2d]]
    %s446 = scalar_lea.vmem [#allocation3], %s445
    %v447 = vld [vmem:[%s446] sm:$0x1]
    %v448 = vadd.f32 %v444, %v447
    %s449 = sld [smem:[#allocation7 + $0x2e]]
    %s450 = scalar_lea.vmem [#allocation3], %s449
    %v451 = vld [vmem:[%s450] sm:$0x1]
    %v452 = vadd.f32 %v448, %v451
    %s453 = sld [smem:[#allocation7 + $0x2f]]
    %s454 = scalar_lea.vmem [#allocation3], %s453
    %v455 = vld [vmem:[%s454] sm:$0x1]
    %v456 = vadd.f32 %v452, %v455
    %457 = vst [vmem:[#allocation4 + $0xb] sm:$0x1] %v456
    %s458 = sld [smem:[#allocation7 + $0x30]]
    %s459 = scalar_lea.vmem [#allocation3], %s458
    %v460 = vld [vmem:[%s459] sm:$0x1]
    %s461 = sld [smem:[#allocation7 + $0x31]]
    %s462 = scalar_lea.vmem [#allocation3], %s461
    %v463 = vld [vmem:[%s462] sm:$0x1]
    %v464 = vadd.f32 %v460, %v463
    %s465 = sld [smem:[#allocation7 + $0x32]]
    %s466 = scalar_lea.vmem [#allocation3], %s465
    %v467 = vld [vmem:[%s466] sm:$0x1]
    %v468 = vadd.f32 %v464, %v467
    %s469 = sld [smem:[#allocation7 + $0x33]]
    %s470 = scalar_lea.vmem [#allocation3], %s469
    %v471 = vld [vmem:[%s470] sm:$0x1]
    %v472 = vadd.f32 %v468, %v471
    %473 = vst [vmem:[#allocation4 + $0xc] sm:$0x1] %v472
    %s474 = sld [smem:[#allocation7 + $0x34]]
    %s475 = scalar_lea.vmem [#allocation3], %s474
    %v476 = vld [vmem:[%s475] sm:$0x1]
    %s477 = sld [smem:[#allocation7 + $0x35]]
    %s478 = scalar_lea.vmem [#allocation3], %s477
    %v479 = vld [vmem:[%s478] sm:$0x1]
    %v480 = vadd.f32 %v476, %v479
    %s481 = sld [smem:[#allocation7 + $0x36]]
    %s482 = scalar_lea.vmem [#allocation3], %s481
    %v483 = vld [vmem:[%s482] sm:$0x1]
    %v484 = vadd.f32 %v480, %v483
    %s485 = sld [smem:[#allocation7 + $0x37]]
    %s486 = scalar_lea.vmem [#allocation3], %s485
    %v487 = vld [vmem:[%s486] sm:$0x1]
    %v488 = vadd.f32 %v484, %v487
    %489 = vst [vmem:[#allocation4 + $0xd] sm:$0x1] %v488
    %s490 = sld [smem:[#allocation7 + $0x38]]
    %s491 = scalar_lea.vmem [#allocation3], %s490
    %v492 = vld [vmem:[%s491] sm:$0x1]
    %s493 = sld [smem:[#allocation7 + $0x39]]
    %s494 = scalar_lea.vmem [#allocation3], %s493
    %v495 = vld [vmem:[%s494] sm:$0x1]
    %v496 = vadd.f32 %v492, %v495
    %s497 = sld [smem:[#allocation7 + $0x3a]]
    %s498 = scalar_lea.vmem [#allocation3], %s497
    %v499 = vld [vmem:[%s498] sm:$0x1]
    %v500 = vadd.f32 %v496, %v499
    %s501 = sld [smem:[#allocation7 + $0x3b]]
    %s502 = scalar_lea.vmem [#allocation3], %s501
    %v503 = vld [vmem:[%s502] sm:$0x1]
    %v504 = vadd.f32 %v500, %v503
    %505 = vst [vmem:[#allocation4 + $0xe] sm:$0x1] %v504
    %s506 = sld [smem:[#allocation7 + $0x3c]]
    %s507 = scalar_lea.vmem [#allocation3], %s506
    %v508 = vld [vmem:[%s507] sm:$0x1]
    %s509 = sld [smem:[#allocation7 + $0x3d]]
    %s510 = scalar_lea.vmem [#allocation3], %s509
    %v511 = vld [vmem:[%s510] sm:$0x1]
    %v512 = vadd.f32 %v508, %v511
    %s513 = sld [smem:[#allocation7 + $0x3e]]
    %s514 = scalar_lea.vmem [#allocation3], %s513
    %v515 = vld [vmem:[%s514] sm:$0x1]
    %v516 = vadd.f32 %v512, %v515
    %s517 = sld [smem:[#allocation7 + $0x3f]]
    %s518 = scalar_lea.vmem [#allocation3], %s517
    %v519 = vld [vmem:[%s518] sm:$0x1]
    %v520 = vadd.f32 %v516, %v519
    %521 = vst [vmem:[#allocation4 + $0xf] sm:$0x1] %v520
    %s522 = sld [smem:[#allocation8]]
    %s523 = scalar_lea.vmem [#allocation4], %s522
    %v524 = vld [vmem:[%s523] sm:$0x1]
    %s525 = sld [smem:[#allocation9]]
    %s526 = scalar_lea.vmem [#allocation3], %s525
    %v527 = vld [vmem:[%s526] sm:$0x1]
    %v528 = vsub.f32 %v524, %v527
    %529 = vst [vmem:[#allocation5] sm:$0x1] %v528
    %s530 = sld [smem:[#allocation8 + $0x1]]
    %s531 = scalar_lea.vmem [#allocation4], %s530
    %v532 = vld [vmem:[%s531] sm:$0x1]
    %s533 = sld [smem:[#allocation9 + $0x1]]
    %s534 = scalar_lea.vmem [#allocation3], %s533
    %v535 = vld [vmem:[%s534] sm:$0x1]
    %v536 = vsub.f32 %v532, %v535
    %537 = vst [vmem:[#allocation5 + $0x1] sm:$0x1] %v536
    %s538 = sld [smem:[#allocation8 + $0x2]]
    %s539 = scalar_lea.vmem [#allocation4], %s538
    %v540 = vld [vmem:[%s539] sm:$0x1]
    %s541 = sld [smem:[#allocation9 + $0x2]]
    %s542 = scalar_lea.vmem [#allocation3], %s541
    %v543 = vld [vmem:[%s542] sm:$0x1]
    %v544 = vsub.f32 %v540, %v543
    %545 = vst [vmem:[#allocation5 + $0x2] sm:$0x1] %v544
    %s546 = sld [smem:[#allocation8 + $0x3]]
    %s547 = scalar_lea.vmem [#allocation4], %s546
    %v548 = vld [vmem:[%s547] sm:$0x1]
    %s549 = sld [smem:[#allocation9 + $0x3]]
    %s550 = scalar_lea.vmem [#allocation3], %s549
    %v551 = vld [vmem:[%s550] sm:$0x1]
    %v552 = vsub.f32 %v548, %v551
    %553 = vst [vmem:[#allocation5 + $0x3] sm:$0x1] %v552
    %s554 = sld [smem:[#allocation8 + $0x4]]
    %s555 = scalar_lea.vmem [#allocation4], %s554
    %v556 = vld [vmem:[%s555] sm:$0x1]
    %s557 = sld [smem:[#allocation9 + $0x4]]
    %s558 = scalar_lea.vmem [#allocation3], %s557
    %v559 = vld [vmem:[%s558] sm:$0x1]
    %v560 = vsub.f32 %v556, %v559
    %561 = vst [vmem:[#allocation5 + $0x4] sm:$0x1] %v560
    %s562 = sld [smem:[#allocation8 + $0x5]]
    %s563 = scalar_lea.vmem [#allocation4], %s562
    %v564 = vld [vmem:[%s563] sm:$0x1]
    %s565 = sld [smem:[#allocation9 + $0x5]]
    %s566 = scalar_lea.vmem [#allocation3], %s565
    %v567 = vld [vmem:[%s566] sm:$0x1]
    %v568 = vsub.f32 %v564, %v567
    %569 = vst [vmem:[#allocation5 + $0x5] sm:$0x1] %v568
    %s570 = sld [smem:[#allocation8 + $0x6]]
    %s571 = scalar_lea.vmem [#allocation4], %s570
    %v572 = vld [vmem:[%s571] sm:$0x1]
    %s573 = sld [smem:[#allocation9 + $0x6]]
    %s574 = scalar_lea.vmem [#allocation3], %s573
    %v575 = vld [vmem:[%s574] sm:$0x1]
    %v576 = vsub.f32 %v572, %v575
    %577 = vst [vmem:[#allocation5 + $0x6] sm:$0x1] %v576
    %s578 = sld [smem:[#allocation8 + $0x7]]
    %s579 = scalar_lea.vmem [#allocation4], %s578
    %v580 = vld [vmem:[%s579] sm:$0x1]
    %s581 = sld [smem:[#allocation9 + $0x7]]
    %s582 = scalar_lea.vmem [#allocation3], %s581
    %v583 = vld [vmem:[%s582] sm:$0x1]
    %v584 = vsub.f32 %v580, %v583
    %585 = vst [vmem:[#allocation5 + $0x7] sm:$0x1] %v584
    %s586 = sld [smem:[#allocation8 + $0x8]]
    %s587 = scalar_lea.vmem [#allocation4], %s586
    %v588 = vld [vmem:[%s587] sm:$0x1]
    %s589 = sld [smem:[#allocation9 + $0x8]]
    %s590 = scalar_lea.vmem [#allocation3], %s589
    %v591 = vld [vmem:[%s590] sm:$0x1]
    %v592 = vsub.f32 %v588, %v591
    %593 = vst [vmem:[#allocation5 + $0x8] sm:$0x1] %v592
    %s594 = sld [smem:[#allocation8 + $0x9]]
    %s595 = scalar_lea.vmem [#allocation4], %s594
    %v596 = vld [vmem:[%s595] sm:$0x1]
    %s597 = sld [smem:[#allocation9 + $0x9]]
    %s598 = scalar_lea.vmem [#allocation3], %s597
    %v599 = vld [vmem:[%s598] sm:$0x1]
    %v600 = vsub.f32 %v596, %v599
    %601 = vst [vmem:[#allocation5 + $0x9] sm:$0x1] %v600
    %s602 = sld [smem:[#allocation8 + $0xa]]
    %s603 = scalar_lea.vmem [#allocation4], %s602
    %v604 = vld [vmem:[%s603] sm:$0x1]
    %s605 = sld [smem:[#allocation9 + $0xa]]
    %s606 = scalar_lea.vmem [#allocation3], %s605
    %v607 = vld [vmem:[%s606] sm:$0x1]
    %v608 = vsub.f32 %v604, %v607
    %609 = vst [vmem:[#allocation5 + $0xa] sm:$0x1] %v608
    %s610 = sld [smem:[#allocation8 + $0xb]]
    %s611 = scalar_lea.vmem [#allocation4], %s610
    %v612 = vld [vmem:[%s611] sm:$0x1]
    %s613 = sld [smem:[#allocation9 + $0xb]]
    %s614 = scalar_lea.vmem [#allocation3], %s613
    %v615 = vld [vmem:[%s614] sm:$0x1]
    %v616 = vsub.f32 %v612, %v615
    %617 = vst [vmem:[#allocation5 + $0xb] sm:$0x1] %v616
    %s618 = sld [smem:[#allocation8 + $0xc]]
    %s619 = scalar_lea.vmem [#allocation4], %s618
    %v620 = vld [vmem:[%s619] sm:$0x1]
    %s621 = sld [smem:[#allocation9 + $0xc]]
    %s622 = scalar_lea.vmem [#allocation3], %s621
    %v623 = vld [vmem:[%s622] sm:$0x1]
    %v624 = vsub.f32 %v620, %v623
    %625 = vst [vmem:[#allocation5 + $0xc] sm:$0x1] %v624
    %s626 = sld [smem:[#allocation8 + $0xd]]
    %s627 = scalar_lea.vmem [#allocation4], %s626
    %v628 = vld [vmem:[%s627] sm:$0x1]
    %s629 = sld [smem:[#allocation9 + $0xd]]
    %s630 = scalar_lea.vmem [#allocation3], %s629
    %v631 = vld [vmem:[%s630] sm:$0x1]
    %v632 = vsub.f32 %v628, %v631
    %633 = vst [vmem:[#allocation5 + $0xd] sm:$0x1] %v632
    %s634 = sld [smem:[#allocation8 + $0xe]]
    %s635 = scalar_lea.vmem [#allocation4], %s634
    %v636 = vld [vmem:[%s635] sm:$0x1]
    %s637 = sld [smem:[#allocation9 + $0xe]]
    %s638 = scalar_lea.vmem [#allocation3], %s637
    %v639 = vld [vmem:[%s638] sm:$0x1]
    %v640 = vsub.f32 %v636, %v639
    %641 = vst [vmem:[#allocation5 + $0xe] sm:$0x1] %v640
    %s642 = sld [smem:[#allocation8 + $0xf]]
    %s643 = scalar_lea.vmem [#allocation4], %s642
    %v644 = vld [vmem:[%s643] sm:$0x1]
    %s645 = sld [smem:[#allocation9 + $0xf]]
    %s646 = scalar_lea.vmem [#allocation3], %s645
    %v647 = vld [vmem:[%s646] sm:$0x1]
    %v648 = vsub.f32 %v644, %v647
    %649 = vst [vmem:[#allocation5 + $0xf] sm:$0x1] %v648
    %s650 = sld [smem:[#allocation8 + $0x10]]
    %s651 = scalar_lea.vmem [#allocation4], %s650
    %v652 = vld [vmem:[%s651] sm:$0x1]
    %s653 = sld [smem:[#allocation9 + $0x10]]
    %s654 = scalar_lea.vmem [#allocation3], %s653
    %v655 = vld [vmem:[%s654] sm:$0x1]
    %v656 = vsub.f32 %v652, %v655
    %657 = vst [vmem:[#allocation5 + $0x10] sm:$0x1] %v656
    %s658 = sld [smem:[#allocation8 + $0x11]]
    %s659 = scalar_lea.vmem [#allocation4], %s658
    %v660 = vld [vmem:[%s659] sm:$0x1]
    %s661 = sld [smem:[#allocation9 + $0x11]]
    %s662 = scalar_lea.vmem [#allocation3], %s661
    %v663 = vld [vmem:[%s662] sm:$0x1]
    %v664 = vsub.f32 %v660, %v663
    %665 = vst [vmem:[#allocation5 + $0x11] sm:$0x1] %v664
    %s666 = sld [smem:[#allocation8 + $0x12]]
    %s667 = scalar_lea.vmem [#allocation4], %s666
    %v668 = vld [vmem:[%s667] sm:$0x1]
    %s669 = sld [smem:[#allocation9 + $0x12]]
    %s670 = scalar_lea.vmem [#allocation3], %s669
    %v671 = vld [vmem:[%s670] sm:$0x1]
    %v672 = vsub.f32 %v668, %v671
    %673 = vst [vmem:[#allocation5 + $0x12] sm:$0x1] %v672
    %s674 = sld [smem:[#allocation8 + $0x13]]
    %s675 = scalar_lea.vmem [#allocation4], %s674
    %v676 = vld [vmem:[%s675] sm:$0x1]
    %s677 = sld [smem:[#allocation9 + $0x13]]
    %s678 = scalar_lea.vmem [#allocation3], %s677
    %v679 = vld [vmem:[%s678] sm:$0x1]
    %v680 = vsub.f32 %v676, %v679
    %681 = vst [vmem:[#allocation5 + $0x13] sm:$0x1] %v680
    %s682 = sld [smem:[#allocation8 + $0x14]]
    %s683 = scalar_lea.vmem [#allocation4], %s682
    %v684 = vld [vmem:[%s683] sm:$0x1]
    %s685 = sld [smem:[#allocation9 + $0x14]]
    %s686 = scalar_lea.vmem [#allocation3], %s685
    %v687 = vld [vmem:[%s686] sm:$0x1]
    %v688 = vsub.f32 %v684, %v687
    %689 = vst [vmem:[#allocation5 + $0x14] sm:$0x1] %v688
    %s690 = sld [smem:[#allocation8 + $0x15]]
    %s691 = scalar_lea.vmem [#allocation4], %s690
    %v692 = vld [vmem:[%s691] sm:$0x1]
    %s693 = sld [smem:[#allocation9 + $0x15]]
    %s694 = scalar_lea.vmem [#allocation3], %s693
    %v695 = vld [vmem:[%s694] sm:$0x1]
    %v696 = vsub.f32 %v692, %v695
    %697 = vst [vmem:[#allocation5 + $0x15] sm:$0x1] %v696
    %s698 = sld [smem:[#allocation8 + $0x16]]
    %s699 = scalar_lea.vmem [#allocation4], %s698
    %v700 = vld [vmem:[%s699] sm:$0x1]
    %s701 = sld [smem:[#allocation9 + $0x16]]
    %s702 = scalar_lea.vmem [#allocation3], %s701
    %v703 = vld [vmem:[%s702] sm:$0x1]
    %v704 = vsub.f32 %v700, %v703
    %705 = vst [vmem:[#allocation5 + $0x16] sm:$0x1] %v704
    %s706 = sld [smem:[#allocation8 + $0x17]]
    %s707 = scalar_lea.vmem [#allocation4], %s706
    %v708 = vld [vmem:[%s707] sm:$0x1]
    %s709 = sld [smem:[#allocation9 + $0x17]]
    %s710 = scalar_lea.vmem [#allocation3], %s709
    %v711 = vld [vmem:[%s710] sm:$0x1]
    %v712 = vsub.f32 %v708, %v711
    %713 = vst [vmem:[#allocation5 + $0x17] sm:$0x1] %v712
    %s714 = sld [smem:[#allocation8 + $0x18]]
    %s715 = scalar_lea.vmem [#allocation4], %s714
    %v716 = vld [vmem:[%s715] sm:$0x1]
    %s717 = sld [smem:[#allocation9 + $0x18]]
    %s718 = scalar_lea.vmem [#allocation3], %s717
    %v719 = vld [vmem:[%s718] sm:$0x1]
    %v720 = vsub.f32 %v716, %v719
    %721 = vst [vmem:[#allocation5 + $0x18] sm:$0x1] %v720
    %s722 = sld [smem:[#allocation8 + $0x19]]
    %s723 = scalar_lea.vmem [#allocation4], %s722
    %v724 = vld [vmem:[%s723] sm:$0x1]
    %s725 = sld [smem:[#allocation9 + $0x19]]
    %s726 = scalar_lea.vmem [#allocation3], %s725
    %v727 = vld [vmem:[%s726] sm:$0x1]
    %v728 = vsub.f32 %v724, %v727
    %729 = vst [vmem:[#allocation5 + $0x19] sm:$0x1] %v728
    %s730 = sld [smem:[#allocation8 + $0x1a]]
    %s731 = scalar_lea.vmem [#allocation4], %s730
    %v732 = vld [vmem:[%s731] sm:$0x1]
    %s733 = sld [smem:[#allocation9 + $0x1a]]
    %s734 = scalar_lea.vmem [#allocation3], %s733
    %v735 = vld [vmem:[%s734] sm:$0x1]
    %v736 = vsub.f32 %v732, %v735
    %737 = vst [vmem:[#allocation5 + $0x1a] sm:$0x1] %v736
    %s738 = sld [smem:[#allocation8 + $0x1b]]
    %s739 = scalar_lea.vmem [#allocation4], %s738
    %v740 = vld [vmem:[%s739] sm:$0x1]
    %s741 = sld [smem:[#allocation9 + $0x1b]]
    %s742 = scalar_lea.vmem [#allocation3], %s741
    %v743 = vld [vmem:[%s742] sm:$0x1]
    %v744 = vsub.f32 %v740, %v743
    %745 = vst [vmem:[#allocation5 + $0x1b] sm:$0x1] %v744
    %s746 = sld [smem:[#allocation8 + $0x1c]]
    %s747 = scalar_lea.vmem [#allocation4], %s746
    %v748 = vld [vmem:[%s747] sm:$0x1]
    %s749 = sld [smem:[#allocation9 + $0x1c]]
    %s750 = scalar_lea.vmem [#allocation3], %s749
    %v751 = vld [vmem:[%s750] sm:$0x1]
    %v752 = vsub.f32 %v748, %v751
    %753 = vst [vmem:[#allocation5 + $0x1c] sm:$0x1] %v752
    %s754 = sld [smem:[#allocation8 + $0x1d]]
    %s755 = scalar_lea.vmem [#allocation4], %s754
    %v756 = vld [vmem:[%s755] sm:$0x1]
    %s757 = sld [smem:[#allocation9 + $0x1d]]
    %s758 = scalar_lea.vmem [#allocation3], %s757
    %v759 = vld [vmem:[%s758] sm:$0x1]
    %v760 = vsub.f32 %v756, %v759
    %761 = vst [vmem:[#allocation5 + $0x1d] sm:$0x1] %v760
    %s762 = sld [smem:[#allocation8 + $0x1e]]
    %s763 = scalar_lea.vmem [#allocation4], %s762
    %v764 = vld [vmem:[%s763] sm:$0x1]
    %s765 = sld [smem:[#allocation9 + $0x1e]]
    %s766 = scalar_lea.vmem [#allocation3], %s765
    %v767 = vld [vmem:[%s766] sm:$0x1]
    %v768 = vsub.f32 %v764, %v767
    %769 = vst [vmem:[#allocation5 + $0x1e] sm:$0x1] %v768
    %s770 = sld [smem:[#allocation8 + $0x1f]]
    %s771 = scalar_lea.vmem [#allocation4], %s770
    %v772 = vld [vmem:[%s771] sm:$0x1]
    %s773 = sld [smem:[#allocation9 + $0x1f]]
    %s774 = scalar_lea.vmem [#allocation3], %s773
    %v775 = vld [vmem:[%s774] sm:$0x1]
    %v776 = vsub.f32 %v772, %v775
    %777 = vst [vmem:[#allocation5 + $0x1f] sm:$0x1] %v776
    %v778 = vld [vmem:[#allocation5] sm:$0xff]
    %v779 = vld [vmem:[#allocation5 + $0x8] sm:$0xff]
    %v780 = vld [vmem:[#allocation5 + $0x10] sm:$0xff]
    %v781 = vld [vmem:[#allocation5 + $0x18] sm:$0xff]
    %v782 = vpack.c.bf16 %v779, %v778
    %v783 = vpack.c.bf16 %v781, %v780
    %v784 = vld [vmem:[#allocation16] sm:$0xf]
    %v785 = vld [vmem:[#allocation16 + $0x4] sm:$0xf]
    %v786 = vld [vmem:[#allocation16 + $0x8] sm:$0xf]
    %v787 = vld [vmem:[#allocation16 + $0xc] sm:$0xf]
    %v788 = vld [vmem:[#allocation16 + $0x10] sm:$0xf]
    %v789 = vld [vmem:[#allocation16 + $0x14] sm:$0xf]
    %v790 = vld [vmem:[#allocation16 + $0x18] sm:$0xf]
    %v791 = vld [vmem:[#allocation16 + $0x1c] sm:$0xf]
    %v792 = vld [vmem:[#allocation16 + $0x20] sm:$0xf]
    %v793 = vld [vmem:[#allocation16 + $0x24] sm:$0xf]
    %v794 = vld [vmem:[#allocation16 + $0x28] sm:$0xf]
    %v795 = vld [vmem:[#allocation16 + $0x2c] sm:$0xf]
    %v796 = vld [vmem:[#allocation16 + $0x30] sm:$0xf]
    %v797 = vld [vmem:[#allocation16 + $0x34] sm:$0xf]
    %v798 = vld [vmem:[#allocation16 + $0x38] sm:$0xf]
    %v799 = vld [vmem:[#allocation16 + $0x3c] sm:$0xf]
    %v816 = vunpack.c.l.b16 %v784
    %v817 = vunpack.c.l.b16 %v785
    %v818 = vunpack.c.l.b16 %v786
    %v819 = vunpack.c.l.b16 %v787
    %v820 = vunpack.c.l.b16 %v788
    %v821 = vunpack.c.l.b16 %v789
    %v822 = vunpack.c.l.b16 %v790
    %v823 = vunpack.c.l.b16 %v791
    %v824 = vunpack.c.l.b16 %v792
    %v825 = vunpack.c.l.b16 %v793
    %v826 = vunpack.c.l.b16 %v794
    %v827 = vunpack.c.l.b16 %v795
    %v828 = vunpack.c.l.b16 %v796
    %v829 = vunpack.c.l.b16 %v797
    %v830 = vunpack.c.l.b16 %v798
    %v831 = vunpack.c.l.b16 %v799
    %v832 = vpack.c.b16 %v817, %v816
    %v833 = vpack.c.b16 %v819, %v818
    %v834 = vpack.c.b16 %v821, %v820
    %v835 = vpack.c.b16 %v823, %v822
    %v836 = vpack.c.b16 %v825, %v824
    %v837 = vpack.c.b16 %v827, %v826
    %v838 = vpack.c.b16 %v829, %v828
    %v839 = vpack.c.b16 %v831, %v830
    %848 = vmatprep.subr.bf16.mxu0 0
    %849 = vmatpush1.bf16.msra.mxu0 %v839
    %850 = vmatprep.subr.bf16.mxu0 0
    %851 = vmatpush1.bf16.msra.mxu0 %v838
    %852 = vmatprep.subr.bf16.mxu0 0
    %853 = vmatpush1.bf16.msra.mxu0 %v837
    %854 = vmatprep.subr.bf16.mxu0 0
    %855 = vmatpush1.bf16.msra.mxu0 %v836
    %856 = vmatprep.subr.bf16.mxu0 0
    %857 = vmatpush1.bf16.msra.mxu0 %v835
    %858 = vmatprep.subr.bf16.mxu0 0
    %859 = vmatpush1.bf16.msra.mxu0 %v834
    %860 = vmatprep.subr.bf16.mxu0 0
    %861 = vmatpush1.bf16.msra.mxu0 %v833
    %862 = vmatprep.subr.bf16.mxu0 0
    %863 = vmatpush1.bf16.msra.mxu0 %v832
    %864 = vmatprep.subr.bf16.mxu0 0
    %865 = vmatpush2.bf16.msra.mxu0 0
    %866 = vmatprep.subr.bf16.mxu0 0
    %867 = vmatpush2.bf16.msra.mxu0 0
    %868 = vmatprep.subr.bf16.mxu0 0
    %869 = vmatpush2.bf16.msra.mxu0 0
    %870 = vmatprep.subr.bf16.mxu0 0
    %871 = vmatpush2.bf16.msra.mxu0 0
    %872 = vmatprep.subr.bf16.mxu0 0
    %873 = vmatpush2.bf16.msra.mxu0 0
    %874 = vmatprep.subr.bf16.mxu0 0
    %875 = vmatpush2.bf16.msra.mxu0 0
    %876 = vmatprep.subr.bf16.mxu0 0
    %877 = vmatpush2.bf16.msra.mxu0 0
    %878 = vmatprep.subr.bf16.mxu0 0
    %879 = vmatpush2.bf16.msra.mxu0 0
    %880 = vmatprep.mubr.bf16.mxu0 0
    %881 = vmatmul.mubr.bf16.gmra.mxu0 %v782
    %v882 = vpop.f32.mrf.mxu0
    %v883 = vadd.f32 0.0, %v882
    %v884 = vpop.f32.mrf.mxu0
    %v885 = vpop.f32.mrf.mxu0
    %v886 = vadd.f32 0.0, %v885
    %v887 = vpop.f32.mrf.mxu0
    %888 = vmatprep.mubr.bf16.mxu0 0
    %889 = vmatmul.mubr.bf16.gmra.mxu0 %v783
    %v890 = vpop.f32.mrf.mxu0
    %v891 = vadd.f32 0.0, %v890
    %v892 = vpop.f32.mrf.mxu0
    %v893 = vpop.f32.mrf.mxu0
    %v894 = vadd.f32 0.0, %v893
    %v895 = vpop.f32.mrf.mxu0
    %896 = vdwg.mxu0
    %v897 = vld [vmem:[#allocation2] sm:$0xff]
    %v898 = vld [vmem:[#allocation2 + $0x8] sm:$0xff]
    %v899 = vld [vmem:[#allocation2 + $0x10] sm:$0xff]
    %v900 = vld [vmem:[#allocation2 + $0x18] sm:$0xff]
    %v901 = vadd.f32 %v897, %v883
    %v902 = vadd.f32 %v898, %v886
    %v903 = vadd.f32 %v899, %v891
    %v904 = vadd.f32 %v900, %v894
    %v905 = vmax.f32 %v901, 0.0
    %v906 = vmax.f32 %v902, 0.0
    %v907 = vmax.f32 %v903, 0.0
    %v908 = vmax.f32 %v904, 0.0
    %909 = vst [vmem:[#allocation3] sm:$0xff] %v905
    %910 = vst [vmem:[#allocation3 + $0x8] sm:$0xff] %v906
    %911 = vst [vmem:[#allocation3 + $0x10] sm:$0xff] %v907
    %912 = vst [vmem:[#allocation3 + $0x18] sm:$0xff] %v908
    %s913 = sld [smem:[#allocation7]]
    %s914 = scalar_lea.vmem [#allocation3], %s913
    %v915 = vld [vmem:[%s914] sm:$0x1]
    %s916 = sld [smem:[#allocation7 + $0x1]]
    %s917 = scalar_lea.vmem [#allocation3], %s916
    %v918 = vld [vmem:[%s917] sm:$0x1]
    %v919 = vadd.f32 %v915, %v918
    %s920 = sld [smem:[#allocation7 + $0x2]]
    %s921 = scalar_lea.vmem [#allocation3], %s920
    %v922 = vld [vmem:[%s921] sm:$0x1]
    %v923 = vadd.f32 %v919, %v922
    %s924 = sld [smem:[#allocation7 + $0x3]]
    %s925 = scalar_lea.vmem [#allocation3], %s924
    %v926 = vld [vmem:[%s925] sm:$0x1]
    %v927 = vadd.f32 %v923, %v926
    %928 = vst [vmem:[#allocation4] sm:$0x1] %v927
    %s929 = sld [smem:[#allocation7 + $0x4]]
    %s930 = scalar_lea.vmem [#allocation3], %s929
    %v931 = vld [vmem:[%s930] sm:$0x1]
    %s932 = sld [smem:[#allocation7 + $0x5]]
    %s933 = scalar_lea.vmem [#allocation3], %s932
    %v934 = vld [vmem:[%s933] sm:$0x1]
    %v935 = vadd.f32 %v931, %v934
    %s936 = sld [smem:[#allocation7 + $0x6]]
    %s937 = scalar_lea.vmem [#allocation3], %s936
    %v938 = vld [vmem:[%s937] sm:$0x1]
    %v939 = vadd.f32 %v935, %v938
    %s940 = sld [smem:[#allocation7 + $0x7]]
    %s941 = scalar_lea.vmem [#allocation3], %s940
    %v942 = vld [vmem:[%s941] sm:$0x1]
    %v943 = vadd.f32 %v939, %v942
    %944 = vst [vmem:[#allocation4 + $0x1] sm:$0x1] %v943
    %s945 = sld [smem:[#allocation7 + $0x8]]
    %s946 = scalar_lea.vmem [#allocation3], %s945
    %v947 = vld [vmem:[%s946] sm:$0x1]
    %s948 = sld [smem:[#allocation7 + $0x9]]
    %s949 = scalar_lea.vmem [#allocation3], %s948
    %v950 = vld [vmem:[%s949] sm:$0x1]
    %v951 = vadd.f32 %v947, %v950
    %s952 = sld [smem:[#allocation7 + $0xa]]
    %s953 = scalar_lea.vmem [#allocation3], %s952
    %v954 = vld [vmem:[%s953] sm:$0x1]
    %v955 = vadd.f32 %v951, %v954
    %s956 = sld [smem:[#allocation7 + $0xb]]
    %s957 = scalar_lea.vmem [#allocation3], %s956
    %v958 = vld [vmem:[%s957] sm:$0x1]
    %v959 = vadd.f32 %v955, %v958
    %960 = vst [vmem:[#allocation4 + $0x2] sm:$0x1] %v959
    %s961 = sld [smem:[#allocation7 + $0xc]]
    %s962 = scalar_lea.vmem [#allocation3], %s961
    %v963 = vld [vmem:[%s962] sm:$0x1]
    %s964 = sld [smem:[#allocation7 + $0xd]]
    %s965 = scalar_lea.vmem [#allocation3], %s964
    %v966 = vld [vmem:[%s965] sm:$0x1]
    %v967 = vadd.f32 %v963, %v966
    %s968 = sld [smem:[#allocation7 + $0xe]]
    %s969 = scalar_lea.vmem [#allocation3], %s968
    %v970 = vld [vmem:[%s969] sm:$0x1]
    %v971 = vadd.f32 %v967, %v970
    %s972 = sld [smem:[#allocation7 + $0xf]]
    %s973 = scalar_lea.vmem [#allocation3], %s972
    %v974 = vld [vmem:[%s973] sm:$0x1]
    %v975 = vadd.f32 %v971, %v974
    %976 = vst [vmem:[#allocation4 + $0x3] sm:$0x1] %v975
    %s977 = sld [smem:[#allocation7 + $0x10]]
    %s978 = scalar_lea.vmem [#allocation3], %s977
    %v979 = vld [vmem:[%s978] sm:$0x1]
    %s980 = sld [smem:[#allocation7 + $0x11]]
    %s981 = scalar_lea.vmem [#allocation3], %s980
    %v982 = vld [vmem:[%s981] sm:$0x1]
    %v983 = vadd.f32 %v979, %v982
    %s984 = sld [smem:[#allocation7 + $0x12]]
    %s985 = scalar_lea.vmem [#allocation3], %s984
    %v986 = vld [vmem:[%s985] sm:$0x1]
    %v987 = vadd.f32 %v983, %v986
    %s988 = sld [smem:[#allocation7 + $0x13]]
    %s989 = scalar_lea.vmem [#allocation3], %s988
    %v990 = vld [vmem:[%s989] sm:$0x1]
    %v991 = vadd.f32 %v987, %v990
    %992 = vst [vmem:[#allocation4 + $0x4] sm:$0x1] %v991
    %s993 = sld [smem:[#allocation7 + $0x14]]
    %s994 = scalar_lea.vmem [#allocation3], %s993
    %v995 = vld [vmem:[%s994] sm:$0x1]
    %s996 = sld [smem:[#allocation7 + $0x15]]
    %s997 = scalar_lea.vmem [#allocation3], %s996
    %v998 = vld [vmem:[%s997] sm:$0x1]
    %v999 = vadd.f32 %v995, %v998
    %s1000 = sld [smem:[#allocation7 + $0x16]]
    %s1001 = scalar_lea.vmem [#allocation3], %s1000
    %v1002 = vld [vmem:[%s1001] sm:$0x1]
    %v1003 = vadd.f32 %v999, %v1002
    %s1004 = sld [smem:[#allocation7 + $0x17]]
    %s1005 = scalar_lea.vmem [#allocation3], %s1004
    %v1006 = vld [vmem:[%s1005] sm:$0x1]
    %v1007 = vadd.f32 %v1003, %v1006
    %1008 = vst [vmem:[#allocation4 + $0x5] sm:$0x1] %v1007
    %s1009 = sld [smem:[#allocation7 + $0x18]]
    %s1010 = scalar_lea.vmem [#allocation3], %s1009
    %v1011 = vld [vmem:[%s1010] sm:$0x1]
    %s1012 = sld [smem:[#allocation7 + $0x19]]
    %s1013 = scalar_lea.vmem [#allocation3], %s1012
    %v1014 = vld [vmem:[%s1013] sm:$0x1]
    %v1015 = vadd.f32 %v1011, %v1014
    %s1016 = sld [smem:[#allocation7 + $0x1a]]
    %s1017 = scalar_lea.vmem [#allocation3], %s1016
    %v1018 = vld [vmem:[%s1017] sm:$0x1]
    %v1019 = vadd.f32 %v1015, %v1018
    %s1020 = sld [smem:[#allocation7 + $0x1b]]
    %s1021 = scalar_lea.vmem [#allocation3], %s1020
    %v1022 = vld [vmem:[%s1021] sm:$0x1]
    %v1023 = vadd.f32 %v1019, %v1022
    %1024 = vst [vmem:[#allocation4 + $0x6] sm:$0x1] %v1023
    %s1025 = sld [smem:[#allocation7 + $0x1c]]
    %s1026 = scalar_lea.vmem [#allocation3], %s1025
    %v1027 = vld [vmem:[%s1026] sm:$0x1]
    %s1028 = sld [smem:[#allocation7 + $0x1d]]
    %s1029 = scalar_lea.vmem [#allocation3], %s1028
    %v1030 = vld [vmem:[%s1029] sm:$0x1]
    %v1031 = vadd.f32 %v1027, %v1030
    %s1032 = sld [smem:[#allocation7 + $0x1e]]
    %s1033 = scalar_lea.vmem [#allocation3], %s1032
    %v1034 = vld [vmem:[%s1033] sm:$0x1]
    %v1035 = vadd.f32 %v1031, %v1034
    %s1036 = sld [smem:[#allocation7 + $0x1f]]
    %s1037 = scalar_lea.vmem [#allocation3], %s1036
    %v1038 = vld [vmem:[%s1037] sm:$0x1]
    %v1039 = vadd.f32 %v1035, %v1038
    %1040 = vst [vmem:[#allocation4 + $0x7] sm:$0x1] %v1039
    %s1041 = sld [smem:[#allocation7 + $0x20]]
    %s1042 = scalar_lea.vmem [#allocation3], %s1041
    %v1043 = vld [vmem:[%s1042] sm:$0x1]
    %s1044 = sld [smem:[#allocation7 + $0x21]]
    %s1045 = scalar_lea.vmem [#allocation3], %s1044
    %v1046 = vld [vmem:[%s1045] sm:$0x1]
    %v1047 = vadd.f32 %v1043, %v1046
    %s1048 = sld [smem:[#allocation7 + $0x22]]
    %s1049 = scalar_lea.vmem [#allocation3], %s1048
    %v1050 = vld [vmem:[%s1049] sm:$0x1]
    %v1051 = vadd.f32 %v1047, %v1050
    %s1052 = sld [smem:[#allocation7 + $0x23]]
    %s1053 = scalar_lea.vmem [#allocation3], %s1052
    %v1054 = vld [vmem:[%s1053] sm:$0x1]
    %v1055 = vadd.f32 %v1051, %v1054
    %1056 = vst [vmem:[#allocation4 + $0x8] sm:$0x1] %v1055
    %s1057 = sld [smem:[#allocation7 + $0x24]]
    %s1058 = scalar_lea.vmem [#allocation3], %s1057
    %v1059 = vld [vmem:[%s1058] sm:$0x1]
    %s1060 = sld [smem:[#allocation7 + $0x25]]
    %s1061 = scalar_lea.vmem [#allocation3], %s1060
    %v1062 = vld [vmem:[%s1061] sm:$0x1]
    %v1063 = vadd.f32 %v1059, %v1062
    %s1064 = sld [smem:[#allocation7 + $0x26]]
    %s1065 = scalar_lea.vmem [#allocation3], %s1064
    %v1066 = vld [vmem:[%s1065] sm:$0x1]
    %v1067 = vadd.f32 %v1063, %v1066
    %s1068 = sld [smem:[#allocation7 + $0x27]]
    %s1069 = scalar_lea.vmem [#allocation3], %s1068
    %v1070 = vld [vmem:[%s1069] sm:$0x1]
    %v1071 = vadd.f32 %v1067, %v1070
    %1072 = vst [vmem:[#allocation4 + $0x9] sm:$0x1] %v1071
    %s1073 = sld [smem:[#allocation7 + $0x28]]
    %s1074 = scalar_lea.vmem [#allocation3], %s1073
    %v1075 = vld [vmem:[%s1074] sm:$0x1]
    %s1076 = sld [smem:[#allocation7 + $0x29]]
    %s1077 = scalar_lea.vmem [#allocation3], %s1076
    %v1078 = vld [vmem:[%s1077] sm:$0x1]
    %v1079 = vadd.f32 %v1075, %v1078
    %s1080 = sld [smem:[#allocation7 + $0x2a]]
    %s1081 = scalar_lea.vmem [#allocation3], %s1080
    %v1082 = vld [vmem:[%s1081] sm:$0x1]
    %v1083 = vadd.f32 %v1079, %v1082
    %s1084 = sld [smem:[#allocation7 + $0x2b]]
    %s1085 = scalar_lea.vmem [#allocation3], %s1084
    %v1086 = vld [vmem:[%s1085] sm:$0x1]
    %v1087 = vadd.f32 %v1083, %v1086
    %1088 = vst [vmem:[#allocation4 + $0xa] sm:$0x1] %v1087
    %s1089 = sld [smem:[#allocation7 + $0x2c]]
    %s1090 = scalar_lea.vmem [#allocation3], %s1089
    %v1091 = vld [vmem:[%s1090] sm:$0x1]
    %s1092 = sld [smem:[#allocation7 + $0x2d]]
    %s1093 = scalar_lea.vmem [#allocation3], %s1092
    %v1094 = vld [vmem:[%s1093] sm:$0x1]
    %v1095 = vadd.f32 %v1091, %v1094
    %s1096 = sld [smem:[#allocation7 + $0x2e]]
    %s1097 = scalar_lea.vmem [#allocation3], %s1096
    %v1098 = vld [vmem:[%s1097] sm:$0x1]
    %v1099 = vadd.f32 %v1095, %v1098
    %s1100 = sld [smem:[#allocation7 + $0x2f]]
    %s1101 = scalar_lea.vmem [#allocation3], %s1100
    %v1102 = vld [vmem:[%s1101] sm:$0x1]
    %v1103 = vadd.f32 %v1099, %v1102
    %1104 = vst [vmem:[#allocation4 + $0xb] sm:$0x1] %v1103
    %s1105 = sld [smem:[#allocation7 + $0x30]]
    %s1106 = scalar_lea.vmem [#allocation3], %s1105
    %v1107 = vld [vmem:[%s1106] sm:$0x1]
    %s1108 = sld [smem:[#allocation7 + $0x31]]
    %s1109 = scalar_lea.vmem [#allocation3], %s1108
    %v1110 = vld [vmem:[%s1109] sm:$0x1]
    %v1111 = vadd.f32 %v1107, %v1110
    %s1112 = sld [smem:[#allocation7 + $0x32]]
    %s1113 = scalar_lea.vmem [#allocation3], %s1112
    %v1114 = vld [vmem:[%s1113] sm:$0x1]
    %v1115 = vadd.f32 %v1111, %v1114
    %s1116 = sld [smem:[#allocation7 + $0x33]]
    %s1117 = scalar_lea.vmem [#allocation3], %s1116
    %v1118 = vld [vmem:[%s1117] sm:$0x1]
    %v1119 = vadd.f32 %v1115, %v1118
    %1120 = vst [vmem:[#allocation4 + $0xc] sm:$0x1] %v1119
    %s1121 = sld [smem:[#allocation7 + $0x34]]
    %s1122 = scalar_lea.vmem [#allocation3], %s1121
    %v1123 = vld [vmem:[%s1122] sm:$0x1]
    %s1124 = sld [smem:[#allocation7 + $0x35]]
    %s1125 = scalar_lea.vmem [#allocation3], %s1124
    %v1126 = vld [vmem:[%s1125] sm:$0x1]
    %v1127 = vadd.f32 %v1123, %v1126
    %s1128 = sld [smem:[#allocation7 + $0x36]]
    %s1129 = scalar_lea.vmem [#allocation3], %s1128
    %v1130 = vld [vmem:[%s1129] sm:$0x1]
    %v1131 = vadd.f32 %v1127, %v1130
    %s1132 = sld [smem:[#allocation7 + $0x37]]
    %s1133 = scalar_lea.vmem [#allocation3], %s1132
    %v1134 = vld [vmem:[%s1133] sm:$0x1]
    %v1135 = vadd.f32 %v1131, %v1134
    %1136 = vst [vmem:[#allocation4 + $0xd] sm:$0x1] %v1135
    %s1137 = sld [smem:[#allocation7 + $0x38]]
    %s1138 = scalar_lea.vmem [#allocation3], %s1137
    %v1139 = vld [vmem:[%s1138] sm:$0x1]
    %s1140 = sld [smem:[#allocation7 + $0x39]]
    %s1141 = scalar_lea.vmem [#allocation3], %s1140
    %v1142 = vld [vmem:[%s1141] sm:$0x1]
    %v1143 = vadd.f32 %v1139, %v1142
    %s1144 = sld [smem:[#allocation7 + $0x3a]]
    %s1145 = scalar_lea.vmem [#allocation3], %s1144
    %v1146 = vld [vmem:[%s1145] sm:$0x1]
    %v1147 = vadd.f32 %v1143, %v1146
    %s1148 = sld [smem:[#allocation7 + $0x3b]]
    %s1149 = scalar_lea.vmem [#allocation3], %s1148
    %v1150 = vld [vmem:[%s1149] sm:$0x1]
    %v1151 = vadd.f32 %v1147, %v1150
    %1152 = vst [vmem:[#allocation4 + $0xe] sm:$0x1] %v1151
    %s1153 = sld [smem:[#allocation7 + $0x3c]]
    %s1154 = scalar_lea.vmem [#allocation3], %s1153
    %v1155 = vld [vmem:[%s1154] sm:$0x1]
    %s1156 = sld [smem:[#allocation7 + $0x3d]]
    %s1157 = scalar_lea.vmem [#allocation3], %s1156
    %v1158 = vld [vmem:[%s1157] sm:$0x1]
    %v1159 = vadd.f32 %v1155, %v1158
    %s1160 = sld [smem:[#allocation7 + $0x3e]]
    %s1161 = scalar_lea.vmem [#allocation3], %s1160
    %v1162 = vld [vmem:[%s1161] sm:$0x1]
    %v1163 = vadd.f32 %v1159, %v1162
    %s1164 = sld [smem:[#allocation7 + $0x3f]]
    %s1165 = scalar_lea.vmem [#allocation3], %s1164
    %v1166 = vld [vmem:[%s1165] sm:$0x1]
    %v1167 = vadd.f32 %v1163, %v1166
    %1168 = vst [vmem:[#allocation4 + $0xf] sm:$0x1] %v1167
    %s1169 = sld [smem:[#allocation8]]
    %s1170 = scalar_lea.vmem [#allocation4], %s1169
    %v1171 = vld [vmem:[%s1170] sm:$0x1]
    %s1172 = sld [smem:[#allocation9]]
    %s1173 = scalar_lea.vmem [#allocation3], %s1172
    %v1174 = vld [vmem:[%s1173] sm:$0x1]
    %v1175 = vsub.f32 %v1171, %v1174
    %1176 = vst [vmem:[#allocation5] sm:$0x1] %v1175
    %s1177 = sld [smem:[#allocation8 + $0x1]]
    %s1178 = scalar_lea.vmem [#allocation4], %s1177
    %v1179 = vld [vmem:[%s1178] sm:$0x1]
    %s1180 = sld [smem:[#allocation9 + $0x1]]
    %s1181 = scalar_lea.vmem [#allocation3], %s1180
    %v1182 = vld [vmem:[%s1181] sm:$0x1]
    %v1183 = vsub.f32 %v1179, %v1182
    %1184 = vst [vmem:[#allocation5 + $0x1] sm:$0x1] %v1183
    %s1185 = sld [smem:[#allocation8 + $0x2]]
    %s1186 = scalar_lea.vmem [#allocation4], %s1185
    %v1187 = vld [vmem:[%s1186] sm:$0x1]
    %s1188 = sld [smem:[#allocation9 + $0x2]]
    %s1189 = scalar_lea.vmem [#allocation3], %s1188
    %v1190 = vld [vmem:[%s1189] sm:$0x1]
    %v1191 = vsub.f32 %v1187, %v1190
    %1192 = vst [vmem:[#allocation5 + $0x2] sm:$0x1] %v1191
    %s1193 = sld [smem:[#allocation8 + $0x3]]
    %s1194 = scalar_lea.vmem [#allocation4], %s1193
    %v1195 = vld [vmem:[%s1194] sm:$0x1]
    %s1196 = sld [smem:[#allocation9 + $0x3]]
    %s1197 = scalar_lea.vmem [#allocation3], %s1196
    %v1198 = vld [vmem:[%s1197] sm:$0x1]
    %v1199 = vsub.f32 %v1195, %v1198
    %1200 = vst [vmem:[#allocation5 + $0x3] sm:$0x1] %v1199
    %s1201 = sld [smem:[#allocation8 + $0x4]]
    %s1202 = scalar_lea.vmem [#allocation4], %s1201
    %v1203 = vld [vmem:[%s1202] sm:$0x1]
    %s1204 = sld [smem:[#allocation9 + $0x4]]
    %s1205 = scalar_lea.vmem [#allocation3], %s1204
    %v1206 = vld [vmem:[%s1205] sm:$0x1]
    %v1207 = vsub.f32 %v1203, %v1206
    %1208 = vst [vmem:[#allocation5 + $0x4] sm:$0x1] %v1207
    %s1209 = sld [smem:[#allocation8 + $0x5]]
    %s1210 = scalar_lea.vmem [#allocation4], %s1209
    %v1211 = vld [vmem:[%s1210] sm:$0x1]
    %s1212 = sld [smem:[#allocation9 + $0x5]]
    %s1213 = scalar_lea.vmem [#allocation3], %s1212
    %v1214 = vld [vmem:[%s1213] sm:$0x1]
    %v1215 = vsub.f32 %v1211, %v1214
    %1216 = vst [vmem:[#allocation5 + $0x5] sm:$0x1] %v1215
    %s1217 = sld [smem:[#allocation8 + $0x6]]
    %s1218 = scalar_lea.vmem [#allocation4], %s1217
    %v1219 = vld [vmem:[%s1218] sm:$0x1]
    %s1220 = sld [smem:[#allocation9 + $0x6]]
    %s1221 = scalar_lea.vmem [#allocation3], %s1220
    %v1222 = vld [vmem:[%s1221] sm:$0x1]
    %v1223 = vsub.f32 %v1219, %v1222
    %1224 = vst [vmem:[#allocation5 + $0x6] sm:$0x1] %v1223
    %s1225 = sld [smem:[#allocation8 + $0x7]]
    %s1226 = scalar_lea.vmem [#allocation4], %s1225
    %v1227 = vld [vmem:[%s1226] sm:$0x1]
    %s1228 = sld [smem:[#allocation9 + $0x7]]
    %s1229 = scalar_lea.vmem [#allocation3], %s1228
    %v1230 = vld [vmem:[%s1229] sm:$0x1]
    %v1231 = vsub.f32 %v1227, %v1230
    %1232 = vst [vmem:[#allocation5 + $0x7] sm:$0x1] %v1231
    %s1233 = sld [smem:[#allocation8 + $0x8]]
    %s1234 = scalar_lea.vmem [#allocation4], %s1233
    %v1235 = vld [vmem:[%s1234] sm:$0x1]
    %s1236 = sld [smem:[#allocation9 + $0x8]]
    %s1237 = scalar_lea.vmem [#allocation3], %s1236
    %v1238 = vld [vmem:[%s1237] sm:$0x1]
    %v1239 = vsub.f32 %v1235, %v1238
    %1240 = vst [vmem:[#allocation5 + $0x8] sm:$0x1] %v1239
    %s1241 = sld [smem:[#allocation8 + $0x9]]
    %s1242 = scalar_lea.vmem [#allocation4], %s1241
    %v1243 = vld [vmem:[%s1242] sm:$0x1]
    %s1244 = sld [smem:[#allocation9 + $0x9]]
    %s1245 = scalar_lea.vmem [#allocation3], %s1244
    %v1246 = vld [vmem:[%s1245] sm:$0x1]
    %v1247 = vsub.f32 %v1243, %v1246
    %1248 = vst [vmem:[#allocation5 + $0x9] sm:$0x1] %v1247
    %s1249 = sld [smem:[#allocation8 + $0xa]]
    %s1250 = scalar_lea.vmem [#allocation4], %s1249
    %v1251 = vld [vmem:[%s1250] sm:$0x1]
    %s1252 = sld [smem:[#allocation9 + $0xa]]
    %s1253 = scalar_lea.vmem [#allocation3], %s1252
    %v1254 = vld [vmem:[%s1253] sm:$0x1]
    %v1255 = vsub.f32 %v1251, %v1254
    %1256 = vst [vmem:[#allocation5 + $0xa] sm:$0x1] %v1255
    %s1257 = sld [smem:[#allocation8 + $0xb]]
    %s1258 = scalar_lea.vmem [#allocation4], %s1257
    %v1259 = vld [vmem:[%s1258] sm:$0x1]
    %s1260 = sld [smem:[#allocation9 + $0xb]]
    %s1261 = scalar_lea.vmem [#allocation3], %s1260
    %v1262 = vld [vmem:[%s1261] sm:$0x1]
    %v1263 = vsub.f32 %v1259, %v1262
    %1264 = vst [vmem:[#allocation5 + $0xb] sm:$0x1] %v1263
    %s1265 = sld [smem:[#allocation8 + $0xc]]
    %s1266 = scalar_lea.vmem [#allocation4], %s1265
    %v1267 = vld [vmem:[%s1266] sm:$0x1]
    %s1268 = sld [smem:[#allocation9 + $0xc]]
    %s1269 = scalar_lea.vmem [#allocation3], %s1268
    %v1270 = vld [vmem:[%s1269] sm:$0x1]
    %v1271 = vsub.f32 %v1267, %v1270
    %1272 = vst [vmem:[#allocation5 + $0xc] sm:$0x1] %v1271
    %s1273 = sld [smem:[#allocation8 + $0xd]]
    %s1274 = scalar_lea.vmem [#allocation4], %s1273
    %v1275 = vld [vmem:[%s1274] sm:$0x1]
    %s1276 = sld [smem:[#allocation9 + $0xd]]
    %s1277 = scalar_lea.vmem [#allocation3], %s1276
    %v1278 = vld [vmem:[%s1277] sm:$0x1]
    %v1279 = vsub.f32 %v1275, %v1278
    %1280 = vst [vmem:[#allocation5 + $0xd] sm:$0x1] %v1279
    %s1281 = sld [smem:[#allocation8 + $0xe]]
    %s1282 = scalar_lea.vmem [#allocation4], %s1281
    %v1283 = vld [vmem:[%s1282] sm:$0x1]
    %s1284 = sld [smem:[#allocation9 + $0xe]]
    %s1285 = scalar_lea.vmem [#allocation3], %s1284
    %v1286 = vld [vmem:[%s1285] sm:$0x1]
    %v1287 = vsub.f32 %v1283, %v1286
    %1288 = vst [vmem:[#allocation5 + $0xe] sm:$0x1] %v1287
    %s1289 = sld [smem:[#allocation8 + $0xf]]
    %s1290 = scalar_lea.vmem [#allocation4], %s1289
    %v1291 = vld [vmem:[%s1290] sm:$0x1]
    %s1292 = sld [smem:[#allocation9 + $0xf]]
    %s1293 = scalar_lea.vmem [#allocation3], %s1292
    %v1294 = vld [vmem:[%s1293] sm:$0x1]
    %v1295 = vsub.f32 %v1291, %v1294
    %1296 = vst [vmem:[#allocation5 + $0xf] sm:$0x1] %v1295
    %s1297 = sld [smem:[#allocation8 + $0x10]]
    %s1298 = scalar_lea.vmem [#allocation4], %s1297
    %v1299 = vld [vmem:[%s1298] sm:$0x1]
    %s1300 = sld [smem:[#allocation9 + $0x10]]
    %s1301 = scalar_lea.vmem [#allocation3], %s1300
    %v1302 = vld [vmem:[%s1301] sm:$0x1]
    %v1303 = vsub.f32 %v1299, %v1302
    %1304 = vst [vmem:[#allocation5 + $0x10] sm:$0x1] %v1303
    %s1305 = sld [smem:[#allocation8 + $0x11]]
    %s1306 = scalar_lea.vmem [#allocation4], %s1305
    %v1307 = vld [vmem:[%s1306] sm:$0x1]
    %s1308 = sld [smem:[#allocation9 + $0x11]]
    %s1309 = scalar_lea.vmem [#allocation3], %s1308
    %v1310 = vld [vmem:[%s1309] sm:$0x1]
    %v1311 = vsub.f32 %v1307, %v1310
    %1312 = vst [vmem:[#allocation5 + $0x11] sm:$0x1] %v1311
    %s1313 = sld [smem:[#allocation8 + $0x12]]
    %s1314 = scalar_lea.vmem [#allocation4], %s1313
    %v1315 = vld [vmem:[%s1314] sm:$0x1]
    %s1316 = sld [smem:[#allocation9 + $0x12]]
    %s1317 = scalar_lea.vmem [#allocation3], %s1316
    %v1318 = vld [vmem:[%s1317] sm:$0x1]
    %v1319 = vsub.f32 %v1315, %v1318
    %1320 = vst [vmem:[#allocation5 + $0x12] sm:$0x1] %v1319
    %s1321 = sld [smem:[#allocation8 + $0x13]]
    %s1322 = scalar_lea.vmem [#allocation4], %s1321
    %v1323 = vld [vmem:[%s1322] sm:$0x1]
    %s1324 = sld [smem:[#allocation9 + $0x13]]
    %s1325 = scalar_lea.vmem [#allocation3], %s1324
    %v1326 = vld [vmem:[%s1325] sm:$0x1]
    %v1327 = vsub.f32 %v1323, %v1326
    %1328 = vst [vmem:[#allocation5 + $0x13] sm:$0x1] %v1327
    %s1329 = sld [smem:[#allocation8 + $0x14]]
    %s1330 = scalar_lea.vmem [#allocation4], %s1329
    %v1331 = vld [vmem:[%s1330] sm:$0x1]
    %s1332 = sld [smem:[#allocation9 + $0x14]]
    %s1333 = scalar_lea.vmem [#allocation3], %s1332
    %v1334 = vld [vmem:[%s1333] sm:$0x1]
    %v1335 = vsub.f32 %v1331, %v1334
    %1336 = vst [vmem:[#allocation5 + $0x14] sm:$0x1] %v1335
    %s1337 = sld [smem:[#allocation8 + $0x15]]
    %s1338 = scalar_lea.vmem [#allocation4], %s1337
    %v1339 = vld [vmem:[%s1338] sm:$0x1]
    %s1340 = sld [smem:[#allocation9 + $0x15]]
    %s1341 = scalar_lea.vmem [#allocation3], %s1340
    %v1342 = vld [vmem:[%s1341] sm:$0x1]
    %v1343 = vsub.f32 %v1339, %v1342
    %1344 = vst [vmem:[#allocation5 + $0x15] sm:$0x1] %v1343
    %s1345 = sld [smem:[#allocation8 + $0x16]]
    %s1346 = scalar_lea.vmem [#allocation4], %s1345
    %v1347 = vld [vmem:[%s1346] sm:$0x1]
    %s1348 = sld [smem:[#allocation9 + $0x16]]
    %s1349 = scalar_lea.vmem [#allocation3], %s1348
    %v1350 = vld [vmem:[%s1349] sm:$0x1]
    %v1351 = vsub.f32 %v1347, %v1350
    %1352 = vst [vmem:[#allocation5 + $0x16] sm:$0x1] %v1351
    %s1353 = sld [smem:[#allocation8 + $0x17]]
    %s1354 = scalar_lea.vmem [#allocation4], %s1353
    %v1355 = vld [vmem:[%s1354] sm:$0x1]
    %s1356 = sld [smem:[#allocation9 + $0x17]]
    %s1357 = scalar_lea.vmem [#allocation3], %s1356
    %v1358 = vld [vmem:[%s1357] sm:$0x1]
    %v1359 = vsub.f32 %v1355, %v1358
    %1360 = vst [vmem:[#allocation5 + $0x17] sm:$0x1] %v1359
    %s1361 = sld [smem:[#allocation8 + $0x18]]
    %s1362 = scalar_lea.vmem [#allocation4], %s1361
    %v1363 = vld [vmem:[%s1362] sm:$0x1]
    %s1364 = sld [smem:[#allocation9 + $0x18]]
    %s1365 = scalar_lea.vmem [#allocation3], %s1364
    %v1366 = vld [vmem:[%s1365] sm:$0x1]
    %v1367 = vsub.f32 %v1363, %v1366
    %1368 = vst [vmem:[#allocation5 + $0x18] sm:$0x1] %v1367
    %s1369 = sld [smem:[#allocation8 + $0x19]]
    %s1370 = scalar_lea.vmem [#allocation4], %s1369
    %v1371 = vld [vmem:[%s1370] sm:$0x1]
    %s1372 = sld [smem:[#allocation9 + $0x19]]
    %s1373 = scalar_lea.vmem [#allocation3], %s1372
    %v1374 = vld [vmem:[%s1373] sm:$0x1]
    %v1375 = vsub.f32 %v1371, %v1374
    %1376 = vst [vmem:[#allocation5 + $0x19] sm:$0x1] %v1375
    %s1377 = sld [smem:[#allocation8 + $0x1a]]
    %s1378 = scalar_lea.vmem [#allocation4], %s1377
    %v1379 = vld [vmem:[%s1378] sm:$0x1]
    %s1380 = sld [smem:[#allocation9 + $0x1a]]
    %s1381 = scalar_lea.vmem [#allocation3], %s1380
    %v1382 = vld [vmem:[%s1381] sm:$0x1]
    %v1383 = vsub.f32 %v1379, %v1382
    %1384 = vst [vmem:[#allocation5 + $0x1a] sm:$0x1] %v1383
    %s1385 = sld [smem:[#allocation8 + $0x1b]]
    %s1386 = scalar_lea.vmem [#allocation4], %s1385
    %v1387 = vld [vmem:[%s1386] sm:$0x1]
    %s1388 = sld [smem:[#allocation9 + $0x1b]]
    %s1389 = scalar_lea.vmem [#allocation3], %s1388
    %v1390 = vld [vmem:[%s1389] sm:$0x1]
    %v1391 = vsub.f32 %v1387, %v1390
    %1392 = vst [vmem:[#allocation5 + $0x1b] sm:$0x1] %v1391
    %s1393 = sld [smem:[#allocation8 + $0x1c]]
    %s1394 = scalar_lea.vmem [#allocation4], %s1393
    %v1395 = vld [vmem:[%s1394] sm:$0x1]
    %s1396 = sld [smem:[#allocation9 + $0x1c]]
    %s1397 = scalar_lea.vmem [#allocation3], %s1396
    %v1398 = vld [vmem:[%s1397] sm:$0x1]
    %v1399 = vsub.f32 %v1395, %v1398
    %1400 = vst [vmem:[#allocation5 + $0x1c] sm:$0x1] %v1399
    %s1401 = sld [smem:[#allocation8 + $0x1d]]
    %s1402 = scalar_lea.vmem [#allocation4], %s1401
    %v1403 = vld [vmem:[%s1402] sm:$0x1]
    %s1404 = sld [smem:[#allocation9 + $0x1d]]
    %s1405 = scalar_lea.vmem [#allocation3], %s1404
    %v1406 = vld [vmem:[%s1405] sm:$0x1]
    %v1407 = vsub.f32 %v1403, %v1406
    %1408 = vst [vmem:[#allocation5 + $0x1d] sm:$0x1] %v1407
    %s1409 = sld [smem:[#allocation8 + $0x1e]]
    %s1410 = scalar_lea.vmem [#allocation4], %s1409
    %v1411 = vld [vmem:[%s1410] sm:$0x1]
    %s1412 = sld [smem:[#allocation9 + $0x1e]]
    %s1413 = scalar_lea.vmem [#allocation3], %s1412
    %v1414 = vld [vmem:[%s1413] sm:$0x1]
    %v1415 = vsub.f32 %v1411, %v1414
    %1416 = vst [vmem:[#allocation5 + $0x1e] sm:$0x1] %v1415
    %s1417 = sld [smem:[#allocation8 + $0x1f]]
    %s1418 = scalar_lea.vmem [#allocation4], %s1417
    %v1419 = vld [vmem:[%s1418] sm:$0x1]
    %s1420 = sld [smem:[#allocation9 + $0x1f]]
    %s1421 = scalar_lea.vmem [#allocation3], %s1420
    %v1422 = vld [vmem:[%s1421] sm:$0x1]
    %v1423 = vsub.f32 %v1419, %v1422
    %1424 = vst [vmem:[#allocation5 + $0x1f] sm:$0x1] %v1423
    %v1425 = vld [vmem:[#allocation5] sm:$0xff]
    %v1426 = vld [vmem:[#allocation5 + $0x8] sm:$0xff]
    %v1427 = vld [vmem:[#allocation5 + $0x10] sm:$0xff]
    %v1428 = vld [vmem:[#allocation5 + $0x18] sm:$0xff]
    %v1429 = vpack.c.bf16 %v1426, %v1425
    %v1430 = vpack.c.bf16 %v1428, %v1427
    %v1431 = vld [vmem:[#allocation16] sm:$0xf]
    %v1432 = vld [vmem:[#allocation16 + $0x4] sm:$0xf]
    %v1433 = vld [vmem:[#allocation16 + $0x8] sm:$0xf]
    %v1434 = vld [vmem:[#allocation16 + $0xc] sm:$0xf]
    %v1435 = vld [vmem:[#allocation16 + $0x10] sm:$0xf]
    %v1436 = vld [vmem:[#allocation16 + $0x14] sm:$0xf]
    %v1437 = vld [vmem:[#allocation16 + $0x18] sm:$0xf]
    %v1438 = vld [vmem:[#allocation16 + $0x1c] sm:$0xf]
    %v1439 = vld [vmem:[#allocation16 + $0x20] sm:$0xf]
    %v1440 = vld [vmem:[#allocation16 + $0x24] sm:$0xf]
    %v1441 = vld [vmem:[#allocation16 + $0x28] sm:$0xf]
    %v1442 = vld [vmem:[#allocation16 + $0x2c] sm:$0xf]
    %v1443 = vld [vmem:[#allocation16 + $0x30] sm:$0xf]
    %v1444 = vld [vmem:[#allocation16 + $0x34] sm:$0xf]
    %v1445 = vld [vmem:[#allocation16 + $0x38] sm:$0xf]
    %v1446 = vld [vmem:[#allocation16 + $0x3c] sm:$0xf]
    %v1463 = vunpack.c.l.b16 %v1431
    %v1464 = vunpack.c.l.b16 %v1432
    %v1465 = vunpack.c.l.b16 %v1433
    %v1466 = vunpack.c.l.b16 %v1434
    %v1467 = vunpack.c.l.b16 %v1435
    %v1468 = vunpack.c.l.b16 %v1436
    %v1469 = vunpack.c.l.b16 %v1437
    %v1470 = vunpack.c.l.b16 %v1438
    %v1471 = vunpack.c.l.b16 %v1439
    %v1472 = vunpack.c.l.b16 %v1440
    %v1473 = vunpack.c.l.b16 %v1441
    %v1474 = vunpack.c.l.b16 %v1442
    %v1475 = vunpack.c.l.b16 %v1443
    %v1476 = vunpack.c.l.b16 %v1444
    %v1477 = vunpack.c.l.b16 %v1445
    %v1478 = vunpack.c.l.b16 %v1446
    %v1479 = vpack.c.b16 %v1464, %v1463
    %v1480 = vpack.c.b16 %v1466, %v1465
    %v1481 = vpack.c.b16 %v1468, %v1467
    %v1482 = vpack.c.b16 %v1470, %v1469
    %v1483 = vpack.c.b16 %v1472, %v1471
    %v1484 = vpack.c.b16 %v1474, %v1473
    %v1485 = vpack.c.b16 %v1476, %v1475
    %v1486 = vpack.c.b16 %v1478, %v1477
    %1495 = vmatprep.subr.bf16.mxu0 0
    %1496 = vmatpush1.bf16.msra.mxu0 %v1486
    %1497 = vmatprep.subr.bf16.mxu0 0
    %1498 = vmatpush1.bf16.msra.mxu0 %v1485
    %1499 = vmatprep.subr.bf16.mxu0 0
    %1500 = vmatpush1.bf16.msra.mxu0 %v1484
    %1501 = vmatprep.subr.bf16.mxu0 0
    %1502 = vmatpush1.bf16.msra.mxu0 %v1483
    %1503 = vmatprep.subr.bf16.mxu0 0
    %1504 = vmatpush1.bf16.msra.mxu0 %v1482
    %1505 = vmatprep.subr.bf16.mxu0 0
    %1506 = vmatpush1.bf16.msra.mxu0 %v1481
    %1507 = vmatprep.subr.bf16.mxu0 0
    %1508 = vmatpush1.bf16.msra.mxu0 %v1480
    %1509 = vmatprep.subr.bf16.mxu0 0
    %1510 = vmatpush1.bf16.msra.mxu0 %v1479
    %1511 = vmatprep.subr.bf16.mxu0 0
    %1512 = vmatpush2.bf16.msra.mxu0 0
    %1513 = vmatprep.subr.bf16.mxu0 0
    %1514 = vmatpush2.bf16.msra.mxu0 0
    %1515 = vmatprep.subr.bf16.mxu0 0
    %1516 = vmatpush2.bf16.msra.mxu0 0
    %1517 = vmatprep.subr.bf16.mxu0 0
    %1518 = vmatpush2.bf16.msra.mxu0 0
    %1519 = vmatprep.subr.bf16.mxu0 0
    %1520 = vmatpush2.bf16.msra.mxu0 0
    %1521 = vmatprep.subr.bf16.mxu0 0
    %1522 = vmatpush2.bf16.msra.mxu0 0
    %1523 = vmatprep.subr.bf16.mxu0 0
    %1524 = vmatpush2.bf16.msra.mxu0 0
    %1525 = vmatprep.subr.bf16.mxu0 0
    %1526 = vmatpush2.bf16.msra.mxu0 0
    %1527 = vmatprep.mubr.bf16.mxu0 0
    %1528 = vmatmul.mubr.bf16.gmra.mxu0 %v1429
    %v1529 = vpop.f32.mrf.mxu0
    %v1530 = vadd.f32 0.0, %v1529
    %v1531 = vpop.f32.mrf.mxu0
    %v1532 = vpop.f32.mrf.mxu0
    %v1533 = vadd.f32 0.0, %v1532
    %v1534 = vpop.f32.mrf.mxu0
    %1535 = vmatprep.mubr.bf16.mxu0 0
    %1536 = vmatmul.mubr.bf16.gmra.mxu0 %v1430
    %v1537 = vpop.f32.mrf.mxu0
    %v1538 = vadd.f32 0.0, %v1537
    %v1539 = vpop.f32.mrf.mxu0
    %v1540 = vpop.f32.mrf.mxu0
    %v1541 = vadd.f32 0.0, %v1540
    %v1542 = vpop.f32.mrf.mxu0
    %1543 = vdwg.mxu0
    %v1544 = vld [vmem:[#allocation2] sm:$0xff]
    %v1545 = vld [vmem:[#allocation2 + $0x8] sm:$0xff]
    %v1546 = vld [vmem:[#allocation2 + $0x10] sm:$0xff]
    %v1547 = vld [vmem:[#allocation2 + $0x18] sm:$0xff]
    %v1548 = vadd.f32 %v1544, %v1530
    %v1549 = vadd.f32 %v1545, %v1533
    %v1550 = vadd.f32 %v1546, %v1538
    %v1551 = vadd.f32 %v1547, %v1541
    %v1552 = vmax.f32 %v1548, 0.0
    %v1553 = vmax.f32 %v1549, 0.0
    %v1554 = vmax.f32 %v1550, 0.0
    %v1555 = vmax.f32 %v1551, 0.0
    %1556 = vst [vmem:[#allocation3] sm:$0xff] %v1552
    %1557 = vst [vmem:[#allocation3 + $0x8] sm:$0xff] %v1553
    %1558 = vst [vmem:[#allocation3 + $0x10] sm:$0xff] %v1554
    %1559 = vst [vmem:[#allocation3 + $0x18] sm:$0xff] %v1555
    %s1560 = sld [smem:[#allocation7]]
    %s1561 = scalar_lea.vmem [#allocation3], %s1560
    %v1562 = vld [vmem:[%s1561] sm:$0x1]
    %s1563 = sld [smem:[#allocation7 + $0x1]]
    %s1564 = scalar_lea.vmem [#allocation3], %s1563
    %v1565 = vld [vmem:[%s1564] sm:$0x1]
    %v1566 = vadd.f32 %v1562, %v1565
    %s1567 = sld [smem:[#allocation7 + $0x2]]
    %s1568 = scalar_lea.vmem [#allocation3], %s1567
    %v1569 = vld [vmem:[%s1568] sm:$0x1]
    %v1570 = vadd.f32 %v1566, %v1569
    %s1571 = sld [smem:[#allocation7 + $0x3]]
    %s1572 = scalar_lea.vmem [#allocation3], %s1571
    %v1573 = vld [vmem:[%s1572] sm:$0x1]
    %v1574 = vadd.f32 %v1570, %v1573
    %1575 = vst [vmem:[#allocation4] sm:$0x1] %v1574
    %s1576 = sld [smem:[#allocation7 + $0x4]]
    %s1577 = scalar_lea.vmem [#allocation3], %s1576
    %v1578 = vld [vmem:[%s1577] sm:$0x1]
    %s1579 = sld [smem:[#allocation7 + $0x5]]
    %s1580 = scalar_lea.vmem [#allocation3], %s1579
    %v1581 = vld [vmem:[%s1580] sm:$0x1]
    %v1582 = vadd.f32 %v1578, %v1581
    %s1583 = sld [smem:[#allocation7 + $0x6]]
    %s1584 = scalar_lea.vmem [#allocation3], %s1583
    %v1585 = vld [vmem:[%s1584] sm:$0x1]
    %v1586 = vadd.f32 %v1582, %v1585
    %s1587 = sld [smem:[#allocation7 + $0x7]]
    %s1588 = scalar_lea.vmem [#allocation3], %s1587
    %v1589 = vld [vmem:[%s1588] sm:$0x1]
    %v1590 = vadd.f32 %v1586, %v1589
    %1591 = vst [vmem:[#allocation4 + $0x1] sm:$0x1] %v1590
    %s1592 = sld [smem:[#allocation7 + $0x8]]
    %s1593 = scalar_lea.vmem [#allocation3], %s1592
    %v1594 = vld [vmem:[%s1593] sm:$0x1]
    %s1595 = sld [smem:[#allocation7 + $0x9]]
    %s1596 = scalar_lea.vmem [#allocation3], %s1595
    %v1597 = vld [vmem:[%s1596] sm:$0x1]
    %v1598 = vadd.f32 %v1594, %v1597
    %s1599 = sld [smem:[#allocation7 + $0xa]]
    %s1600 = scalar_lea.vmem [#allocation3], %s1599
    %v1601 = vld [vmem:[%s1600] sm:$0x1]
    %v1602 = vadd.f32 %v1598, %v1601
    %s1603 = sld [smem:[#allocation7 + $0xb]]
    %s1604 = scalar_lea.vmem [#allocation3], %s1603
    %v1605 = vld [vmem:[%s1604] sm:$0x1]
    %v1606 = vadd.f32 %v1602, %v1605
    %1607 = vst [vmem:[#allocation4 + $0x2] sm:$0x1] %v1606
    %s1608 = sld [smem:[#allocation7 + $0xc]]
    %s1609 = scalar_lea.vmem [#allocation3], %s1608
    %v1610 = vld [vmem:[%s1609] sm:$0x1]
    %s1611 = sld [smem:[#allocation7 + $0xd]]
    %s1612 = scalar_lea.vmem [#allocation3], %s1611
    %v1613 = vld [vmem:[%s1612] sm:$0x1]
    %v1614 = vadd.f32 %v1610, %v1613
    %s1615 = sld [smem:[#allocation7 + $0xe]]
    %s1616 = scalar_lea.vmem [#allocation3], %s1615
    %v1617 = vld [vmem:[%s1616] sm:$0x1]
    %v1618 = vadd.f32 %v1614, %v1617
    %s1619 = sld [smem:[#allocation7 + $0xf]]
    %s1620 = scalar_lea.vmem [#allocation3], %s1619
    %v1621 = vld [vmem:[%s1620] sm:$0x1]
    %v1622 = vadd.f32 %v1618, %v1621
    %1623 = vst [vmem:[#allocation4 + $0x3] sm:$0x1] %v1622
    %s1624 = sld [smem:[#allocation7 + $0x10]]
    %s1625 = scalar_lea.vmem [#allocation3], %s1624
    %v1626 = vld [vmem:[%s1625] sm:$0x1]
    %s1627 = sld [smem:[#allocation7 + $0x11]]
    %s1628 = scalar_lea.vmem [#allocation3], %s1627
    %v1629 = vld [vmem:[%s1628] sm:$0x1]
    %v1630 = vadd.f32 %v1626, %v1629
    %s1631 = sld [smem:[#allocation7 + $0x12]]
    %s1632 = scalar_lea.vmem [#allocation3], %s1631
    %v1633 = vld [vmem:[%s1632] sm:$0x1]
    %v1634 = vadd.f32 %v1630, %v1633
    %s1635 = sld [smem:[#allocation7 + $0x13]]
    %s1636 = scalar_lea.vmem [#allocation3], %s1635
    %v1637 = vld [vmem:[%s1636] sm:$0x1]
    %v1638 = vadd.f32 %v1634, %v1637
    %1639 = vst [vmem:[#allocation4 + $0x4] sm:$0x1] %v1638
    %s1640 = sld [smem:[#allocation7 + $0x14]]
    %s1641 = scalar_lea.vmem [#allocation3], %s1640
    %v1642 = vld [vmem:[%s1641] sm:$0x1]
    %s1643 = sld [smem:[#allocation7 + $0x15]]
    %s1644 = scalar_lea.vmem [#allocation3], %s1643
    %v1645 = vld [vmem:[%s1644] sm:$0x1]
    %v1646 = vadd.f32 %v1642, %v1645
    %s1647 = sld [smem:[#allocation7 + $0x16]]
    %s1648 = scalar_lea.vmem [#allocation3], %s1647
    %v1649 = vld [vmem:[%s1648] sm:$0x1]
    %v1650 = vadd.f32 %v1646, %v1649
    %s1651 = sld [smem:[#allocation7 + $0x17]]
    %s1652 = scalar_lea.vmem [#allocation3], %s1651
    %v1653 = vld [vmem:[%s1652] sm:$0x1]
    %v1654 = vadd.f32 %v1650, %v1653
    %1655 = vst [vmem:[#allocation4 + $0x5] sm:$0x1] %v1654
    %s1656 = sld [smem:[#allocation7 + $0x18]]
    %s1657 = scalar_lea.vmem [#allocation3], %s1656
    %v1658 = vld [vmem:[%s1657] sm:$0x1]
    %s1659 = sld [smem:[#allocation7 + $0x19]]
    %s1660 = scalar_lea.vmem [#allocation3], %s1659
    %v1661 = vld [vmem:[%s1660] sm:$0x1]
    %v1662 = vadd.f32 %v1658, %v1661
    %s1663 = sld [smem:[#allocation7 + $0x1a]]
    %s1664 = scalar_lea.vmem [#allocation3], %s1663
    %v1665 = vld [vmem:[%s1664] sm:$0x1]
    %v1666 = vadd.f32 %v1662, %v1665
    %s1667 = sld [smem:[#allocation7 + $0x1b]]
    %s1668 = scalar_lea.vmem [#allocation3], %s1667
    %v1669 = vld [vmem:[%s1668] sm:$0x1]
    %v1670 = vadd.f32 %v1666, %v1669
    %1671 = vst [vmem:[#allocation4 + $0x6] sm:$0x1] %v1670
    %s1672 = sld [smem:[#allocation7 + $0x1c]]
    %s1673 = scalar_lea.vmem [#allocation3], %s1672
    %v1674 = vld [vmem:[%s1673] sm:$0x1]
    %s1675 = sld [smem:[#allocation7 + $0x1d]]
    %s1676 = scalar_lea.vmem [#allocation3], %s1675
    %v1677 = vld [vmem:[%s1676] sm:$0x1]
    %v1678 = vadd.f32 %v1674, %v1677
    %s1679 = sld [smem:[#allocation7 + $0x1e]]
    %s1680 = scalar_lea.vmem [#allocation3], %s1679
    %v1681 = vld [vmem:[%s1680] sm:$0x1]
    %v1682 = vadd.f32 %v1678, %v1681
    %s1683 = sld [smem:[#allocation7 + $0x1f]]
    %s1684 = scalar_lea.vmem [#allocation3], %s1683
    %v1685 = vld [vmem:[%s1684] sm:$0x1]
    %v1686 = vadd.f32 %v1682, %v1685
    %1687 = vst [vmem:[#allocation4 + $0x7] sm:$0x1] %v1686
    %s1688 = sld [smem:[#allocation7 + $0x20]]
    %s1689 = scalar_lea.vmem [#allocation3], %s1688
    %v1690 = vld [vmem:[%s1689] sm:$0x1]
    %s1691 = sld [smem:[#allocation7 + $0x21]]
    %s1692 = scalar_lea.vmem [#allocation3], %s1691
    %v1693 = vld [vmem:[%s1692] sm:$0x1]
    %v1694 = vadd.f32 %v1690, %v1693
    %s1695 = sld [smem:[#allocation7 + $0x22]]
    %s1696 = scalar_lea.vmem [#allocation3], %s1695
    %v1697 = vld [vmem:[%s1696] sm:$0x1]
    %v1698 = vadd.f32 %v1694, %v1697
    %s1699 = sld [smem:[#allocation7 + $0x23]]
    %s1700 = scalar_lea.vmem [#allocation3], %s1699
    %v1701 = vld [vmem:[%s1700] sm:$0x1]
    %v1702 = vadd.f32 %v1698, %v1701
    %1703 = vst [vmem:[#allocation4 + $0x8] sm:$0x1] %v1702
    %s1704 = sld [smem:[#allocation7 + $0x24]]
    %s1705 = scalar_lea.vmem [#allocation3], %s1704
    %v1706 = vld [vmem:[%s1705] sm:$0x1]
    %s1707 = sld [smem:[#allocation7 + $0x25]]
    %s1708 = scalar_lea.vmem [#allocation3], %s1707
    %v1709 = vld [vmem:[%s1708] sm:$0x1]
    %v1710 = vadd.f32 %v1706, %v1709
    %s1711 = sld [smem:[#allocation7 + $0x26]]
    %s1712 = scalar_lea.vmem [#allocation3], %s1711
    %v1713 = vld [vmem:[%s1712] sm:$0x1]
    %v1714 = vadd.f32 %v1710, %v1713
    %s1715 = sld [smem:[#allocation7 + $0x27]]
    %s1716 = scalar_lea.vmem [#allocation3], %s1715
    %v1717 = vld [vmem:[%s1716] sm:$0x1]
    %v1718 = vadd.f32 %v1714, %v1717
    %1719 = vst [vmem:[#allocation4 + $0x9] sm:$0x1] %v1718
    %s1720 = sld [smem:[#allocation7 + $0x28]]
    %s1721 = scalar_lea.vmem [#allocation3], %s1720
    %v1722 = vld [vmem:[%s1721] sm:$0x1]
    %s1723 = sld [smem:[#allocation7 + $0x29]]
    %s1724 = scalar_lea.vmem [#allocation3], %s1723
    %v1725 = vld [vmem:[%s1724] sm:$0x1]
    %v1726 = vadd.f32 %v1722, %v1725
    %s1727 = sld [smem:[#allocation7 + $0x2a]]
    %s1728 = scalar_lea.vmem [#allocation3], %s1727
    %v1729 = vld [vmem:[%s1728] sm:$0x1]
    %v1730 = vadd.f32 %v1726, %v1729
    %s1731 = sld [smem:[#allocation7 + $0x2b]]
    %s1732 = scalar_lea.vmem [#allocation3], %s1731
    %v1733 = vld [vmem:[%s1732] sm:$0x1]
    %v1734 = vadd.f32 %v1730, %v1733
    %1735 = vst [vmem:[#allocation4 + $0xa] sm:$0x1] %v1734
    %s1736 = sld [smem:[#allocation7 + $0x2c]]
    %s1737 = scalar_lea.vmem [#allocation3], %s1736
    %v1738 = vld [vmem:[%s1737] sm:$0x1]
    %s1739 = sld [smem:[#allocation7 + $0x2d]]
    %s1740 = scalar_lea.vmem [#allocation3], %s1739
    %v1741 = vld [vmem:[%s1740] sm:$0x1]
    %v1742 = vadd.f32 %v1738, %v1741
    %s1743 = sld [smem:[#allocation7 + $0x2e]]
    %s1744 = scalar_lea.vmem [#allocation3], %s1743
    %v1745 = vld [vmem:[%s1744] sm:$0x1]
    %v1746 = vadd.f32 %v1742, %v1745
    %s1747 = sld [smem:[#allocation7 + $0x2f]]
    %s1748 = scalar_lea.vmem [#allocation3], %s1747
    %v1749 = vld [vmem:[%s1748] sm:$0x1]
    %v1750 = vadd.f32 %v1746, %v1749
    %1751 = vst [vmem:[#allocation4 + $0xb] sm:$0x1] %v1750
    %s1752 = sld [smem:[#allocation7 + $0x30]]
    %s1753 = scalar_lea.vmem [#allocation3], %s1752
    %v1754 = vld [vmem:[%s1753] sm:$0x1]
    %s1755 = sld [smem:[#allocation7 + $0x31]]
    %s1756 = scalar_lea.vmem [#allocation3], %s1755
    %v1757 = vld [vmem:[%s1756] sm:$0x1]
    %v1758 = vadd.f32 %v1754, %v1757
    %s1759 = sld [smem:[#allocation7 + $0x32]]
    %s1760 = scalar_lea.vmem [#allocation3], %s1759
    %v1761 = vld [vmem:[%s1760] sm:$0x1]
    %v1762 = vadd.f32 %v1758, %v1761
    %s1763 = sld [smem:[#allocation7 + $0x33]]
    %s1764 = scalar_lea.vmem [#allocation3], %s1763
    %v1765 = vld [vmem:[%s1764] sm:$0x1]
    %v1766 = vadd.f32 %v1762, %v1765
    %1767 = vst [vmem:[#allocation4 + $0xc] sm:$0x1] %v1766
    %s1768 = sld [smem:[#allocation7 + $0x34]]
    %s1769 = scalar_lea.vmem [#allocation3], %s1768
    %v1770 = vld [vmem:[%s1769] sm:$0x1]
    %s1771 = sld [smem:[#allocation7 + $0x35]]
    %s1772 = scalar_lea.vmem [#allocation3], %s1771
    %v1773 = vld [vmem:[%s1772] sm:$0x1]
    %v1774 = vadd.f32 %v1770, %v1773
    %s1775 = sld [smem:[#allocation7 + $0x36]]
    %s1776 = scalar_lea.vmem [#allocation3], %s1775
    %v1777 = vld [vmem:[%s1776] sm:$0x1]
    %v1778 = vadd.f32 %v1774, %v1777
    %s1779 = sld [smem:[#allocation7 + $0x37]]
    %s1780 = scalar_lea.vmem [#allocation3], %s1779
    %v1781 = vld [vmem:[%s1780] sm:$0x1]
    %v1782 = vadd.f32 %v1778, %v1781
    %1783 = vst [vmem:[#allocation4 + $0xd] sm:$0x1] %v1782
    %s1784 = sld [smem:[#allocation7 + $0x38]]
    %s1785 = scalar_lea.vmem [#allocation3], %s1784
    %v1786 = vld [vmem:[%s1785] sm:$0x1]
    %s1787 = sld [smem:[#allocation7 + $0x39]]
    %s1788 = scalar_lea.vmem [#allocation3], %s1787
    %v1789 = vld [vmem:[%s1788] sm:$0x1]
    %v1790 = vadd.f32 %v1786, %v1789
    %s1791 = sld [smem:[#allocation7 + $0x3a]]
    %s1792 = scalar_lea.vmem [#allocation3], %s1791
    %v1793 = vld [vmem:[%s1792] sm:$0x1]
    %v1794 = vadd.f32 %v1790, %v1793
    %s1795 = sld [smem:[#allocation7 + $0x3b]]
    %s1796 = scalar_lea.vmem [#allocation3], %s1795
    %v1797 = vld [vmem:[%s1796] sm:$0x1]
    %v1798 = vadd.f32 %v1794, %v1797
    %1799 = vst [vmem:[#allocation4 + $0xe] sm:$0x1] %v1798
    %s1800 = sld [smem:[#allocation7 + $0x3c]]
    %s1801 = scalar_lea.vmem [#allocation3], %s1800
    %v1802 = vld [vmem:[%s1801] sm:$0x1]
    %s1803 = sld [smem:[#allocation7 + $0x3d]]
    %s1804 = scalar_lea.vmem [#allocation3], %s1803
    %v1805 = vld [vmem:[%s1804] sm:$0x1]
    %v1806 = vadd.f32 %v1802, %v1805
    %s1807 = sld [smem:[#allocation7 + $0x3e]]
    %s1808 = scalar_lea.vmem [#allocation3], %s1807
    %v1809 = vld [vmem:[%s1808] sm:$0x1]
    %v1810 = vadd.f32 %v1806, %v1809
    %s1811 = sld [smem:[#allocation7 + $0x3f]]
    %s1812 = scalar_lea.vmem [#allocation3], %s1811
    %v1813 = vld [vmem:[%s1812] sm:$0x1]
    %v1814 = vadd.f32 %v1810, %v1813
    %1815 = vst [vmem:[#allocation4 + $0xf] sm:$0x1] %v1814
    %v1816 = vld [vmem:[#allocation13] sm:$0xf]
    %v1817 = vld [vmem:[#allocation13 + $0x4] sm:$0xf]
    %v1818 = vld [vmem:[#allocation18] sm:$0xf]
    %v1819 = vld [vmem:[#allocation18 + $0x4] sm:$0xf]
    %v1820 = vld [vmem:[#allocation18 + $0x8] sm:$0xf]
    %v1821 = vld [vmem:[#allocation18 + $0xc] sm:$0xf]
    %v1822 = vld [vmem:[#allocation18 + $0x10] sm:$0xf]
    %v1823 = vld [vmem:[#allocation18 + $0x14] sm:$0xf]
    %v1824 = vld [vmem:[#allocation18 + $0x18] sm:$0xf]
    %v1825 = vld [vmem:[#allocation18 + $0x1c] sm:$0xf]
    %v1826 = vld [vmem:[#allocation18 + $0x20] sm:$0xf]
    %v1827 = vld [vmem:[#allocation18 + $0x24] sm:$0xf]
    %v1828 = vld [vmem:[#allocation18 + $0x28] sm:$0xf]
    %v1829 = vld [vmem:[#allocation18 + $0x2c] sm:$0xf]
    %v1830 = vld [vmem:[#allocation18 + $0x30] sm:$0xf]
    %v1831 = vld [vmem:[#allocation18 + $0x34] sm:$0xf]
    %v1832 = vld [vmem:[#allocation18 + $0x38] sm:$0xf]
    %v1833 = vld [vmem:[#allocation18 + $0x3c] sm:$0xf]
    %v1834 = vld [vmem:[#allocation4] sm:$0xff]
    %v1835 = vld [vmem:[#allocation4 + $0x8] sm:$0xff]
    %v1836 = vpack.c.bf16 %v1835, %v1834
    %v1837 = vld [vmem:[#allocation19] sm:$0xf]
    %v1838 = vld [vmem:[#allocation19 + $0x4] sm:$0xf]
    %v1839 = vld [vmem:[#allocation19 + $0x8] sm:$0xf]
    %v1840 = vld [vmem:[#allocation19 + $0xc] sm:$0xf]
    %v1841 = vld [vmem:[#allocation19 + $0x10] sm:$0xf]
    %v1842 = vld [vmem:[#allocation19 + $0x14] sm:$0xf]
    %v1843 = vld [vmem:[#allocation19 + $0x18] sm:$0xf]
    %v1844 = vld [vmem:[#allocation19 + $0x1c] sm:$0xf]
    %v1845 = vld [vmem:[#allocation19 + $0x20] sm:$0xf]
    %v1846 = vld [vmem:[#allocation19 + $0x24] sm:$0xf]
    %v1847 = vld [vmem:[#allocation19 + $0x28] sm:$0xf]
    %v1848 = vld [vmem:[#allocation19 + $0x2c] sm:$0xf]
    %v1849 = vld [vmem:[#allocation19 + $0x30] sm:$0xf]
    %v1850 = vld [vmem:[#allocation19 + $0x34] sm:$0xf]
    %v1851 = vld [vmem:[#allocation19 + $0x38] sm:$0xf]
    %v1852 = vld [vmem:[#allocation19 + $0x3c] sm:$0xf]
    %v1869 = vunpack.c.l.b16 %v1837
    %v1870 = vunpack.c.l.b16 %v1838
    %v1871 = vunpack.c.l.b16 %v1839
    %v1872 = vunpack.c.l.b16 %v1840
    %v1873 = vunpack.c.l.b16 %v1841
    %v1874 = vunpack.c.l.b16 %v1842
    %v1875 = vunpack.c.l.b16 %v1843
    %v1876 = vunpack.c.l.b16 %v1844
    %v1877 = vunpack.c.l.b16 %v1845
    %v1878 = vunpack.c.l.b16 %v1846
    %v1879 = vunpack.c.l.b16 %v1847
    %v1880 = vunpack.c.l.b16 %v1848
    %v1881 = vunpack.c.l.b16 %v1849
    %v1882 = vunpack.c.l.b16 %v1850
    %v1883 = vunpack.c.l.b16 %v1851
    %v1884 = vunpack.c.l.b16 %v1852
    %v1885 = vpack.c.b16 %v1870, %v1869
    %v1886 = vpack.c.b16 %v1872, %v1871
    %v1887 = vpack.c.b16 %v1874, %v1873
    %v1888 = vpack.c.b16 %v1876, %v1875
    %v1889 = vpack.c.b16 %v1878, %v1877
    %v1890 = vpack.c.b16 %v1880, %v1879
    %v1891 = vpack.c.b16 %v1882, %v1881
    %v1892 = vpack.c.b16 %v1884, %v1883
    %1901 = vmatprep.subr.bf16.mxu0 0
    %1902 = vmatpush1.bf16.msra.mxu0 %v1892
    %1903 = vmatprep.subr.bf16.mxu0 0
    %1904 = vmatpush1.bf16.msra.mxu0 %v1891
    %1905 = vmatprep.subr.bf16.mxu0 0
    %1906 = vmatpush1.bf16.msra.mxu0 %v1890
    %1907 = vmatprep.subr.bf16.mxu0 0
    %1908 = vmatpush1.bf16.msra.mxu0 %v1889
    %1909 = vmatprep.subr.bf16.mxu0 0
    %1910 = vmatpush1.bf16.msra.mxu0 %v1888
    %1911 = vmatprep.subr.bf16.mxu0 0
    %1912 = vmatpush1.bf16.msra.mxu0 %v1887
    %1913 = vmatprep.subr.bf16.mxu0 0
    %1914 = vmatpush1.bf16.msra.mxu0 %v1886
    %1915 = vmatprep.subr.bf16.mxu0 0
    %1916 = vmatpush1.bf16.msra.mxu0 %v1885
    %1917 = vmatprep.subr.bf16.mxu0 0
    %1918 = vmatpush2.bf16.msra.mxu0 0
    %1919 = vmatprep.subr.bf16.mxu0 0
    %1920 = vmatpush2.bf16.msra.mxu0 0
    %1921 = vmatprep.subr.bf16.mxu0 0
    %1922 = vmatpush2.bf16.msra.mxu0 0
    %1923 = vmatprep.subr.bf16.mxu0 0
    %1924 = vmatpush2.bf16.msra.mxu0 0
    %1925 = vmatprep.subr.bf16.mxu0 0
    %1926 = vmatpush2.bf16.msra.mxu0 0
    %1927 = vmatprep.subr.bf16.mxu0 0
    %1928 = vmatpush2.bf16.msra.mxu0 0
    %1929 = vmatprep.subr.bf16.mxu0 0
    %1930 = vmatpush2.bf16.msra.mxu0 0
    %1931 = vmatprep.subr.bf16.mxu0 0
    %1932 = vmatpush2.bf16.msra.mxu0 0
    %1933 = vmatprep.mubr.bf16.mxu0 0
    %1934 = vmatmul.mubr.bf16.gmra.mxu0 %v1836
    %v1935 = vpop.f32.mrf.mxu0
    %v1936 = vadd.f32 0.0, %v1935
    %v1937 = vpop.f32.mrf.mxu0
    %v1938 = vpop.f32.mrf.mxu0
    %v1939 = vadd.f32 0.0, %v1938
    %v1940 = vpop.f32.mrf.mxu0
    %1941 = vdwg.mxu0
    %v1944 = vunpack.c.l.b16 %v1816
    %v1945 = vunpack.c.l.b16 %v1817
    %v1946 = vpack.c.b16 %v1945, %v1944
    %v1964 = vunpack.c.l.b16 %v1818
    %v1965 = vunpack.c.l.b16 %v1819
    %v1966 = vunpack.c.l.b16 %v1820
    %v1967 = vunpack.c.l.b16 %v1821
    %v1968 = vunpack.c.l.b16 %v1822
    %v1969 = vunpack.c.l.b16 %v1823
    %v1970 = vunpack.c.l.b16 %v1824
    %v1971 = vunpack.c.l.b16 %v1825
    %v1972 = vunpack.c.l.b16 %v1826
    %v1973 = vunpack.c.l.b16 %v1827
    %v1974 = vunpack.c.l.b16 %v1828
    %v1975 = vunpack.c.l.b16 %v1829
    %v1976 = vunpack.c.l.b16 %v1830
    %v1977 = vunpack.c.l.b16 %v1831
    %v1978 = vunpack.c.l.b16 %v1832
    %v1979 = vunpack.c.l.b16 %v1833
    %v1980 = vpack.c.b16 %v1965, %v1964
    %v1981 = vpack.c.b16 %v1967, %v1966
    %v1982 = vpack.c.b16 %v1969, %v1968
    %v1983 = vpack.c.b16 %v1971, %v1970
    %v1984 = vpack.c.b16 %v1973, %v1972
    %v1985 = vpack.c.b16 %v1975, %v1974
    %v1986 = vpack.c.b16 %v1977, %v1976
    %v1987 = vpack.c.b16 %v1979, %v1978
    %1996 = vmatprep.subr.bf16.mxu0 0
    %1997 = vmatpush1.bf16.msra.mxu0 %v1987
    %1998 = vmatprep.subr.bf16.mxu0 0
    %1999 = vmatpush1.bf16.msra.mxu0 %v1986
    %2000 = vmatprep.subr.bf16.mxu0 0
    %2001 = vmatpush1.bf16.msra.mxu0 %v1985
    %2002 = vmatprep.subr.bf16.mxu0 0
    %2003 = vmatpush1.bf16.msra.mxu0 %v1984
    %2004 = vmatprep.subr.bf16.mxu0 0
    %2005 = vmatpush1.bf16.msra.mxu0 %v1983
    %2006 = vmatprep.subr.bf16.mxu0 0
    %2007 = vmatpush1.bf16.msra.mxu0 %v1982
    %2008 = vmatprep.subr.bf16.mxu0 0
    %2009 = vmatpush1.bf16.msra.mxu0 %v1981
    %2010 = vmatprep.subr.bf16.mxu0 0
    %2011 = vmatpush1.bf16.msra.mxu0 %v1980
    %2012 = vmatprep.subr.bf16.mxu0 0
    %2013 = vmatpush2.bf16.msra.mxu0 0
    %2014 = vmatprep.subr.bf16.mxu0 0
    %2015 = vmatpush2.bf16.msra.mxu0 0
    %2016 = vmatprep.subr.bf16.mxu0 0
    %2017 = vmatpush2.bf16.msra.mxu0 0
    %2018 = vmatprep.subr.bf16.mxu0 0
    %2019 = vmatpush2.bf16.msra.mxu0 0
    %2020 = vmatprep.subr.bf16.mxu0 0
    %2021 = vmatpush2.bf16.msra.mxu0 0
    %2022 = vmatprep.subr.bf16.mxu0 0
    %2023 = vmatpush2.bf16.msra.mxu0 0
    %2024 = vmatprep.subr.bf16.mxu0 0
    %2025 = vmatpush2.bf16.msra.mxu0 0
    %2026 = vmatprep.subr.bf16.mxu0 0
    %2027 = vmatpush2.bf16.msra.mxu0 0
    %2028 = vmatprep.mubr.bf16.mxu0 0
    %2029 = vmatmul.mubr.bf16.gmra.mxu0 %v1946
    %v2030 = vpop.f32.mrf.mxu0
    %v2031 = vadd.f32 %v1936, %v2030
    %v2032 = vpop.f32.mrf.mxu0
    %v2033 = vpop.f32.mrf.mxu0
    %v2034 = vadd.f32 %v1939, %v2033
    %v2035 = vpop.f32.mrf.mxu0
    %2036 = vdwg.mxu0
    %v2037 = vld [vmem:[%s9] sm:$0x1]
    %v2039 = vlaneseq
    %v2040 = vshrl.u32 %v2039, 7
    %v2041 = vsub.s32 0, %v2040
    %v2042 = vrot.slane %v2037, %v2041
    %v2044 = vadd.f32 %v2031, %v2042
    %v2045 = vadd.f32 %v2034, %v2042
    %v2046 = vmax.f32 %v2044, 0.0
    %v2047 = vmax.f32 %v2045, 0.0
    %2048 = vst [vmem:[#allocation21] sm:$0xff] %v2046
    %2049 = vst [vmem:[#allocation21 + $0x8] sm:$0xff] %v2047
    // Predicated region
    $region54: #{tpu_custom_call.1} parent=1 // pred_check
      _
    $region55: #{tpu_custom_call.1} parent=1 // pred_check_branch
      %2051 = sbr.rel (0) target = $region57
    $region56: #{tpu_custom_call.1} parent=1 // pred_region
      %s2053 = ssub.s32 256, 256
      %2054 = vsyncadd [#allocation12], %s2053
      %s2055 = sshll.u32 [#allocation21], 4
      %s2056 = int_to_ptr.vmem [resolvable:$true] %s2055
      %2061 = dma.vmem_to_hbm [thread:$0]  %s2056, 256, %s10, [#allocation12], 128, 128, 8
    $region57: #{tpu_custom_call.1} parent=1 // pred_fallthru
      _
    // Predicated region
    $region58: #{tpu_custom_call.1} parent=1 // pred_check
      _
    $region59: #{tpu_custom_call.1} parent=1 // pred_check_branch
      %2063 = sbr.rel (0) target = $region61
    $region60: #{tpu_custom_call.1} parent=1 // pred_region
      %2064 = dma.done [#allocation12], 256
    $region61: #{tpu_custom_call.1} parent=1 // pred_fallthru
      _
    %2065 = vsyncpa [#allocation11], 1
    %2066 = vsyncpa [#allocation14], 1
    %2067 = vsyncpa [#allocation17], 1
    %2068 = vsyncpa [#allocation20], 1
    %2069 = vsyncpa [#allocation12], 1

</llo_original>
